<compile_context>
chip_gen: v7x
topology: tpu7x:2x2x1
jax: 0.10.0
libtpu: 0.0.40
codegen_flags: <defaults>
</compile_context>

<pallas_src>
import functools

import jax
import jax.numpy as jnp
from jax.experimental import pallas as pl
from jax.experimental.pallas import tpu as pltpu


def _round_up(x, m):
    return ((x + m - 1) // m) * m


def _make_kernel(d_out, d_out_pad):
    """Build the fused MLP+LN kernel; d_out/d_out_pad are static ints."""
    eps = 1e-5  # nn.LayerNorm default
    needs_mask = d_out != d_out_pad

    def kernel(x_ref, w1_ref, b1_ref, g1_ref, be1_ref,
               w2_ref, b2_ref, g2_ref, be2_ref, o_ref):
        # x tile already has the positional encoding added and is bf16
        x = x_ref[...]                                              # (TM, D_in) bf16

        # fc1 (+bias) + ReLU — MXU matmul with f32 accumulation
        h = jnp.dot(x, w1_ref[...], preferred_element_type=jnp.float32)
        h = h + b1_ref[...]                                         # (TM, H)
        h = jnp.maximum(h, 0.0)
        # dropout: identity in eval/inference mode

        # LayerNorm over hidden dim (f32)
        mu = jnp.mean(h, axis=-1, keepdims=True)
        d = h - mu
        var = jnp.mean(d * d, axis=-1, keepdims=True)
        h = d * jax.lax.rsqrt(var + eps)
        h = h * g1_ref[...] + be1_ref[...]

        # fc2 (+bias) — bf16 operands, f32 accumulation, lane-dense N=d_out_pad
        y = jnp.dot(h.astype(w2_ref.dtype), w2_ref[...],
                    preferred_element_type=jnp.float32)
        y = y + b2_ref[...]                                         # (TM, Dpad)

        # LayerNorm over the *valid* d_out lanes (padded lanes masked out)
        if needs_mask:
            col = jax.lax.broadcasted_iota(jnp.int32, (1, d_out_pad), 1)
            valid = col < d_out
            y_valid = jnp.where(valid, y, 0.0)
            mu2 = jnp.sum(y_valid, axis=-1, keepdims=True) * (1.0 / d_out)
            d2 = jnp.where(valid, y - mu2, 0.0)
            var2 = jnp.sum(d2 * d2, axis=-1, keepdims=True) * (1.0 / d_out)
        else:
            mu2 = jnp.mean(y, axis=-1, keepdims=True)
            d2 = y - mu2
            var2 = jnp.mean(d2 * d2, axis=-1, keepdims=True)
        y = d2 * jax.lax.rsqrt(var2 + eps)
        y = y * g2_ref[...] + be2_ref[...]   # padded gamma/beta are 0 -> pad lanes 0

        o_ref[...] = y.astype(o_ref.dtype)

    return kernel


def sinusoidal_pe(seq_len, d_model, dtype=jnp.float32):
    """Standard absolute sinusoidal positional encoding, shape (seq_len, d_model)."""
    pos = jnp.arange(seq_len, dtype=jnp.float32)[:, None]          # (S, 1)
    i = jnp.arange(0, d_model, 2, dtype=jnp.float32)[None, :]      # (1, ceil(D/2))
    div = jnp.exp(-(i / d_model) * jnp.log(10000.0))
    ang = pos * div                                                 # (S, ceil(D/2))
    pe = jnp.zeros((seq_len, d_model), dtype=jnp.float32)
    pe = pe.at[:, 0::2].set(jnp.sin(ang))
    n_cos = pe[:, 1::2].shape[1]                                    # handles odd d_model
    pe = pe.at[:, 1::2].set(jnp.cos(ang[:, :n_cos]))
    return pe.astype(dtype)


def _choose_row_tiling(R, max_tile_rows):
    """Pick TM (multiple of 16 for bf16 packing) and tile count; prefer >=2
    'parallel' steps so both v7x TensorCores get work while keeping serial
    overhead tiny on v5e/v6e."""
    num_tiles = max(1, -(-R // max_tile_rows))          # cdiv
    if num_tiles == 1 and R >= 32:
        num_tiles = 2                                   # feed both v7x TCs
    tm = _round_up(-(-R // num_tiles), 16)
    num_tiles = -(-R // tm)                             # recompute after rounding
    return tm, num_tiles


@functools.partial(jax.jit, static_argnames=("max_tile_rows",))
def pe_feedforward(x, params, *, max_tile_rows=1024):
    """x: (B, S, D_in) float32 -> (B, S, D_out) float32."""
    B, S, D_in = x.shape
    w1, b1, g1, be1, w2, b2, g2, be2 = (
        params["w1"], params["b1"], params["g1"], params["be1"],
        params["w2"], params["b2"], params["g2"], params["be2"],
    )
    H = w1.shape[1]
    D_out = w2.shape[1]
    D_out_pad = _round_up(max(D_out, 128), 128)     # lane-dense output width

    # ---- collapse (B, S) into a row axis; fold the PE add + bf16 cast into
    #      the same wrapper fusion that pads/reshapes (no PE stream in HBM) ----
    R = B * S
    TM, num_tiles = _choose_row_tiling(R, max_tile_rows)
    R_pad = num_tiles * TM

    pe = sinusoidal_pe(S, D_in, jnp.float32)
    x2 = (x + pe[None]).astype(jnp.bfloat16).reshape(R, D_in)
    if R_pad != R:
        x2 = jnp.pad(x2, ((0, R_pad - R), (0, 0)))

    # ---- parameter prep: bf16 matmul weights, f32 (1, N) rows for LN/bias ----
    w1m = w1.astype(jnp.bfloat16)
    w2m = jnp.pad(w2, ((0, 0), (0, D_out_pad - D_out))).astype(jnp.bfloat16)

    b1r = b1.reshape(1, H).astype(jnp.float32)
    g1r = g1.reshape(1, H).astype(jnp.float32)
    be1r = be1.reshape(1, H).astype(jnp.float32)
    col_pad = (0, D_out_pad - D_out)
    b2r = jnp.pad(b2, col_pad).reshape(1, D_out_pad).astype(jnp.float32)
    g2r = jnp.pad(g2, col_pad).reshape(1, D_out_pad).astype(jnp.float32)
    be2r = jnp.pad(be2, col_pad).reshape(1, D_out_pad).astype(jnp.float32)

    flops = 2 * R_pad * (D_in * H + H * D_out_pad)
    transcendentals = 2 * R_pad                         # two rsqrt per row (LN1, LN2)
    bytes_accessed = (
        x2.size * 2                                     # bf16 row input
        + w1m.size * 2 + w2m.size * 2                   # bf16 weights
        + (b1r.size + g1r.size + be1r.size + b2r.size + g2r.size + be2r.size) * 4
        + R_pad * D_out_pad * 4                         # lane-dense f32 output
    )

    kernel = _make_kernel(D_out, D_out_pad)
    full = lambda shape: pl.BlockSpec(shape, lambda m: (0,) * len(shape))

    out = pl.pallas_call(
        kernel,
        out_shape=jax.ShapeDtypeStruct((R_pad, D_out_pad), jnp.float32),
        grid_spec=pltpu.PrefetchScalarGridSpec(
            num_scalar_prefetch=0,
            grid=(num_tiles,),
            in_specs=[
                pl.BlockSpec((TM, D_in), lambda m: (m, 0)),        # x rows (bf16, PE added)
                full((D_in, H)),                                   # w1 (bf16)
                full((1, H)),                                      # b1
                full((1, H)),                                      # gamma1
                full((1, H)),                                      # beta1
                full((H, D_out_pad)),                              # w2 (bf16, padded)
                full((1, D_out_pad)),                              # b2
                full((1, D_out_pad)),                              # gamma2
                full((1, D_out_pad)),                              # beta2
            ],
            out_specs=pl.BlockSpec((TM, D_out_pad), lambda m: (m, 0)),
        ),
        compiler_params=pltpu.CompilerParams(
            dimension_semantics=("parallel",)),
        cost_estimate=pl.CostEstimate(
            flops=flops, transcendentals=transcendentals,
            bytes_accessed=bytes_accessed),
    )(x2, w1m, b1r, g1r, be1r, w2m, b2r, g2r, be2r)

    # TODO(synk): if the consumer can work on the lane-dense padded slab,
    # return `out` directly and fuse the [:, :D_out] slice downstream.
    return out[:R, :D_out].reshape(B, S, D_out)


def init_params(key, input_size, hidden_size, output_size):
    k1, k2, k3, k4, k5, k6 = jax.random.split(key, 6)
    s1 = 1.0 / jnp.sqrt(input_size)
    s2 = 1.0 / jnp.sqrt(hidden_size)
    return {
        # fc1: Linear(input_size, hidden_size)   (stored as (in, out))
        "w1": jax.random.uniform(k1, (input_size, hidden_size), jnp.float32, -s1, s1),
        "b1": jax.random.uniform(k2, (hidden_size,), jnp.float32, -s1, s1),
        # layer_norm1 affine (nontrivial but deterministic)
        "g1": 1.0 + 0.1 * jax.random.normal(k5, (hidden_size,), jnp.float32),
        "be1": 0.1 * jax.random.normal(k6, (hidden_size,), jnp.float32),
        # fc2: Linear(hidden_size, output_size)
        "w2": jax.random.uniform(k3, (hidden_size, output_size), jnp.float32, -s2, s2),
        "b2": jax.random.uniform(k4, (output_size,), jnp.float32, -s2, s2),
        # layer_norm2 affine
        "g2": jnp.ones((output_size,), jnp.float32),
        "be2": jnp.zeros((output_size,), jnp.float32),
    }


def reference(x, params, matmul_dtype=None):
    """Pure-JAX reference (dropout = identity). If matmul_dtype is given,
    mirror the kernel's bf16-operand / f32-accumulate matmuls."""
    B, S, D = x.shape
    pe = sinusoidal_pe(S, D, jnp.float32)
    h_in = x + pe
    w1, w2 = params["w1"], params["w2"]
    if matmul_dtype is not None:
        h_in, w1, w2 = (h_in.astype(matmul_dtype), w1.astype(matmul_dtype),
                        w2.astype(matmul_dtype))
    h = jnp.dot(h_in, w1, preferred_element_type=jnp.float32) + params["b1"]
    h = jnp.maximum(h, 0.0)
    mu = h.mean(-1, keepdims=True)
    var = ((h - mu) ** 2).mean(-1, keepdims=True)
    h = (h - mu) * jax.lax.rsqrt(var + 1e-5) * params["g1"] + params["be1"]
    h2 = h.astype(matmul_dtype) if matmul_dtype is not None else h
    y = jnp.dot(h2, w2, preferred_element_type=jnp.float32) + params["b2"]
    mu2 = y.mean(-1, keepdims=True)
    var2 = ((y - mu2) ** 2).mean(-1, keepdims=True)
    return (y - mu2) * jax.lax.rsqrt(var2 + 1e-5) * params["g2"] + params["be2"]


if __name__ == "__main__":
    # shapes from the module spec: (batch, seq, input_size) -> (batch, seq, output_size)
    batch, seq, input_size = 32, 50, 128
    hidden_size, output_size = 256, 10

    key = jax.random.PRNGKey(0)
    kx, kp = jax.random.split(key)
    x = jax.random.normal(kx, (batch, seq, input_size), jnp.float32)
    params = init_params(kp, input_size, hidden_size, output_size)

    out = pe_feedforward(x, params)
    out = jax.block_until_ready(out)
    assert out.shape == (batch, seq, output_size)

    # apples-to-apples check (same bf16 matmul operands, f32 accumulation)
    ref_bf16 = reference(x, params, matmul_dtype=jnp.bfloat16)
    assert jnp.allclose(out, ref_bf16, atol=2e-3, rtol=2e-3), \
        float(jnp.max(jnp.abs(out - ref_bf16)))

    # module-semantics (pure f32) check with bf16-appropriate tolerance
    ref_f32 = reference(x, params)
    assert jnp.allclose(out, ref_f32, atol=5e-2, rtol=5e-2), \
        float(jnp.max(jnp.abs(out - ref_f32)))

    print("KERNEL_OK")
</pallas_src>

<mosaic_0001>
module attributes {stable_mosaic.version = 11 : i64} {
  func.func @kernel(%arg0: i32, %arg1: memref<800x128xbf16, #tpu.memory_space<vmem>>, %arg2: memref<128x256xbf16, #tpu.memory_space<vmem>>, %arg3: memref<1x256xf32, #tpu.memory_space<vmem>>, %arg4: memref<1x256xf32, #tpu.memory_space<vmem>>, %arg5: memref<1x256xf32, #tpu.memory_space<vmem>>, %arg6: memref<256x128xbf16, #tpu.memory_space<vmem>>, %arg7: memref<1x128xf32, #tpu.memory_space<vmem>>, %arg8: memref<1x128xf32, #tpu.memory_space<vmem>>, %arg9: memref<1x128xf32, #tpu.memory_space<vmem>>, %arg10: memref<800x128xf32, #tpu.memory_space<vmem>>) attributes {dimension_semantics = [#tpu.dimension_semantics<parallel>], iteration_bounds = array<i64: 2>, scalar_prefetch = 0 : i64, scratch_operands = 0 : i64, tpu.core_type = #tpu.core_type<tc>, window_params = [{transform_indices = @transform_0, window_bounds = array<i64: 800, 128>}, {pipeline_mode = #tpu.pipeline_mode<synchronous>, transform_indices = @transform_1, window_bounds = array<i64: 128, 256>}, {pipeline_mode = #tpu.pipeline_mode<synchronous>, transform_indices = @transform_2, window_bounds = array<i64: 1, 256>}, {pipeline_mode = #tpu.pipeline_mode<synchronous>, transform_indices = @transform_3, window_bounds = array<i64: 1, 256>}, {pipeline_mode = #tpu.pipeline_mode<synchronous>, transform_indices = @transform_4, window_bounds = array<i64: 1, 256>}, {pipeline_mode = #tpu.pipeline_mode<synchronous>, transform_indices = @transform_5, window_bounds = array<i64: 256, 128>}, {pipeline_mode = #tpu.pipeline_mode<synchronous>, transform_indices = @transform_6, window_bounds = array<i64: 1, 128>}, {pipeline_mode = #tpu.pipeline_mode<synchronous>, transform_indices = @transform_7, window_bounds = array<i64: 1, 128>}, {pipeline_mode = #tpu.pipeline_mode<synchronous>, transform_indices = @transform_8, window_bounds = array<i64: 1, 128>}, {transform_indices = @transform_9, window_bounds = array<i64: 800, 128>}]} {
    %c0 = arith.constant 0 : index
    %c0_0 = arith.constant 0 : index
    %0 = vector.load %arg1[%c0, %c0_0] : memref<800x128xbf16, #tpu.memory_space<vmem>>, vector<800x128xbf16>
    %c0_1 = arith.constant 0 : index
    %c0_2 = arith.constant 0 : index
    %1 = vector.load %arg2[%c0_1, %c0_2] : memref<128x256xbf16, #tpu.memory_space<vmem>>, vector<128x256xbf16>
    %cst = arith.constant dense<0.000000e+00> : vector<800x256xf32>
    %2 = tpu.matmul %0, %1, %cst {dimension_numbers = #tpu.dot_dimension_numbers<[1], [0], [0], [1], [0, 0, 1, 1], [], []>} : vector<800x128xbf16>, vector<128x256xbf16>, vector<800x256xf32> -> vector<800x256xf32>
    %c0_3 = arith.constant 0 : index
    %c0_4 = arith.constant 0 : index
    %3 = vector.load %arg3[%c0_3, %c0_4] : memref<1x256xf32, #tpu.memory_space<vmem>>, vector<1x256xf32>
    %4 = vector.broadcast %3 : vector<1x256xf32> to vector<800x256xf32>
    %5 = arith.addf %2, %4 : vector<800x256xf32>
    %cst_5 = arith.constant 0.000000e+00 : f32
    %6 = vector.broadcast %cst_5 : f32 to vector<800x256xf32>
    %7 = arith.maximumf %5, %6 : vector<800x256xf32>
    %cst_6 = arith.constant dense<0.000000e+00> : vector<800xf32>
    %8 = vector.multi_reduction <add>, %7, %cst_6 [1] : vector<800x256xf32> to vector<800xf32>
    %9 = vector.shape_cast %8 : vector<800xf32> to vector<800x1xf32>
    %cst_7 = arith.constant 2.560000e+02 : f32
    %10 = vector.broadcast %cst_7 : f32 to vector<800x1xf32>
    %11 = arith.divf %9, %10 : vector<800x1xf32>
    %12 = vector.broadcast %11 : vector<800x1xf32> to vector<800x256xf32>
    %13 = arith.subf %7, %12 : vector<800x256xf32>
    %14 = arith.mulf %13, %13 : vector<800x256xf32>
    %cst_8 = arith.constant dense<0.000000e+00> : vector<800xf32>
    %15 = vector.multi_reduction <add>, %14, %cst_8 [1] : vector<800x256xf32> to vector<800xf32>
    %16 = vector.shape_cast %15 : vector<800xf32> to vector<800x1xf32>
    %cst_9 = arith.constant 2.560000e+02 : f32
    %17 = vector.broadcast %cst_9 : f32 to vector<800x1xf32>
    %18 = arith.divf %16, %17 : vector<800x1xf32>
    %cst_10 = arith.constant 9.99999974E-6 : f32
    %19 = vector.broadcast %cst_10 : f32 to vector<800x1xf32>
    %20 = arith.addf %18, %19 : vector<800x1xf32>
    %21 = math.rsqrt %20 : vector<800x1xf32>
    %22 = vector.broadcast %21 : vector<800x1xf32> to vector<800x256xf32>
    %23 = arith.mulf %13, %22 : vector<800x256xf32>
    %c0_11 = arith.constant 0 : index
    %c0_12 = arith.constant 0 : index
    %24 = vector.load %arg4[%c0_11, %c0_12] : memref<1x256xf32, #tpu.memory_space<vmem>>, vector<1x256xf32>
    %25 = vector.broadcast %24 : vector<1x256xf32> to vector<800x256xf32>
    %26 = arith.mulf %23, %25 : vector<800x256xf32>
    %c0_13 = arith.constant 0 : index
    %c0_14 = arith.constant 0 : index
    %27 = vector.load %arg5[%c0_13, %c0_14] : memref<1x256xf32, #tpu.memory_space<vmem>>, vector<1x256xf32>
    %28 = vector.broadcast %27 : vector<1x256xf32> to vector<800x256xf32>
    %29 = arith.addf %26, %28 : vector<800x256xf32>
    %30 = arith.truncf %29 : vector<800x256xf32> to vector<800x256xbf16>
    %c0_15 = arith.constant 0 : index
    %c0_16 = arith.constant 0 : index
    %31 = vector.load %arg6[%c0_15, %c0_16] : memref<256x128xbf16, #tpu.memory_space<vmem>>, vector<256x128xbf16>
    %cst_17 = arith.constant dense<0.000000e+00> : vector<800x128xf32>
    %32 = tpu.matmul %30, %31, %cst_17 {dimension_numbers = #tpu.dot_dimension_numbers<[1], [0], [0], [1], [0, 0, 1, 1], [], []>} : vector<800x256xbf16>, vector<256x128xbf16>, vector<800x128xf32> -> vector<800x128xf32>
    %c0_18 = arith.constant 0 : index
    %c0_19 = arith.constant 0 : index
    %33 = vector.load %arg7[%c0_18, %c0_19] : memref<1x128xf32, #tpu.memory_space<vmem>>, vector<1x128xf32>
    %34 = vector.broadcast %33 : vector<1x128xf32> to vector<800x128xf32>
    %35 = arith.addf %32, %34 : vector<800x128xf32>
    %36 = tpu.iota {dimensions = array<i32: 1>} : vector<1x128xi32>
    %c10_i32 = arith.constant 10 : i32
    %37 = vector.broadcast %c10_i32 : i32 to vector<1x128xi32>
    %38 = arith.cmpi slt, %36, %37 : vector<1x128xi32>
    %cst_20 = arith.constant 0.000000e+00 : f32
    %39 = vector.shape_cast %38 : vector<1x128xi1> to vector<1x128xi1>
    %40 = vector.broadcast %39 : vector<1x128xi1> to vector<800x128xi1>
    %41 = vector.broadcast %cst_20 : f32 to vector<800x128xf32>
    %42 = arith.select %40, %35, %41 : vector<800x128xi1>, vector<800x128xf32>
    %cst_21 = arith.constant dense<0.000000e+00> : vector<800xf32>
    %43 = vector.multi_reduction <add>, %42, %cst_21 [1] : vector<800x128xf32> to vector<800xf32>
    %44 = vector.shape_cast %43 : vector<800xf32> to vector<800x1xf32>
    %cst_22 = arith.constant 1.000000e-01 : f32
    %45 = vector.broadcast %cst_22 : f32 to vector<800x1xf32>
    %46 = arith.mulf %44, %45 : vector<800x1xf32>
    %47 = vector.broadcast %46 : vector<800x1xf32> to vector<800x128xf32>
    %48 = arith.subf %35, %47 : vector<800x128xf32>
    %cst_23 = arith.constant 0.000000e+00 : f32
    %49 = vector.shape_cast %38 : vector<1x128xi1> to vector<1x128xi1>
    %50 = vector.broadcast %49 : vector<1x128xi1> to vector<800x128xi1>
    %51 = vector.broadcast %cst_23 : f32 to vector<800x128xf32>
    %52 = arith.select %50, %48, %51 : vector<800x128xi1>, vector<800x128xf32>
    %53 = arith.mulf %52, %52 : vector<800x128xf32>
    %cst_24 = arith.constant dense<0.000000e+00> : vector<800xf32>
    %54 = vector.multi_reduction <add>, %53, %cst_24 [1] : vector<800x128xf32> to vector<800xf32>
    %55 = vector.shape_cast %54 : vector<800xf32> to vector<800x1xf32>
    %cst_25 = arith.constant 1.000000e-01 : f32
    %56 = vector.broadcast %cst_25 : f32 to vector<800x1xf32>
    %57 = arith.mulf %55, %56 : vector<800x1xf32>
    %cst_26 = arith.constant 9.99999974E-6 : f32
    %58 = vector.broadcast %cst_26 : f32 to vector<800x1xf32>
    %59 = arith.addf %57, %58 : vector<800x1xf32>
    %60 = math.rsqrt %59 : vector<800x1xf32>
    %61 = vector.broadcast %60 : vector<800x1xf32> to vector<800x128xf32>
    %62 = arith.mulf %52, %61 : vector<800x128xf32>
    %c0_27 = arith.constant 0 : index
    %c0_28 = arith.constant 0 : index
    %63 = vector.load %arg8[%c0_27, %c0_28] : memref<1x128xf32, #tpu.memory_space<vmem>>, vector<1x128xf32>
    %64 = vector.broadcast %63 : vector<1x128xf32> to vector<800x128xf32>
    %65 = arith.mulf %62, %64 : vector<800x128xf32>
    %c0_29 = arith.constant 0 : index
    %c0_30 = arith.constant 0 : index
    %66 = vector.load %arg9[%c0_29, %c0_30] : memref<1x128xf32, #tpu.memory_space<vmem>>, vector<1x128xf32>
    %67 = vector.broadcast %66 : vector<1x128xf32> to vector<800x128xf32>
    %68 = arith.addf %65, %67 : vector<800x128xf32>
    %c0_31 = arith.constant 0 : index
    %c0_32 = arith.constant 0 : index
    %69 = vector.load %arg10[%c0_31, %c0_32] : memref<800x128xf32, #tpu.memory_space<vmem>>, vector<800x128xf32>
    tpu.vector_store %arg10[%c0_31, %c0_32], %68 {strides = array<i32>} : memref<800x128xf32, #tpu.memory_space<vmem>>, vector<800x128xf32>,
    return
  }
  func.func @transform_0(%arg0: i32) -> (i32, i32) {
    %c0_i32 = arith.constant 0 : i32
    %c0_i32_0 = arith.constant 0 : i32
    return %arg0, %c0_i32 : i32, i32
  }
  func.func @transform_1(%arg0: i32) -> (i32, i32) {
    %c0_i32 = arith.constant 0 : i32
    %c0_i32_0 = arith.constant 0 : i32
    %c0_i32_1 = arith.constant 0 : i32
    return %c0_i32, %c0_i32_0 : i32, i32
  }
  func.func @transform_2(%arg0: i32) -> (i32, i32) {
    %c0_i32 = arith.constant 0 : i32
    %c0_i32_0 = arith.constant 0 : i32
    %c0_i32_1 = arith.constant 0 : i32
    return %c0_i32, %c0_i32_0 : i32, i32
  }
  func.func @transform_3(%arg0: i32) -> (i32, i32) {
    %c0_i32 = arith.constant 0 : i32
    %c0_i32_0 = arith.constant 0 : i32
    %c0_i32_1 = arith.constant 0 : i32
    return %c0_i32, %c0_i32_0 : i32, i32
  }
  func.func @transform_4(%arg0: i32) -> (i32, i32) {
    %c0_i32 = arith.constant 0 : i32
    %c0_i32_0 = arith.constant 0 : i32
    %c0_i32_1 = arith.constant 0 : i32
    return %c0_i32, %c0_i32_0 : i32, i32
  }
  func.func @transform_5(%arg0: i32) -> (i32, i32) {
    %c0_i32 = arith.constant 0 : i32
    %c0_i32_0 = arith.constant 0 : i32
    %c0_i32_1 = arith.constant 0 : i32
    return %c0_i32, %c0_i32_0 : i32, i32
  }
  func.func @transform_6(%arg0: i32) -> (i32, i32) {
    %c0_i32 = arith.constant 0 : i32
    %c0_i32_0 = arith.constant 0 : i32
    %c0_i32_1 = arith.constant 0 : i32
    return %c0_i32, %c0_i32_0 : i32, i32
  }
  func.func @transform_7(%arg0: i32) -> (i32, i32) {
    %c0_i32 = arith.constant 0 : i32
    %c0_i32_0 = arith.constant 0 : i32
    %c0_i32_1 = arith.constant 0 : i32
    return %c0_i32, %c0_i32_0 : i32, i32
  }
  func.func @transform_8(%arg0: i32) -> (i32, i32) {
    %c0_i32 = arith.constant 0 : i32
    %c0_i32_0 = arith.constant 0 : i32
    %c0_i32_1 = arith.constant 0 : i32
    return %c0_i32, %c0_i32_0 : i32, i32
  }
  func.func @transform_9(%arg0: i32) -> (i32, i32) {
    %c0_i32 = arith.constant 0 : i32
    %c0_i32_0 = arith.constant 0 : i32
    return %arg0, %c0_i32 : i32, i32
  }
}

</mosaic_0001>

<llo_original>
// kernel: pe_feedforward.1
$region0: #{pe_feedforward.1}
  #allocation0 [shape = 'u32[]', space=smem, size = 0x4, offset = 0x4, fixed_abs, tag = 'smem constant byte address 0x4 - core index']
  #allocation1 [shape = 'u32[144,128]{1,0:T(1,128)}', space=vmem, size = 0x12000, scoped, tag = 'internal scratch']
  %s0 = inlined_call_operand.vmem [shape: bf16[1600,128], index: 0, kind: input, shape index: {}]
  %s1 = inlined_call_operand.vmem [shape: bf16[128,256], index: 1, kind: input, shape index: {}]
  %s2 = inlined_call_operand.vmem [shape: f32[1,256], index: 2, kind: input, shape index: {}]
  %s3 = inlined_call_operand.vmem [shape: f32[1,256], index: 3, kind: input, shape index: {}]
  %s4 = inlined_call_operand.vmem [shape: f32[1,256], index: 4, kind: input, shape index: {}]
  %s5 = inlined_call_operand.vmem [shape: bf16[256,128], index: 5, kind: input, shape index: {}]
  %s6 = inlined_call_operand.vmem [shape: f32[1,128], index: 6, kind: input, shape index: {}]
  %s7 = inlined_call_operand.vmem [shape: f32[1,128], index: 7, kind: input, shape index: {}]
  %s8 = inlined_call_operand.vmem [shape: f32[1,128], index: 8, kind: input, shape index: {}]
  %s9 = inlined_call_operand.vmem [shape: f32[1600,128], index: 9, kind: output, shape index: {}]
  %s10 = sld [smem:[#allocation0]]
  $region69: #{pe_feedforward.1} parent=0
    _
  %s12 = ssub.s32 1, %s10
  %s13 = scalar_select 0, %s12, %s10
  loop: start=0, step=1, limit=4
  $region2: #{pe_feedforward.1} parent=0 // loop_pre_header
    _
  $region3: #{pe_feedforward.1} parent=0 // loop_header
    %s15 = sphi 0, %s19
    %p16 = scmp.ge.s32.totalorder %s15, 4
    %s25 = sphi 0, %s27
    %s28 = sphi 0, %s25
    %s29 = sphi 0, %s28
    %s45 = sphi 0, %s29
    %s49 = sphi 0, %s49
    %s51 = sphi 0, %s49
    %s52 = sphi 0, %s51
    %s66 = sphi 0, %s52
    %s70 = sphi 0, %s70
    %s72 = sphi 0, %s70
    %s73 = sphi 0, %s72
    %s87 = sphi 0, %s73
    %s91 = sphi 0, %s91
    %s93 = sphi 0, %s91
    %s94 = sphi 0, %s93
    %s108 = sphi 0, %s94
    %s112 = sphi 0, %s112
    %s114 = sphi 0, %s112
    %s115 = sphi 0, %s114
    %s129 = sphi 0, %s115
    %s133 = sphi 0, %s133
    %s135 = sphi 0, %s133
    %s136 = sphi 0, %s135
    %s150 = sphi 0, %s136
    %s154 = sphi 0, %s154
    %s156 = sphi 0, %s154
    %s157 = sphi 0, %s156
    %s171 = sphi 0, %s157
    %s175 = sphi 0, %s175
    %s177 = sphi 0, %s175
    %s178 = sphi 0, %s177
    %s192 = sphi 0, %s178
    %s196 = sphi 0, %s196
    %s198 = sphi 0, %s196
    %s199 = sphi 0, %s198
    %s213 = sphi 0, %s199
    %s219 = sphi 0, %s221
    %s222 = sphi 0, %s219
    %s223 = sphi 0, %s222
    %s239 = sphi 0, %s223
  $region4: #{pe_feedforward.1} parent=0 // loop_header_branch
    %18 = sbr.rel (%p16) target = $region8
  $region5: #{pe_feedforward.1} parent=0 // loop_body
    %s20 = ssub.s32 %s15, 1
    %s21 = ssub.s32 %s15, 2
    %s22 = sadd.s32 %s15, 1
    %s23 = ssub.s32 %s15, %s22
    %p24 = scmp.eq.s32.totalorder %s23, 0
    %s26 = sadd.s32 %s25, 1
    %s27 = scalar_select %p24, %s25, %s26
    %p30 = pneg %p24
    %p31 = scmp.eq.s32.totalorder %s15, 1
    %p32 = por %p30, %p31
    %p33 = scmp.ne.s32.totalorder %s25, %s28
    %p34 = scmp.eq.s32.totalorder %s15, 0
    %p35 = por %p33, %p34
    %p36 = scmp.ne.s32.totalorder %s25, %s28
    %p37 = scmp.eq.s32.totalorder %s20, 1
    %p38 = por %p36, %p37
    %p39 = scmp.ne.s32.totalorder %s28, %s29
    %p40 = scmp.eq.s32.totalorder %s20, 0
    %p41 = por %p39, %p40
    %p42 = scmp.ne.s32.totalorder %s28, %s29
    %p43 = scmp.eq.s32.totalorder %s21, 1
    %p44 = por %p42, %p43
    %p46 = scmp.ne.s32.totalorder %s29, %s45
    %p47 = scmp.eq.s32.totalorder %s21, 0
    %p48 = por %p46, %p47
    %s50 = sadd.s32 %s49, 1
    %p53 = scmp.eq.s32.totalorder %s15, 1
    %p54 = scmp.ne.s32.totalorder %s49, %s51
    %p55 = scmp.eq.s32.totalorder %s15, 0
    %p56 = por %p54, %p55
    %p57 = scmp.ne.s32.totalorder %s49, %s51
    %p58 = scmp.eq.s32.totalorder %s20, 1
    %p59 = por %p57, %p58
    %p60 = scmp.ne.s32.totalorder %s51, %s52
    %p61 = scmp.eq.s32.totalorder %s20, 0
    %p62 = por %p60, %p61
    %p63 = scmp.ne.s32.totalorder %s51, %s52
    %p64 = scmp.eq.s32.totalorder %s21, 1
    %p65 = por %p63, %p64
    %p67 = scmp.ne.s32.totalorder %s52, %s66
    %p68 = scmp.eq.s32.totalorder %s21, 0
    %p69 = por %p67, %p68
    %s71 = sadd.s32 %s70, 1
    %p74 = scmp.eq.s32.totalorder %s15, 1
    %p75 = scmp.ne.s32.totalorder %s70, %s72
    %p76 = scmp.eq.s32.totalorder %s15, 0
    %p77 = por %p75, %p76
    %p78 = scmp.ne.s32.totalorder %s70, %s72
    %p79 = scmp.eq.s32.totalorder %s20, 1
    %p80 = por %p78, %p79
    %p81 = scmp.ne.s32.totalorder %s72, %s73
    %p82 = scmp.eq.s32.totalorder %s20, 0
    %p83 = por %p81, %p82
    %p84 = scmp.ne.s32.totalorder %s72, %s73
    %p85 = scmp.eq.s32.totalorder %s21, 1
    %p86 = por %p84, %p85
    %p88 = scmp.ne.s32.totalorder %s73, %s87
    %p89 = scmp.eq.s32.totalorder %s21, 0
    %p90 = por %p88, %p89
    %s92 = sadd.s32 %s91, 1
    %p95 = scmp.eq.s32.totalorder %s15, 1
    %p96 = scmp.ne.s32.totalorder %s91, %s93
    %p97 = scmp.eq.s32.totalorder %s15, 0
    %p98 = por %p96, %p97
    %p99 = scmp.ne.s32.totalorder %s91, %s93
    %p100 = scmp.eq.s32.totalorder %s20, 1
    %p101 = por %p99, %p100
    %p102 = scmp.ne.s32.totalorder %s93, %s94
    %p103 = scmp.eq.s32.totalorder %s20, 0
    %p104 = por %p102, %p103
    %p105 = scmp.ne.s32.totalorder %s93, %s94
    %p106 = scmp.eq.s32.totalorder %s21, 1
    %p107 = por %p105, %p106
    %p109 = scmp.ne.s32.totalorder %s94, %s108
    %p110 = scmp.eq.s32.totalorder %s21, 0
    %p111 = por %p109, %p110
    %s113 = sadd.s32 %s112, 1
    %p116 = scmp.eq.s32.totalorder %s15, 1
    %p117 = scmp.ne.s32.totalorder %s112, %s114
    %p118 = scmp.eq.s32.totalorder %s15, 0
    %p119 = por %p117, %p118
    %p120 = scmp.ne.s32.totalorder %s112, %s114
    %p121 = scmp.eq.s32.totalorder %s20, 1
    %p122 = por %p120, %p121
    %p123 = scmp.ne.s32.totalorder %s114, %s115
    %p124 = scmp.eq.s32.totalorder %s20, 0
    %p125 = por %p123, %p124
    %p126 = scmp.ne.s32.totalorder %s114, %s115
    %p127 = scmp.eq.s32.totalorder %s21, 1
    %p128 = por %p126, %p127
    %p130 = scmp.ne.s32.totalorder %s115, %s129
    %p131 = scmp.eq.s32.totalorder %s21, 0
    %p132 = por %p130, %p131
    %s134 = sadd.s32 %s133, 1
    %p137 = scmp.eq.s32.totalorder %s15, 1
    %p138 = scmp.ne.s32.totalorder %s133, %s135
    %p139 = scmp.eq.s32.totalorder %s15, 0
    %p140 = por %p138, %p139
    %p141 = scmp.ne.s32.totalorder %s133, %s135
    %p142 = scmp.eq.s32.totalorder %s20, 1
    %p143 = por %p141, %p142
    %p144 = scmp.ne.s32.totalorder %s135, %s136
    %p145 = scmp.eq.s32.totalorder %s20, 0
    %p146 = por %p144, %p145
    %p147 = scmp.ne.s32.totalorder %s135, %s136
    %p148 = scmp.eq.s32.totalorder %s21, 1
    %p149 = por %p147, %p148
    %p151 = scmp.ne.s32.totalorder %s136, %s150
    %p152 = scmp.eq.s32.totalorder %s21, 0
    %p153 = por %p151, %p152
    %s155 = sadd.s32 %s154, 1
    %p158 = scmp.eq.s32.totalorder %s15, 1
    %p159 = scmp.ne.s32.totalorder %s154, %s156
    %p160 = scmp.eq.s32.totalorder %s15, 0
    %p161 = por %p159, %p160
    %p162 = scmp.ne.s32.totalorder %s154, %s156
    %p163 = scmp.eq.s32.totalorder %s20, 1
    %p164 = por %p162, %p163
    %p165 = scmp.ne.s32.totalorder %s156, %s157
    %p166 = scmp.eq.s32.totalorder %s20, 0
    %p167 = por %p165, %p166
    %p168 = scmp.ne.s32.totalorder %s156, %s157
    %p169 = scmp.eq.s32.totalorder %s21, 1
    %p170 = por %p168, %p169
    %p172 = scmp.ne.s32.totalorder %s157, %s171
    %p173 = scmp.eq.s32.totalorder %s21, 0
    %p174 = por %p172, %p173
    %s176 = sadd.s32 %s175, 1
    %p179 = scmp.eq.s32.totalorder %s15, 1
    %p180 = scmp.ne.s32.totalorder %s175, %s177
    %p181 = scmp.eq.s32.totalorder %s15, 0
    %p182 = por %p180, %p181
    %p183 = scmp.ne.s32.totalorder %s175, %s177
    %p184 = scmp.eq.s32.totalorder %s20, 1
    %p185 = por %p183, %p184
    %p186 = scmp.ne.s32.totalorder %s177, %s178
    %p187 = scmp.eq.s32.totalorder %s20, 0
    %p188 = por %p186, %p187
    %p189 = scmp.ne.s32.totalorder %s177, %s178
    %p190 = scmp.eq.s32.totalorder %s21, 1
    %p191 = por %p189, %p190
    %p193 = scmp.ne.s32.totalorder %s178, %s192
    %p194 = scmp.eq.s32.totalorder %s21, 0
    %p195 = por %p193, %p194
    %s197 = sadd.s32 %s196, 1
    %p200 = scmp.eq.s32.totalorder %s15, 1
    %p201 = scmp.ne.s32.totalorder %s196, %s198
    %p202 = scmp.eq.s32.totalorder %s15, 0
    %p203 = por %p201, %p202
    %p204 = scmp.ne.s32.totalorder %s196, %s198
    %p205 = scmp.eq.s32.totalorder %s20, 1
    %p206 = por %p204, %p205
    %p207 = scmp.ne.s32.totalorder %s198, %s199
    %p208 = scmp.eq.s32.totalorder %s20, 0
    %p209 = por %p207, %p208
    %p210 = scmp.ne.s32.totalorder %s198, %s199
    %p211 = scmp.eq.s32.totalorder %s21, 1
    %p212 = por %p210, %p211
    %p214 = scmp.ne.s32.totalorder %s199, %s213
    %p215 = scmp.eq.s32.totalorder %s21, 0
    %p216 = por %p214, %p215
    %s217 = ssub.s32 %s15, %s22
    %p218 = scmp.eq.s32.totalorder %s217, 0
    %s220 = sadd.s32 %s219, 1
    %s221 = scalar_select %p218, %s219, %s220
    %p224 = pneg %p218
    %p225 = scmp.eq.s32.totalorder %s15, 1
    %p226 = por %p224, %p225
    %p227 = scmp.ne.s32.totalorder %s219, %s222
    %p228 = scmp.eq.s32.totalorder %s15, 0
    %p229 = por %p227, %p228
    %p230 = scmp.ne.s32.totalorder %s219, %s222
    %p231 = scmp.eq.s32.totalorder %s20, 1
    %p232 = por %p230, %p231
    %p233 = scmp.ne.s32.totalorder %s222, %s223
    %p234 = scmp.eq.s32.totalorder %s20, 0
    %p235 = por %p233, %p234
    %p236 = scmp.ne.s32.totalorder %s222, %s223
    %p237 = scmp.eq.s32.totalorder %s21, 1
    %p238 = por %p236, %p237
    %p240 = scmp.ne.s32.totalorder %s223, %s239
    %p241 = scmp.eq.s32.totalorder %s21, 0
    %p242 = por %p240, %p241
    %p243 = scmp.le.s32.totalorder 1, %s15
    %p244 = scmp.lt.s32.totalorder %s15, 3
    %p245 = pnand %p243, %p244
    %p246 = pneg %p245
    // Predicated region
    $region9: #{pe_feedforward.1} parent=5 // pred_check
      _
    $region10: #{pe_feedforward.1} parent=5 // pred_check_branch
      %248 = sbr.rel (%p245) target = $region12
    $region11: #{pe_feedforward.1} parent=5 // pred_region
      %s249 = ssub.s32 %s15, 1
      // Predicated region
      $region13: #{pe_feedforward.1} parent=11 // pred_check
        %p250 = pneg %p62
      $region14: #{pe_feedforward.1} parent=11 // pred_check_branch
        %252 = sbr.rel (%p250) target = $region16
      $region15: #{pe_feedforward.1} parent=11 // pred_region
        _
      $region16: #{pe_feedforward.1} parent=11 // pred_fallthru
        _
      // Predicated region
      $region17: #{pe_feedforward.1} parent=11 // pred_check
        %p253 = pneg %p83
      $region18: #{pe_feedforward.1} parent=11 // pred_check_branch
        %255 = sbr.rel (%p253) target = $region20
      $region19: #{pe_feedforward.1} parent=11 // pred_region
        _
      $region20: #{pe_feedforward.1} parent=11 // pred_fallthru
        _
      // Predicated region
      $region21: #{pe_feedforward.1} parent=11 // pred_check
        %p256 = pneg %p104
      $region22: #{pe_feedforward.1} parent=11 // pred_check_branch
        %258 = sbr.rel (%p256) target = $region24
      $region23: #{pe_feedforward.1} parent=11 // pred_region
        _
      $region24: #{pe_feedforward.1} parent=11 // pred_fallthru
        _
      // Predicated region
      $region25: #{pe_feedforward.1} parent=11 // pred_check
        %p259 = pneg %p125
      $region26: #{pe_feedforward.1} parent=11 // pred_check_branch
        %261 = sbr.rel (%p259) target = $region28
      $region27: #{pe_feedforward.1} parent=11 // pred_region
        _
      $region28: #{pe_feedforward.1} parent=11 // pred_fallthru
        _
      // Predicated region
      $region29: #{pe_feedforward.1} parent=11 // pred_check
        %p262 = pneg %p146
      $region30: #{pe_feedforward.1} parent=11 // pred_check_branch
        %264 = sbr.rel (%p262) target = $region32
      $region31: #{pe_feedforward.1} parent=11 // pred_region
        _
      $region32: #{pe_feedforward.1} parent=11 // pred_fallthru
        _
      // Predicated region
      $region33: #{pe_feedforward.1} parent=11 // pred_check
        %p265 = pneg %p167
      $region34: #{pe_feedforward.1} parent=11 // pred_check_branch
        %267 = sbr.rel (%p265) target = $region36
      $region35: #{pe_feedforward.1} parent=11 // pred_region
        _
      $region36: #{pe_feedforward.1} parent=11 // pred_fallthru
        _
      // Predicated region
      $region37: #{pe_feedforward.1} parent=11 // pred_check
        %p268 = pneg %p188
      $region38: #{pe_feedforward.1} parent=11 // pred_check_branch
        %270 = sbr.rel (%p268) target = $region40
      $region39: #{pe_feedforward.1} parent=11 // pred_region
        _
      $region40: #{pe_feedforward.1} parent=11 // pred_fallthru
        _
      // Predicated region
      $region41: #{pe_feedforward.1} parent=11 // pred_check
        %p271 = pneg %p209
      $region42: #{pe_feedforward.1} parent=11 // pred_check_branch
        %273 = sbr.rel (%p271) target = $region44
      $region43: #{pe_feedforward.1} parent=11 // pred_region
        _
      $region44: #{pe_feedforward.1} parent=11 // pred_fallthru
        _
    $region12: #{pe_feedforward.1} parent=5 // pred_fallthru
      _
    %p274 = scmp.lt.s32.totalorder %s15, 2
    // Predicated region
    $region45: #{pe_feedforward.1} parent=5 // pred_check
      %p275 = pneg %p274
    $region46: #{pe_feedforward.1} parent=5 // pred_check_branch
      %277 = sbr.rel (%p275) target = $region48
    $region47: #{pe_feedforward.1} parent=5 // pred_region
      // Predicated region
      $region49: #{pe_feedforward.1} parent=47 // pred_check
        %p278 = pneg %p35
      $region50: #{pe_feedforward.1} parent=47 // pred_check_branch
        %280 = sbr.rel (%p278) target = $region52
      $region51: #{pe_feedforward.1} parent=47 // pred_region
        %s281 = smul.u32 100, %s15
        %p282 = scmp.lt.s32.totalorder %s281, 199
        %s283 = scalar_select %p282, %s281, 199
        %s284 = smul.addr %s283, 4
        %s285 = scalar_lea.vmem %s0, %s284
        %s286 = smul.u32 100, %s15
      $region52: #{pe_feedforward.1} parent=47 // pred_fallthru
        _
    $region48: #{pe_feedforward.1} parent=5 // pred_fallthru
      _
    %p287 = scmp.le.s32.totalorder 1, %s15
    %p288 = scmp.lt.s32.totalorder %s15, 3
    %p289 = pnand %p287, %p288
    %p290 = pneg %p289
    // Predicated region
    $region53: #{pe_feedforward.1} parent=5 // pred_check
      _
    $region54: #{pe_feedforward.1} parent=5 // pred_check_branch
      %292 = sbr.rel (%p289) target = $region56
    $region55: #{pe_feedforward.1} parent=5 // pred_region
      %s293 = ssub.s32 %s15, 1
      %s294 = smul.u32 100, %s20
      %p295 = scmp.lt.s32.totalorder %s294, 199
      %s296 = scalar_select %p295, %s294, 199
      %s297 = smul.addr %s296, 4
      %s298 = scalar_lea.vmem %s0, %s297
      %p299 = pneg %p41
      %p300 = pneg %p38
      %p301 = pneg %p62
      %p302 = pneg %p59
      %p303 = pneg %p83
      %p304 = pneg %p80
      %p305 = pneg %p104
      %p306 = pneg %p101
      %p307 = pneg %p125
      %p308 = pneg %p122
      %p309 = pneg %p146
      %p310 = pneg %p143
      %p311 = pneg %p167
      %p312 = pneg %p164
      %p313 = pneg %p188
      %p314 = pneg %p185
      %p315 = pneg %p209
      %p316 = pneg %p206
      %p317 = pneg %p235
      %p318 = pneg %p232
      %s319 = smul.u32 100, %s20
      %p320 = scmp.lt.s32.totalorder %s319, 199
      %s321 = scalar_select %p320, %s319, 199
      %s322 = smul.addr %s321, 8
      %s323 = scalar_lea.vmem %s9, %s322
      %s324 = smul.u32 100, %s20
      %p325 = scmp.lt.s32.totalorder %s324, 199
      %s326 = scalar_select %p325, %s324, 199
      %s327 = smul.addr %s326, 4
      %s328 = scalar_lea.vmem %s0, %s327
      %s329 = smul.u32 100, %s20
      %s330 = smul.u32 100, %s20
      %p331 = scmp.lt.s32.totalorder %s330, 199
      %s332 = scalar_select %p331, %s330, 199
      %s333 = smul.addr %s332, 8
      %s334 = scalar_lea.vmem %s9, %s333
      %s335 = smul.u32 100, %s20
      %v337 = vld [vmem:[%s328] sm:$0xf]
      %v338 = vld [vmem:[%s328 + $0x4] sm:$0xf]
      %v339 = vld [vmem:[%s328 + $0x8] sm:$0xf]
      %v340 = vld [vmem:[%s328 + $0xc] sm:$0xf]
      %v341 = vld [vmem:[%s328 + $0x10] sm:$0xf]
      %v342 = vld [vmem:[%s328 + $0x14] sm:$0xf]
      %v343 = vld [vmem:[%s328 + $0x18] sm:$0xf]
      %v344 = vld [vmem:[%s328 + $0x1c] sm:$0xf]
      %v345 = vld [vmem:[%s328 + $0x20] sm:$0xf]
      %v346 = vld [vmem:[%s328 + $0x24] sm:$0xf]
      %v347 = vld [vmem:[%s328 + $0x28] sm:$0xf]
      %v348 = vld [vmem:[%s328 + $0x2c] sm:$0xf]
      %v349 = vld [vmem:[%s328 + $0x30] sm:$0xf]
      %v350 = vld [vmem:[%s328 + $0x34] sm:$0xf]
      %v351 = vld [vmem:[%s328 + $0x38] sm:$0xf]
      %v352 = vld [vmem:[%s328 + $0x3c] sm:$0xf]
      %v353 = vld [vmem:[%s328 + $0x40] sm:$0xf]
      %v354 = vld [vmem:[%s328 + $0x44] sm:$0xf]
      %v355 = vld [vmem:[%s328 + $0x48] sm:$0xf]
      %v356 = vld [vmem:[%s328 + $0x4c] sm:$0xf]
      %v357 = vld [vmem:[%s328 + $0x50] sm:$0xf]
      %v358 = vld [vmem:[%s328 + $0x54] sm:$0xf]
      %v359 = vld [vmem:[%s328 + $0x58] sm:$0xf]
      %v360 = vld [vmem:[%s328 + $0x5c] sm:$0xf]
      %v361 = vld [vmem:[%s328 + $0x60] sm:$0xf]
      %v362 = vld [vmem:[%s328 + $0x64] sm:$0xf]
      %v363 = vld [vmem:[%s328 + $0x68] sm:$0xf]
      %v364 = vld [vmem:[%s328 + $0x6c] sm:$0xf]
      %v365 = vld [vmem:[%s328 + $0x70] sm:$0xf]
      %v366 = vld [vmem:[%s328 + $0x74] sm:$0xf]
      %v367 = vld [vmem:[%s328 + $0x78] sm:$0xf]
      %v368 = vld [vmem:[%s328 + $0x7c] sm:$0xf]
      %v369 = vld [vmem:[%s328 + $0x80] sm:$0xf]
      %v370 = vld [vmem:[%s328 + $0x84] sm:$0xf]
      %v371 = vld [vmem:[%s328 + $0x88] sm:$0xf]
      %v372 = vld [vmem:[%s328 + $0x8c] sm:$0xf]
      %v373 = vld [vmem:[%s328 + $0x90] sm:$0xf]
      %v374 = vld [vmem:[%s328 + $0x94] sm:$0xf]
      %v375 = vld [vmem:[%s328 + $0x98] sm:$0xf]
      %v376 = vld [vmem:[%s328 + $0x9c] sm:$0xf]
      %v377 = vld [vmem:[%s328 + $0xa0] sm:$0xf]
      %v378 = vld [vmem:[%s328 + $0xa4] sm:$0xf]
      %v379 = vld [vmem:[%s328 + $0xa8] sm:$0xf]
      %v380 = vld [vmem:[%s328 + $0xac] sm:$0xf]
      %v381 = vld [vmem:[%s328 + $0xb0] sm:$0xf]
      %v382 = vld [vmem:[%s328 + $0xb4] sm:$0xf]
      %v383 = vld [vmem:[%s328 + $0xb8] sm:$0xf]
      %v384 = vld [vmem:[%s328 + $0xbc] sm:$0xf]
      %v385 = vld [vmem:[%s328 + $0xc0] sm:$0xf]
      %v386 = vld [vmem:[%s328 + $0xc4] sm:$0xf]
      %v387 = vld [vmem:[%s328 + $0xc8] sm:$0xf]
      %v388 = vld [vmem:[%s328 + $0xcc] sm:$0xf]
      %v389 = vld [vmem:[%s328 + $0xd0] sm:$0xf]
      %v390 = vld [vmem:[%s328 + $0xd4] sm:$0xf]
      %v391 = vld [vmem:[%s328 + $0xd8] sm:$0xf]
      %v392 = vld [vmem:[%s328 + $0xdc] sm:$0xf]
      %v393 = vld [vmem:[%s328 + $0xe0] sm:$0xf]
      %v394 = vld [vmem:[%s328 + $0xe4] sm:$0xf]
      %v395 = vld [vmem:[%s328 + $0xe8] sm:$0xf]
      %v396 = vld [vmem:[%s328 + $0xec] sm:$0xf]
      %v397 = vld [vmem:[%s328 + $0xf0] sm:$0xf]
      %v398 = vld [vmem:[%s328 + $0xf4] sm:$0xf]
      %v399 = vld [vmem:[%s328 + $0xf8] sm:$0xf]
      %v400 = vld [vmem:[%s328 + $0xfc] sm:$0xf]
      %v401 = vld [vmem:[%s328 + $0x100] sm:$0xf]
      %v402 = vld [vmem:[%s328 + $0x104] sm:$0xf]
      %v403 = vld [vmem:[%s328 + $0x108] sm:$0xf]
      %v404 = vld [vmem:[%s328 + $0x10c] sm:$0xf]
      %v405 = vld [vmem:[%s328 + $0x110] sm:$0xf]
      %v406 = vld [vmem:[%s328 + $0x114] sm:$0xf]
      %v407 = vld [vmem:[%s328 + $0x118] sm:$0xf]
      %v408 = vld [vmem:[%s328 + $0x11c] sm:$0xf]
      %v409 = vld [vmem:[%s328 + $0x120] sm:$0xf]
      %v410 = vld [vmem:[%s328 + $0x124] sm:$0xf]
      %v411 = vld [vmem:[%s328 + $0x128] sm:$0xf]
      %v412 = vld [vmem:[%s328 + $0x12c] sm:$0xf]
      %v413 = vld [vmem:[%s328 + $0x130] sm:$0xf]
      %v414 = vld [vmem:[%s328 + $0x134] sm:$0xf]
      %v415 = vld [vmem:[%s328 + $0x138] sm:$0xf]
      %v416 = vld [vmem:[%s328 + $0x13c] sm:$0xf]
      %v417 = vld [vmem:[%s328 + $0x140] sm:$0xf]
      %v418 = vld [vmem:[%s328 + $0x144] sm:$0xf]
      %v419 = vld [vmem:[%s328 + $0x148] sm:$0xf]
      %v420 = vld [vmem:[%s328 + $0x14c] sm:$0xf]
      %v421 = vld [vmem:[%s328 + $0x150] sm:$0xf]
      %v422 = vld [vmem:[%s328 + $0x154] sm:$0xf]
      %v423 = vld [vmem:[%s328 + $0x158] sm:$0xf]
      %v424 = vld [vmem:[%s328 + $0x15c] sm:$0xf]
      %v425 = vld [vmem:[%s328 + $0x160] sm:$0xf]
      %v426 = vld [vmem:[%s328 + $0x164] sm:$0xf]
      %v427 = vld [vmem:[%s328 + $0x168] sm:$0xf]
      %v428 = vld [vmem:[%s328 + $0x16c] sm:$0xf]
      %v429 = vld [vmem:[%s328 + $0x170] sm:$0xf]
      %v430 = vld [vmem:[%s328 + $0x174] sm:$0xf]
      %v431 = vld [vmem:[%s328 + $0x178] sm:$0xf]
      %v432 = vld [vmem:[%s328 + $0x17c] sm:$0xf]
      %v433 = vld [vmem:[%s328 + $0x180] sm:$0xf]
      %v434 = vld [vmem:[%s328 + $0x184] sm:$0xf]
      %v435 = vld [vmem:[%s328 + $0x188] sm:$0xf]
      %v436 = vld [vmem:[%s328 + $0x18c] sm:$0xf]
      %v437 = vld [vmem:[%s1] sm:$0xff]
      %v438 = vld [vmem:[%s1 + $0x8] sm:$0xff]
      %v439 = vld [vmem:[%s1 + $0x10] sm:$0xff]
      %v440 = vld [vmem:[%s1 + $0x18] sm:$0xff]
      %v441 = vld [vmem:[%s1 + $0x20] sm:$0xff]
      %v442 = vld [vmem:[%s1 + $0x28] sm:$0xff]
      %v443 = vld [vmem:[%s1 + $0x30] sm:$0xff]
      %v444 = vld [vmem:[%s1 + $0x38] sm:$0xff]
      %v445 = vld [vmem:[%s1 + $0x40] sm:$0xff]
      %v446 = vld [vmem:[%s1 + $0x48] sm:$0xff]
      %v447 = vld [vmem:[%s1 + $0x50] sm:$0xff]
      %v448 = vld [vmem:[%s1 + $0x58] sm:$0xff]
      %v449 = vld [vmem:[%s1 + $0x60] sm:$0xff]
      %v450 = vld [vmem:[%s1 + $0x68] sm:$0xff]
      %v451 = vld [vmem:[%s1 + $0x70] sm:$0xff]
      %v452 = vld [vmem:[%s1 + $0x78] sm:$0xff]
      %v453 = vld [vmem:[%s2] sm:$0x3]
      %v455 = vlaneseq
      %v456 = vshrl.u32 %v455, 7
      %v457 = vsub.s32 0, %v456
      %v458 = vrot.slane %v453, %v457
      %v459 = vlaneseq
      %v460 = vshrl.u32 %v459, 7
      %v461 = vsub.s32 1, %v460
      %v462 = vrot.slane %v453, %v461
      %v565 = vunpack.c.l.b16 %v337
      %v566 = vunpack.c.l.b16 %v338
      %v567 = vunpack.c.l.b16 %v339
      %v568 = vunpack.c.l.b16 %v340
      %v569 = vunpack.c.l.b16 %v341
      %v570 = vunpack.c.l.b16 %v342
      %v571 = vunpack.c.l.b16 %v343
      %v572 = vunpack.c.l.b16 %v344
      %v573 = vunpack.c.l.b16 %v345
      %v574 = vunpack.c.l.b16 %v346
      %v575 = vunpack.c.l.b16 %v347
      %v576 = vunpack.c.l.b16 %v348
      %v577 = vunpack.c.l.b16 %v349
      %v578 = vunpack.c.l.b16 %v350
      %v579 = vunpack.c.l.b16 %v351
      %v580 = vunpack.c.l.b16 %v352
      %v581 = vunpack.c.l.b16 %v353
      %v582 = vunpack.c.l.b16 %v354
      %v583 = vunpack.c.l.b16 %v355
      %v584 = vunpack.c.l.b16 %v356
      %v585 = vunpack.c.l.b16 %v357
      %v586 = vunpack.c.l.b16 %v358
      %v587 = vunpack.c.l.b16 %v359
      %v588 = vunpack.c.l.b16 %v360
      %v589 = vunpack.c.l.b16 %v361
      %v590 = vunpack.c.l.b16 %v362
      %v591 = vunpack.c.l.b16 %v363
      %v592 = vunpack.c.l.b16 %v364
      %v593 = vunpack.c.l.b16 %v365
      %v594 = vunpack.c.l.b16 %v366
      %v595 = vunpack.c.l.b16 %v367
      %v596 = vunpack.c.l.b16 %v368
      %v597 = vunpack.c.l.b16 %v369
      %v598 = vunpack.c.l.b16 %v370
      %v599 = vunpack.c.l.b16 %v371
      %v600 = vunpack.c.l.b16 %v372
      %v601 = vunpack.c.l.b16 %v373
      %v602 = vunpack.c.l.b16 %v374
      %v603 = vunpack.c.l.b16 %v375
      %v604 = vunpack.c.l.b16 %v376
      %v605 = vunpack.c.l.b16 %v377
      %v606 = vunpack.c.l.b16 %v378
      %v607 = vunpack.c.l.b16 %v379
      %v608 = vunpack.c.l.b16 %v380
      %v609 = vunpack.c.l.b16 %v381
      %v610 = vunpack.c.l.b16 %v382
      %v611 = vunpack.c.l.b16 %v383
      %v612 = vunpack.c.l.b16 %v384
      %v613 = vunpack.c.l.b16 %v385
      %v614 = vunpack.c.l.b16 %v386
      %v615 = vunpack.c.l.b16 %v387
      %v616 = vunpack.c.l.b16 %v388
      %v617 = vunpack.c.l.b16 %v389
      %v618 = vunpack.c.l.b16 %v390
      %v619 = vunpack.c.l.b16 %v391
      %v620 = vunpack.c.l.b16 %v392
      %v621 = vunpack.c.l.b16 %v393
      %v622 = vunpack.c.l.b16 %v394
      %v623 = vunpack.c.l.b16 %v395
      %v624 = vunpack.c.l.b16 %v396
      %v625 = vunpack.c.l.b16 %v397
      %v626 = vunpack.c.l.b16 %v398
      %v627 = vunpack.c.l.b16 %v399
      %v628 = vunpack.c.l.b16 %v400
      %v629 = vunpack.c.l.b16 %v401
      %v630 = vunpack.c.l.b16 %v402
      %v631 = vunpack.c.l.b16 %v403
      %v632 = vunpack.c.l.b16 %v404
      %v633 = vunpack.c.l.b16 %v405
      %v634 = vunpack.c.l.b16 %v406
      %v635 = vunpack.c.l.b16 %v407
      %v636 = vunpack.c.l.b16 %v408
      %v637 = vunpack.c.l.b16 %v409
      %v638 = vunpack.c.l.b16 %v410
      %v639 = vunpack.c.l.b16 %v411
      %v640 = vunpack.c.l.b16 %v412
      %v641 = vunpack.c.l.b16 %v413
      %v642 = vunpack.c.l.b16 %v414
      %v643 = vunpack.c.l.b16 %v415
      %v644 = vunpack.c.l.b16 %v416
      %v645 = vunpack.c.l.b16 %v417
      %v646 = vunpack.c.l.b16 %v418
      %v647 = vunpack.c.l.b16 %v419
      %v648 = vunpack.c.l.b16 %v420
      %v649 = vunpack.c.l.b16 %v421
      %v650 = vunpack.c.l.b16 %v422
      %v651 = vunpack.c.l.b16 %v423
      %v652 = vunpack.c.l.b16 %v424
      %v653 = vunpack.c.l.b16 %v425
      %v654 = vunpack.c.l.b16 %v426
      %v655 = vunpack.c.l.b16 %v427
      %v656 = vunpack.c.l.b16 %v428
      %v657 = vunpack.c.l.b16 %v429
      %v658 = vunpack.c.l.b16 %v430
      %v659 = vunpack.c.l.b16 %v431
      %v660 = vunpack.c.l.b16 %v432
      %v661 = vunpack.c.l.b16 %v433
      %v662 = vunpack.c.l.b16 %v434
      %v663 = vunpack.c.l.b16 %v435
      %v664 = vunpack.c.l.b16 %v436
      %v665 = vpack.c.b16 %v566, %v565
      %v666 = vpack.c.b16 %v568, %v567
      %v667 = vpack.c.b16 %v570, %v569
      %v668 = vpack.c.b16 %v572, %v571
      %v669 = vpack.c.b16 %v574, %v573
      %v670 = vpack.c.b16 %v576, %v575
      %v671 = vpack.c.b16 %v578, %v577
      %v672 = vpack.c.b16 %v580, %v579
      %v673 = vpack.c.b16 %v582, %v581
      %v674 = vpack.c.b16 %v584, %v583
      %v675 = vpack.c.b16 %v586, %v585
      %v676 = vpack.c.b16 %v588, %v587
      %v677 = vpack.c.b16 %v590, %v589
      %v678 = vpack.c.b16 %v592, %v591
      %v679 = vpack.c.b16 %v594, %v593
      %v680 = vpack.c.b16 %v596, %v595
      %v681 = vpack.c.b16 %v598, %v597
      %v682 = vpack.c.b16 %v600, %v599
      %v683 = vpack.c.b16 %v602, %v601
      %v684 = vpack.c.b16 %v604, %v603
      %v685 = vpack.c.b16 %v606, %v605
      %v686 = vpack.c.b16 %v608, %v607
      %v687 = vpack.c.b16 %v610, %v609
      %v688 = vpack.c.b16 %v612, %v611
      %v689 = vpack.c.b16 %v614, %v613
      %v690 = vpack.c.b16 %v616, %v615
      %v691 = vpack.c.b16 %v618, %v617
      %v692 = vpack.c.b16 %v620, %v619
      %v693 = vpack.c.b16 %v622, %v621
      %v694 = vpack.c.b16 %v624, %v623
      %v695 = vpack.c.b16 %v626, %v625
      %v696 = vpack.c.b16 %v628, %v627
      %v697 = vpack.c.b16 %v630, %v629
      %v698 = vpack.c.b16 %v632, %v631
      %v699 = vpack.c.b16 %v634, %v633
      %v700 = vpack.c.b16 %v636, %v635
      %v701 = vpack.c.b16 %v638, %v637
      %v702 = vpack.c.b16 %v640, %v639
      %v703 = vpack.c.b16 %v642, %v641
      %v704 = vpack.c.b16 %v644, %v643
      %v705 = vpack.c.b16 %v646, %v645
      %v706 = vpack.c.b16 %v648, %v647
      %v707 = vpack.c.b16 %v650, %v649
      %v708 = vpack.c.b16 %v652, %v651
      %v709 = vpack.c.b16 %v654, %v653
      %v710 = vpack.c.b16 %v656, %v655
      %v711 = vpack.c.b16 %v658, %v657
      %v712 = vpack.c.b16 %v660, %v659
      %v713 = vpack.c.b16 %v662, %v661
      %v714 = vpack.c.b16 %v664, %v663
      %v781 = vunpack.c.l.b16 %v437
      %v782 = vunpack.c.h.b16 %v437
      %v783 = vunpack.c.l.b16 %v438
      %v784 = vunpack.c.h.b16 %v438
      %v785 = vunpack.c.l.b16 %v439
      %v786 = vunpack.c.h.b16 %v439
      %v787 = vunpack.c.l.b16 %v440
      %v788 = vunpack.c.h.b16 %v440
      %v789 = vunpack.c.l.b16 %v441
      %v790 = vunpack.c.h.b16 %v441
      %v791 = vunpack.c.l.b16 %v442
      %v792 = vunpack.c.h.b16 %v442
      %v793 = vunpack.c.l.b16 %v443
      %v794 = vunpack.c.h.b16 %v443
      %v795 = vunpack.c.l.b16 %v444
      %v796 = vunpack.c.h.b16 %v444
      %v797 = vunpack.c.l.b16 %v445
      %v798 = vunpack.c.h.b16 %v445
      %v799 = vunpack.c.l.b16 %v446
      %v800 = vunpack.c.h.b16 %v446
      %v801 = vunpack.c.l.b16 %v447
      %v802 = vunpack.c.h.b16 %v447
      %v803 = vunpack.c.l.b16 %v448
      %v804 = vunpack.c.h.b16 %v448
      %v805 = vunpack.c.l.b16 %v449
      %v806 = vunpack.c.h.b16 %v449
      %v807 = vunpack.c.l.b16 %v450
      %v808 = vunpack.c.h.b16 %v450
      %v809 = vunpack.c.l.b16 %v451
      %v810 = vunpack.c.h.b16 %v451
      %v811 = vunpack.c.l.b16 %v452
      %v812 = vunpack.c.h.b16 %v452
      %v813 = vpack.c.b16 %v783, %v781
      %v814 = vpack.c.b16 %v784, %v782
      %v815 = vpack.c.b16 %v787, %v785
      %v816 = vpack.c.b16 %v788, %v786
      %v817 = vpack.c.b16 %v791, %v789
      %v818 = vpack.c.b16 %v792, %v790
      %v819 = vpack.c.b16 %v795, %v793
      %v820 = vpack.c.b16 %v796, %v794
      %v821 = vpack.c.b16 %v799, %v797
      %v822 = vpack.c.b16 %v800, %v798
      %v823 = vpack.c.b16 %v803, %v801
      %v824 = vpack.c.b16 %v804, %v802
      %v825 = vpack.c.b16 %v807, %v805
      %v826 = vpack.c.b16 %v808, %v806
      %v827 = vpack.c.b16 %v811, %v809
      %v828 = vpack.c.b16 %v812, %v810
      %845 = vmatprep.subr.bf16.mxu0 %v814
      %846 = vmatpush1.bf16.msra.mxu0 %v813
      %847 = vmatprep.subr.bf16.mxu0 %v816
      %848 = vmatpush1.bf16.msra.mxu0 %v815
      %849 = vmatprep.subr.bf16.mxu0 %v818
      %850 = vmatpush1.bf16.msra.mxu0 %v817
      %851 = vmatprep.subr.bf16.mxu0 %v820
      %852 = vmatpush1.bf16.msra.mxu0 %v819
      %853 = vmatprep.subr.bf16.mxu0 %v822
      %854 = vmatpush1.bf16.msra.mxu0 %v821
      %855 = vmatprep.subr.bf16.mxu0 %v824
      %856 = vmatpush1.bf16.msra.mxu0 %v823
      %857 = vmatprep.subr.bf16.mxu0 %v826
      %858 = vmatpush1.bf16.msra.mxu0 %v825
      %859 = vmatprep.subr.bf16.mxu0 %v828
      %860 = vmatpush1.bf16.msra.mxu0 %v827
      %861 = vmatprep.subr.bf16.mxu0 0
      %862 = vmatpush1.bf16.msra.mxu0 0
      %863 = vmatprep.subr.bf16.mxu0 0
      %864 = vmatpush1.bf16.msra.mxu0 0
      %865 = vmatprep.subr.bf16.mxu0 0
      %866 = vmatpush1.bf16.msra.mxu0 0
      %867 = vmatprep.subr.bf16.mxu0 0
      %868 = vmatpush1.bf16.msra.mxu0 0
      %869 = vmatprep.subr.bf16.mxu0 0
      %870 = vmatpush1.bf16.msra.mxu0 0
      %871 = vmatprep.subr.bf16.mxu0 0
      %872 = vmatpush1.bf16.msra.mxu0 0
      %873 = vmatprep.subr.bf16.mxu0 0
      %874 = vmatpush1.bf16.msra.mxu0 0
      %875 = vmatprep.subr.bf16.mxu0 0
      %876 = vmatpush1.bf16.msra.mxu0 0
      %877 = vmatprep.mubr.bf16.mxu0 0
      %878 = vmatmul.mubr.bf16.gmra.mrb[0].mxu0 %v665
      %v879 = vpop.f32.mrb[0].mxu0
      %v880 = vadd.f32 %v458, %v879
      %v881 = vpop.f32.mrb[0].mxu0
      %v882 = vadd.f32 %v462, %v881
      %v883 = vpop.f32.mrb[0].mxu0
      %v884 = vadd.f32 %v458, %v883
      %v885 = vpop.f32.mrb[0].mxu0
      %v886 = vadd.f32 %v462, %v885
      %887 = vmatprep.mubr.bf16.mxu0 0
      %888 = vmatmul.mubr.bf16.gmra.mrb[0].mxu0 %v666
      %v889 = vpop.f32.mrb[0].mxu0
      %v890 = vadd.f32 %v458, %v889
      %v891 = vpop.f32.mrb[0].mxu0
      %v892 = vadd.f32 %v462, %v891
      %v893 = vpop.f32.mrb[0].mxu0
      %v894 = vadd.f32 %v458, %v893
      %v895 = vpop.f32.mrb[0].mxu0
      %v896 = vadd.f32 %v462, %v895
      %897 = vmatprep.mubr.bf16.mxu0 0
      %898 = vmatmul.mubr.bf16.gmra.mrb[0].mxu0 %v667
      %v899 = vpop.f32.mrb[0].mxu0
      %v900 = vadd.f32 %v458, %v899
      %v901 = vpop.f32.mrb[0].mxu0
      %v902 = vadd.f32 %v462, %v901
      %v903 = vpop.f32.mrb[0].mxu0
      %v904 = vadd.f32 %v458, %v903
      %v905 = vpop.f32.mrb[0].mxu0
      %v906 = vadd.f32 %v462, %v905
      %907 = vmatprep.mubr.bf16.mxu0 0
      %908 = vmatmul.mubr.bf16.gmra.mrb[0].mxu0 %v668
      %v909 = vpop.f32.mrb[0].mxu0
      %v910 = vadd.f32 %v458, %v909
      %v911 = vpop.f32.mrb[0].mxu0
      %v912 = vadd.f32 %v462, %v911
      %v913 = vpop.f32.mrb[0].mxu0
      %v914 = vadd.f32 %v458, %v913
      %v915 = vpop.f32.mrb[0].mxu0
      %v916 = vadd.f32 %v462, %v915
      %917 = vmatprep.mubr.bf16.mxu0 0
      %918 = vmatmul.mubr.bf16.gmra.mrb[0].mxu0 %v669
      %v919 = vpop.f32.mrb[0].mxu0
      %v920 = vadd.f32 %v458, %v919
      %v921 = vpop.f32.mrb[0].mxu0
      %v922 = vadd.f32 %v462, %v921
      %v923 = vpop.f32.mrb[0].mxu0
      %v924 = vadd.f32 %v458, %v923
      %v925 = vpop.f32.mrb[0].mxu0
      %v926 = vadd.f32 %v462, %v925
      %927 = vmatprep.mubr.bf16.mxu0 0
      %928 = vmatmul.mubr.bf16.gmra.mrb[0].mxu0 %v670
      %v929 = vpop.f32.mrb[0].mxu0
      %v930 = vadd.f32 %v458, %v929
      %v931 = vpop.f32.mrb[0].mxu0
      %v932 = vadd.f32 %v462, %v931
      %v933 = vpop.f32.mrb[0].mxu0
      %v934 = vadd.f32 %v458, %v933
      %v935 = vpop.f32.mrb[0].mxu0
      %v936 = vadd.f32 %v462, %v935
      %937 = vmatprep.mubr.bf16.mxu0 0
      %938 = vmatmul.mubr.bf16.gmra.mrb[0].mxu0 %v671
      %v939 = vpop.f32.mrb[0].mxu0
      %v940 = vadd.f32 %v458, %v939
      %v941 = vpop.f32.mrb[0].mxu0
      %v942 = vadd.f32 %v462, %v941
      %v943 = vpop.f32.mrb[0].mxu0
      %v944 = vadd.f32 %v458, %v943
      %v945 = vpop.f32.mrb[0].mxu0
      %v946 = vadd.f32 %v462, %v945
      %947 = vmatprep.mubr.bf16.mxu0 0
      %948 = vmatmul.mubr.bf16.gmra.mrb[0].mxu0 %v672
      %v949 = vpop.f32.mrb[0].mxu0
      %v950 = vadd.f32 %v458, %v949
      %v951 = vpop.f32.mrb[0].mxu0
      %v952 = vadd.f32 %v462, %v951
      %v953 = vpop.f32.mrb[0].mxu0
      %v954 = vadd.f32 %v458, %v953
      %v955 = vpop.f32.mrb[0].mxu0
      %v956 = vadd.f32 %v462, %v955
      %957 = vmatprep.mubr.bf16.mxu0 0
      %958 = vmatmul.mubr.bf16.gmra.mrb[0].mxu0 %v673
      %v959 = vpop.f32.mrb[0].mxu0
      %v960 = vadd.f32 %v458, %v959
      %v961 = vpop.f32.mrb[0].mxu0
      %v962 = vadd.f32 %v462, %v961
      %v963 = vpop.f32.mrb[0].mxu0
      %v964 = vadd.f32 %v458, %v963
      %v965 = vpop.f32.mrb[0].mxu0
      %v966 = vadd.f32 %v462, %v965
      %967 = vmatprep.mubr.bf16.mxu0 0
      %968 = vmatmul.mubr.bf16.gmra.mrb[0].mxu0 %v674
      %v969 = vpop.f32.mrb[0].mxu0
      %v970 = vadd.f32 %v458, %v969
      %v971 = vpop.f32.mrb[0].mxu0
      %v972 = vadd.f32 %v462, %v971
      %v973 = vpop.f32.mrb[0].mxu0
      %v974 = vadd.f32 %v458, %v973
      %v975 = vpop.f32.mrb[0].mxu0
      %v976 = vadd.f32 %v462, %v975
      %977 = vmatprep.mubr.bf16.mxu0 0
      %978 = vmatmul.mubr.bf16.gmra.mrb[0].mxu0 %v675
      %v979 = vpop.f32.mrb[0].mxu0
      %v980 = vadd.f32 %v458, %v979
      %v981 = vpop.f32.mrb[0].mxu0
      %v982 = vadd.f32 %v462, %v981
      %v983 = vpop.f32.mrb[0].mxu0
      %v984 = vadd.f32 %v458, %v983
      %v985 = vpop.f32.mrb[0].mxu0
      %v986 = vadd.f32 %v462, %v985
      %987 = vmatprep.mubr.bf16.mxu0 0
      %988 = vmatmul.mubr.bf16.gmra.mrb[0].mxu0 %v676
      %v989 = vpop.f32.mrb[0].mxu0
      %v990 = vadd.f32 %v458, %v989
      %v991 = vpop.f32.mrb[0].mxu0
      %v992 = vadd.f32 %v462, %v991
      %v993 = vpop.f32.mrb[0].mxu0
      %v994 = vadd.f32 %v458, %v993
      %v995 = vpop.f32.mrb[0].mxu0
      %v996 = vadd.f32 %v462, %v995
      %997 = vmatprep.mubr.bf16.mxu0 0
      %998 = vmatmul.mubr.bf16.gmra.mrb[0].mxu0 %v677
      %v999 = vpop.f32.mrb[0].mxu0
      %v1000 = vadd.f32 %v458, %v999
      %v1001 = vpop.f32.mrb[0].mxu0
      %v1002 = vadd.f32 %v462, %v1001
      %v1003 = vpop.f32.mrb[0].mxu0
      %v1004 = vadd.f32 %v458, %v1003
      %v1005 = vpop.f32.mrb[0].mxu0
      %v1006 = vadd.f32 %v462, %v1005
      %1007 = vmatprep.mubr.bf16.mxu0 0
      %1008 = vmatmul.mubr.bf16.gmra.mrb[0].mxu0 %v678
      %v1009 = vpop.f32.mrb[0].mxu0
      %v1010 = vadd.f32 %v458, %v1009
      %v1011 = vpop.f32.mrb[0].mxu0
      %v1012 = vadd.f32 %v462, %v1011
      %v1013 = vpop.f32.mrb[0].mxu0
      %v1014 = vadd.f32 %v458, %v1013
      %v1015 = vpop.f32.mrb[0].mxu0
      %v1016 = vadd.f32 %v462, %v1015
      %1017 = vmatprep.mubr.bf16.mxu0 0
      %1018 = vmatmul.mubr.bf16.gmra.mrb[0].mxu0 %v679
      %v1019 = vpop.f32.mrb[0].mxu0
      %v1020 = vadd.f32 %v458, %v1019
      %v1021 = vpop.f32.mrb[0].mxu0
      %v1022 = vadd.f32 %v462, %v1021
      %v1023 = vpop.f32.mrb[0].mxu0
      %v1024 = vadd.f32 %v458, %v1023
      %v1025 = vpop.f32.mrb[0].mxu0
      %v1026 = vadd.f32 %v462, %v1025
      %1027 = vmatprep.mubr.bf16.mxu0 0
      %1028 = vmatmul.mubr.bf16.gmra.mrb[0].mxu0 %v680
      %v1029 = vpop.f32.mrb[0].mxu0
      %v1030 = vadd.f32 %v458, %v1029
      %v1031 = vpop.f32.mrb[0].mxu0
      %v1032 = vadd.f32 %v462, %v1031
      %v1033 = vpop.f32.mrb[0].mxu0
      %v1034 = vadd.f32 %v458, %v1033
      %v1035 = vpop.f32.mrb[0].mxu0
      %v1036 = vadd.f32 %v462, %v1035
      %1037 = vmatprep.mubr.bf16.mxu0 0
      %1038 = vmatmul.mubr.bf16.gmra.mrb[0].mxu0 %v681
      %v1039 = vpop.f32.mrb[0].mxu0
      %v1040 = vadd.f32 %v458, %v1039
      %v1041 = vpop.f32.mrb[0].mxu0
      %v1042 = vadd.f32 %v462, %v1041
      %v1043 = vpop.f32.mrb[0].mxu0
      %v1044 = vadd.f32 %v458, %v1043
      %v1045 = vpop.f32.mrb[0].mxu0
      %v1046 = vadd.f32 %v462, %v1045
      %1047 = vmatprep.mubr.bf16.mxu0 0
      %1048 = vmatmul.mubr.bf16.gmra.mrb[0].mxu0 %v682
      %v1049 = vpop.f32.mrb[0].mxu0
      %v1050 = vadd.f32 %v458, %v1049
      %v1051 = vpop.f32.mrb[0].mxu0
      %v1052 = vadd.f32 %v462, %v1051
      %v1053 = vpop.f32.mrb[0].mxu0
      %v1054 = vadd.f32 %v458, %v1053
      %v1055 = vpop.f32.mrb[0].mxu0
      %v1056 = vadd.f32 %v462, %v1055
      %1057 = vmatprep.mubr.bf16.mxu0 0
      %1058 = vmatmul.mubr.bf16.gmra.mrb[0].mxu0 %v683
      %v1059 = vpop.f32.mrb[0].mxu0
      %v1060 = vadd.f32 %v458, %v1059
      %v1061 = vpop.f32.mrb[0].mxu0
      %v1062 = vadd.f32 %v462, %v1061
      %v1063 = vpop.f32.mrb[0].mxu0
      %v1064 = vadd.f32 %v458, %v1063
      %v1065 = vpop.f32.mrb[0].mxu0
      %v1066 = vadd.f32 %v462, %v1065
      %1067 = vmatprep.mubr.bf16.mxu0 0
      %1068 = vmatmul.mubr.bf16.gmra.mrb[0].mxu0 %v684
      %v1069 = vpop.f32.mrb[0].mxu0
      %v1070 = vadd.f32 %v458, %v1069
      %v1071 = vpop.f32.mrb[0].mxu0
      %v1072 = vadd.f32 %v462, %v1071
      %v1073 = vpop.f32.mrb[0].mxu0
      %v1074 = vadd.f32 %v458, %v1073
      %v1075 = vpop.f32.mrb[0].mxu0
      %v1076 = vadd.f32 %v462, %v1075
      %1077 = vmatprep.mubr.bf16.mxu0 0
      %1078 = vmatmul.mubr.bf16.gmra.mrb[0].mxu0 %v685
      %v1079 = vpop.f32.mrb[0].mxu0
      %v1080 = vadd.f32 %v458, %v1079
      %v1081 = vpop.f32.mrb[0].mxu0
      %v1082 = vadd.f32 %v462, %v1081
      %v1083 = vpop.f32.mrb[0].mxu0
      %v1084 = vadd.f32 %v458, %v1083
      %v1085 = vpop.f32.mrb[0].mxu0
      %v1086 = vadd.f32 %v462, %v1085
      %1087 = vmatprep.mubr.bf16.mxu0 0
      %1088 = vmatmul.mubr.bf16.gmra.mrb[0].mxu0 %v686
      %v1089 = vpop.f32.mrb[0].mxu0
      %v1090 = vadd.f32 %v458, %v1089
      %v1091 = vpop.f32.mrb[0].mxu0
      %v1092 = vadd.f32 %v462, %v1091
      %v1093 = vpop.f32.mrb[0].mxu0
      %v1094 = vadd.f32 %v458, %v1093
      %v1095 = vpop.f32.mrb[0].mxu0
      %v1096 = vadd.f32 %v462, %v1095
      %1097 = vmatprep.mubr.bf16.mxu0 0
      %1098 = vmatmul.mubr.bf16.gmra.mrb[0].mxu0 %v687
      %v1099 = vpop.f32.mrb[0].mxu0
      %v1100 = vadd.f32 %v458, %v1099
      %v1101 = vpop.f32.mrb[0].mxu0
      %v1102 = vadd.f32 %v462, %v1101
      %v1103 = vpop.f32.mrb[0].mxu0
      %v1104 = vadd.f32 %v458, %v1103
      %v1105 = vpop.f32.mrb[0].mxu0
      %v1106 = vadd.f32 %v462, %v1105
      %1107 = vmatprep.mubr.bf16.mxu0 0
      %1108 = vmatmul.mubr.bf16.gmra.mrb[0].mxu0 %v688
      %v1109 = vpop.f32.mrb[0].mxu0
      %v1110 = vadd.f32 %v458, %v1109
      %v1111 = vpop.f32.mrb[0].mxu0
      %v1112 = vadd.f32 %v462, %v1111
      %v1113 = vpop.f32.mrb[0].mxu0
      %v1114 = vadd.f32 %v458, %v1113
      %v1115 = vpop.f32.mrb[0].mxu0
      %v1116 = vadd.f32 %v462, %v1115
      %1117 = vmatprep.mubr.bf16.mxu0 0
      %1118 = vmatmul.mubr.bf16.gmra.mrb[0].mxu0 %v689
      %v1119 = vpop.f32.mrb[0].mxu0
      %v1120 = vadd.f32 %v458, %v1119
      %v1121 = vpop.f32.mrb[0].mxu0
      %v1122 = vadd.f32 %v462, %v1121
      %v1123 = vpop.f32.mrb[0].mxu0
      %v1124 = vadd.f32 %v458, %v1123
      %v1125 = vpop.f32.mrb[0].mxu0
      %v1126 = vadd.f32 %v462, %v1125
      %1127 = vmatprep.mubr.bf16.mxu0 0
      %1128 = vmatmul.mubr.bf16.gmra.mrb[0].mxu0 %v690
      %v1129 = vpop.f32.mrb[0].mxu0
      %v1130 = vadd.f32 %v458, %v1129
      %v1131 = vpop.f32.mrb[0].mxu0
      %v1132 = vadd.f32 %v462, %v1131
      %v1133 = vpop.f32.mrb[0].mxu0
      %v1134 = vadd.f32 %v458, %v1133
      %v1135 = vpop.f32.mrb[0].mxu0
      %v1136 = vadd.f32 %v462, %v1135
      %1137 = vmatprep.mubr.bf16.mxu0 0
      %1138 = vmatmul.mubr.bf16.gmra.mrb[0].mxu0 %v691
      %v1139 = vpop.f32.mrb[0].mxu0
      %v1140 = vadd.f32 %v458, %v1139
      %v1141 = vpop.f32.mrb[0].mxu0
      %v1142 = vadd.f32 %v462, %v1141
      %v1143 = vpop.f32.mrb[0].mxu0
      %v1144 = vadd.f32 %v458, %v1143
      %v1145 = vpop.f32.mrb[0].mxu0
      %v1146 = vadd.f32 %v462, %v1145
      %1147 = vmatprep.mubr.bf16.mxu0 0
      %1148 = vmatmul.mubr.bf16.gmra.mrb[0].mxu0 %v692
      %v1149 = vpop.f32.mrb[0].mxu0
      %v1150 = vadd.f32 %v458, %v1149
      %v1151 = vpop.f32.mrb[0].mxu0
      %v1152 = vadd.f32 %v462, %v1151
      %v1153 = vpop.f32.mrb[0].mxu0
      %v1154 = vadd.f32 %v458, %v1153
      %v1155 = vpop.f32.mrb[0].mxu0
      %v1156 = vadd.f32 %v462, %v1155
      %1157 = vmatprep.mubr.bf16.mxu0 0
      %1158 = vmatmul.mubr.bf16.gmra.mrb[0].mxu0 %v693
      %v1159 = vpop.f32.mrb[0].mxu0
      %v1160 = vadd.f32 %v458, %v1159
      %v1161 = vpop.f32.mrb[0].mxu0
      %v1162 = vadd.f32 %v462, %v1161
      %v1163 = vpop.f32.mrb[0].mxu0
      %v1164 = vadd.f32 %v458, %v1163
      %v1165 = vpop.f32.mrb[0].mxu0
      %v1166 = vadd.f32 %v462, %v1165
      %1167 = vmatprep.mubr.bf16.mxu0 0
      %1168 = vmatmul.mubr.bf16.gmra.mrb[0].mxu0 %v694
      %v1169 = vpop.f32.mrb[0].mxu0
      %v1170 = vadd.f32 %v458, %v1169
      %v1171 = vpop.f32.mrb[0].mxu0
      %v1172 = vadd.f32 %v462, %v1171
      %v1173 = vpop.f32.mrb[0].mxu0
      %v1174 = vadd.f32 %v458, %v1173
      %v1175 = vpop.f32.mrb[0].mxu0
      %v1176 = vadd.f32 %v462, %v1175
      %1177 = vmatprep.mubr.bf16.mxu0 0
      %1178 = vmatmul.mubr.bf16.gmra.mrb[0].mxu0 %v695
      %v1179 = vpop.f32.mrb[0].mxu0
      %v1180 = vadd.f32 %v458, %v1179
      %v1181 = vpop.f32.mrb[0].mxu0
      %v1182 = vadd.f32 %v462, %v1181
      %v1183 = vpop.f32.mrb[0].mxu0
      %v1184 = vadd.f32 %v458, %v1183
      %v1185 = vpop.f32.mrb[0].mxu0
      %v1186 = vadd.f32 %v462, %v1185
      %1187 = vmatprep.mubr.bf16.mxu0 0
      %1188 = vmatmul.mubr.bf16.gmra.mrb[0].mxu0 %v696
      %v1189 = vpop.f32.mrb[0].mxu0
      %v1190 = vadd.f32 %v458, %v1189
      %v1191 = vpop.f32.mrb[0].mxu0
      %v1192 = vadd.f32 %v462, %v1191
      %v1193 = vpop.f32.mrb[0].mxu0
      %v1194 = vadd.f32 %v458, %v1193
      %v1195 = vpop.f32.mrb[0].mxu0
      %v1196 = vadd.f32 %v462, %v1195
      %1197 = vmatprep.mubr.bf16.mxu0 0
      %1198 = vmatmul.mubr.bf16.gmra.mrb[0].mxu0 %v697
      %v1199 = vpop.f32.mrb[0].mxu0
      %v1200 = vadd.f32 %v458, %v1199
      %v1201 = vpop.f32.mrb[0].mxu0
      %v1202 = vadd.f32 %v462, %v1201
      %v1203 = vpop.f32.mrb[0].mxu0
      %v1204 = vadd.f32 %v458, %v1203
      %v1205 = vpop.f32.mrb[0].mxu0
      %v1206 = vadd.f32 %v462, %v1205
      %1207 = vmatprep.mubr.bf16.mxu0 0
      %1208 = vmatmul.mubr.bf16.gmra.mrb[0].mxu0 %v698
      %v1209 = vpop.f32.mrb[0].mxu0
      %v1210 = vadd.f32 %v458, %v1209
      %v1211 = vpop.f32.mrb[0].mxu0
      %v1212 = vadd.f32 %v462, %v1211
      %v1213 = vpop.f32.mrb[0].mxu0
      %v1214 = vadd.f32 %v458, %v1213
      %v1215 = vpop.f32.mrb[0].mxu0
      %v1216 = vadd.f32 %v462, %v1215
      %1217 = vmatprep.mubr.bf16.mxu0 0
      %1218 = vmatmul.mubr.bf16.gmra.mrb[0].mxu0 %v699
      %v1219 = vpop.f32.mrb[0].mxu0
      %v1220 = vadd.f32 %v458, %v1219
      %v1221 = vpop.f32.mrb[0].mxu0
      %v1222 = vadd.f32 %v462, %v1221
      %v1223 = vpop.f32.mrb[0].mxu0
      %v1224 = vadd.f32 %v458, %v1223
      %v1225 = vpop.f32.mrb[0].mxu0
      %v1226 = vadd.f32 %v462, %v1225
      %1227 = vmatprep.mubr.bf16.mxu0 0
      %1228 = vmatmul.mubr.bf16.gmra.mrb[0].mxu0 %v700
      %v1229 = vpop.f32.mrb[0].mxu0
      %v1230 = vadd.f32 %v458, %v1229
      %v1231 = vpop.f32.mrb[0].mxu0
      %v1232 = vadd.f32 %v462, %v1231
      %v1233 = vpop.f32.mrb[0].mxu0
      %v1234 = vadd.f32 %v458, %v1233
      %v1235 = vpop.f32.mrb[0].mxu0
      %v1236 = vadd.f32 %v462, %v1235
      %1237 = vmatprep.mubr.bf16.mxu0 0
      %1238 = vmatmul.mubr.bf16.gmra.mrb[0].mxu0 %v701
      %v1239 = vpop.f32.mrb[0].mxu0
      %v1240 = vadd.f32 %v458, %v1239
      %v1241 = vpop.f32.mrb[0].mxu0
      %v1242 = vadd.f32 %v462, %v1241
      %v1243 = vpop.f32.mrb[0].mxu0
      %v1244 = vadd.f32 %v458, %v1243
      %v1245 = vpop.f32.mrb[0].mxu0
      %v1246 = vadd.f32 %v462, %v1245
      %1247 = vmatprep.mubr.bf16.mxu0 0
      %1248 = vmatmul.mubr.bf16.gmra.mrb[0].mxu0 %v702
      %v1249 = vpop.f32.mrb[0].mxu0
      %v1250 = vadd.f32 %v458, %v1249
      %v1251 = vpop.f32.mrb[0].mxu0
      %v1252 = vadd.f32 %v462, %v1251
      %v1253 = vpop.f32.mrb[0].mxu0
      %v1254 = vadd.f32 %v458, %v1253
      %v1255 = vpop.f32.mrb[0].mxu0
      %v1256 = vadd.f32 %v462, %v1255
      %1257 = vmatprep.mubr.bf16.mxu0 0
      %1258 = vmatmul.mubr.bf16.gmra.mrb[0].mxu0 %v703
      %v1259 = vpop.f32.mrb[0].mxu0
      %v1260 = vadd.f32 %v458, %v1259
      %v1261 = vpop.f32.mrb[0].mxu0
      %v1262 = vadd.f32 %v462, %v1261
      %v1263 = vpop.f32.mrb[0].mxu0
      %v1264 = vadd.f32 %v458, %v1263
      %v1265 = vpop.f32.mrb[0].mxu0
      %v1266 = vadd.f32 %v462, %v1265
      %1267 = vmatprep.mubr.bf16.mxu0 0
      %1268 = vmatmul.mubr.bf16.gmra.mrb[0].mxu0 %v704
      %v1269 = vpop.f32.mrb[0].mxu0
      %v1270 = vadd.f32 %v458, %v1269
      %v1271 = vpop.f32.mrb[0].mxu0
      %v1272 = vadd.f32 %v462, %v1271
      %v1273 = vpop.f32.mrb[0].mxu0
      %v1274 = vadd.f32 %v458, %v1273
      %v1275 = vpop.f32.mrb[0].mxu0
      %v1276 = vadd.f32 %v462, %v1275
      %1277 = vmatprep.mubr.bf16.mxu0 0
      %1278 = vmatmul.mubr.bf16.gmra.mrb[0].mxu0 %v705
      %v1279 = vpop.f32.mrb[0].mxu0
      %v1280 = vadd.f32 %v458, %v1279
      %v1281 = vpop.f32.mrb[0].mxu0
      %v1282 = vadd.f32 %v462, %v1281
      %v1283 = vpop.f32.mrb[0].mxu0
      %v1284 = vadd.f32 %v458, %v1283
      %v1285 = vpop.f32.mrb[0].mxu0
      %v1286 = vadd.f32 %v462, %v1285
      %1287 = vmatprep.mubr.bf16.mxu0 0
      %1288 = vmatmul.mubr.bf16.gmra.mrb[0].mxu0 %v706
      %v1289 = vpop.f32.mrb[0].mxu0
      %v1290 = vadd.f32 %v458, %v1289
      %v1291 = vpop.f32.mrb[0].mxu0
      %v1292 = vadd.f32 %v462, %v1291
      %v1293 = vpop.f32.mrb[0].mxu0
      %v1294 = vadd.f32 %v458, %v1293
      %v1295 = vpop.f32.mrb[0].mxu0
      %v1296 = vadd.f32 %v462, %v1295
      %1297 = vmatprep.mubr.bf16.mxu0 0
      %1298 = vmatmul.mubr.bf16.gmra.mrb[0].mxu0 %v707
      %v1299 = vpop.f32.mrb[0].mxu0
      %v1300 = vadd.f32 %v458, %v1299
      %v1301 = vpop.f32.mrb[0].mxu0
      %v1302 = vadd.f32 %v462, %v1301
      %v1303 = vpop.f32.mrb[0].mxu0
      %v1304 = vadd.f32 %v458, %v1303
      %v1305 = vpop.f32.mrb[0].mxu0
      %v1306 = vadd.f32 %v462, %v1305
      %1307 = vmatprep.mubr.bf16.mxu0 0
      %1308 = vmatmul.mubr.bf16.gmra.mrb[0].mxu0 %v708
      %v1309 = vpop.f32.mrb[0].mxu0
      %v1310 = vadd.f32 %v458, %v1309
      %v1311 = vpop.f32.mrb[0].mxu0
      %v1312 = vadd.f32 %v462, %v1311
      %v1313 = vpop.f32.mrb[0].mxu0
      %v1314 = vadd.f32 %v458, %v1313
      %v1315 = vpop.f32.mrb[0].mxu0
      %v1316 = vadd.f32 %v462, %v1315
      %1317 = vmatprep.mubr.bf16.mxu0 0
      %1318 = vmatmul.mubr.bf16.gmra.mrb[0].mxu0 %v709
      %v1319 = vpop.f32.mrb[0].mxu0
      %v1320 = vadd.f32 %v458, %v1319
      %v1321 = vpop.f32.mrb[0].mxu0
      %v1322 = vadd.f32 %v462, %v1321
      %v1323 = vpop.f32.mrb[0].mxu0
      %v1324 = vadd.f32 %v458, %v1323
      %v1325 = vpop.f32.mrb[0].mxu0
      %v1326 = vadd.f32 %v462, %v1325
      %1327 = vmatprep.mubr.bf16.mxu0 0
      %1328 = vmatmul.mubr.bf16.gmra.mrb[0].mxu0 %v710
      %v1329 = vpop.f32.mrb[0].mxu0
      %v1330 = vadd.f32 %v458, %v1329
      %v1331 = vpop.f32.mrb[0].mxu0
      %v1332 = vadd.f32 %v462, %v1331
      %v1333 = vpop.f32.mrb[0].mxu0
      %v1334 = vadd.f32 %v458, %v1333
      %v1335 = vpop.f32.mrb[0].mxu0
      %v1336 = vadd.f32 %v462, %v1335
      %1337 = vmatprep.mubr.bf16.mxu0 0
      %1338 = vmatmul.mubr.bf16.gmra.mrb[0].mxu0 %v711
      %v1339 = vpop.f32.mrb[0].mxu0
      %v1340 = vadd.f32 %v458, %v1339
      %v1341 = vpop.f32.mrb[0].mxu0
      %v1342 = vadd.f32 %v462, %v1341
      %v1343 = vpop.f32.mrb[0].mxu0
      %v1344 = vadd.f32 %v458, %v1343
      %v1345 = vpop.f32.mrb[0].mxu0
      %v1346 = vadd.f32 %v462, %v1345
      %1347 = vmatprep.mubr.bf16.mxu0 0
      %1348 = vmatmul.mubr.bf16.gmra.mrb[0].mxu0 %v712
      %v1349 = vpop.f32.mrb[0].mxu0
      %v1350 = vadd.f32 %v458, %v1349
      %v1351 = vpop.f32.mrb[0].mxu0
      %v1352 = vadd.f32 %v462, %v1351
      %v1353 = vpop.f32.mrb[0].mxu0
      %v1354 = vadd.f32 %v458, %v1353
      %v1355 = vpop.f32.mrb[0].mxu0
      %v1356 = vadd.f32 %v462, %v1355
      %1357 = vmatprep.mubr.bf16.mxu0 0
      %1358 = vmatmul.mubr.bf16.gmra.mrb[0].mxu0 %v713
      %v1359 = vpop.f32.mrb[0].mxu0
      %v1360 = vadd.f32 %v458, %v1359
      %v1361 = vpop.f32.mrb[0].mxu0
      %v1362 = vadd.f32 %v462, %v1361
      %v1363 = vpop.f32.mrb[0].mxu0
      %v1364 = vadd.f32 %v458, %v1363
      %v1365 = vpop.f32.mrb[0].mxu0
      %v1366 = vadd.f32 %v462, %v1365
      %1367 = vmatprep.mubr.bf16.mxu0 0
      %1368 = vmatmul.mubr.bf16.gmra.mrb[0].mxu0 %v714
      %v1369 = vpop.f32.mrb[0].mxu0
      %v1370 = vadd.f32 %v458, %v1369
      %v1371 = vpop.f32.mrb[0].mxu0
      %v1372 = vadd.f32 %v462, %v1371
      %v1373 = vpop.f32.mrb[0].mxu0
      %v1374 = vadd.f32 %v458, %v1373
      %v1375 = vpop.f32.mrb[0].mxu0
      %v1376 = vadd.f32 %v462, %v1375
      %1377 = vdwg.mxu0
      %v1378 = vmax.f32 %v880, 0.0
      %v1379 = vmax.f32 %v882, 0.0
      %v1380 = vmax.f32 %v884, 0.0
      %v1381 = vmax.f32 %v886, 0.0
      %v1382 = vmax.f32 %v890, 0.0
      %v1383 = vmax.f32 %v892, 0.0
      %v1384 = vmax.f32 %v894, 0.0
      %v1385 = vmax.f32 %v896, 0.0
      %v1386 = vmax.f32 %v900, 0.0
      %v1387 = vmax.f32 %v902, 0.0
      %v1388 = vmax.f32 %v904, 0.0
      %v1389 = vmax.f32 %v906, 0.0
      %v1390 = vmax.f32 %v910, 0.0
      %v1391 = vmax.f32 %v912, 0.0
      %v1392 = vmax.f32 %v914, 0.0
      %v1393 = vmax.f32 %v916, 0.0
      %v1394 = vmax.f32 %v920, 0.0
      %v1395 = vmax.f32 %v922, 0.0
      %v1396 = vmax.f32 %v924, 0.0
      %v1397 = vmax.f32 %v926, 0.0
      %v1398 = vmax.f32 %v930, 0.0
      %v1399 = vmax.f32 %v932, 0.0
      %v1400 = vmax.f32 %v934, 0.0
      %v1401 = vmax.f32 %v936, 0.0
      %v1402 = vmax.f32 %v940, 0.0
      %v1403 = vmax.f32 %v942, 0.0
      %v1404 = vmax.f32 %v944, 0.0
      %v1405 = vmax.f32 %v946, 0.0
      %v1406 = vmax.f32 %v950, 0.0
      %v1407 = vmax.f32 %v952, 0.0
      %v1408 = vmax.f32 %v954, 0.0
      %v1409 = vmax.f32 %v956, 0.0
      %v1410 = vmax.f32 %v960, 0.0
      %v1411 = vmax.f32 %v962, 0.0
      %v1412 = vmax.f32 %v964, 0.0
      %v1413 = vmax.f32 %v966, 0.0
      %v1414 = vmax.f32 %v970, 0.0
      %v1415 = vmax.f32 %v972, 0.0
      %v1416 = vmax.f32 %v974, 0.0
      %v1417 = vmax.f32 %v976, 0.0
      %v1418 = vmax.f32 %v980, 0.0
      %v1419 = vmax.f32 %v982, 0.0
      %v1420 = vmax.f32 %v984, 0.0
      %v1421 = vmax.f32 %v986, 0.0
      %v1422 = vmax.f32 %v990, 0.0
      %v1423 = vmax.f32 %v992, 0.0
      %v1424 = vmax.f32 %v994, 0.0
      %v1425 = vmax.f32 %v996, 0.0
      %v1426 = vmax.f32 %v1000, 0.0
      %v1427 = vmax.f32 %v1002, 0.0
      %v1428 = vmax.f32 %v1004, 0.0
      %v1429 = vmax.f32 %v1006, 0.0
      %v1430 = vmax.f32 %v1010, 0.0
      %v1431 = vmax.f32 %v1012, 0.0
      %v1432 = vmax.f32 %v1014, 0.0
      %v1433 = vmax.f32 %v1016, 0.0
      %v1434 = vmax.f32 %v1020, 0.0
      %v1435 = vmax.f32 %v1022, 0.0
      %v1436 = vmax.f32 %v1024, 0.0
      %v1437 = vmax.f32 %v1026, 0.0
      %v1438 = vmax.f32 %v1030, 0.0
      %v1439 = vmax.f32 %v1032, 0.0
      %v1440 = vmax.f32 %v1034, 0.0
      %v1441 = vmax.f32 %v1036, 0.0
      %v1442 = vmax.f32 %v1040, 0.0
      %v1443 = vmax.f32 %v1042, 0.0
      %v1444 = vmax.f32 %v1044, 0.0
      %v1445 = vmax.f32 %v1046, 0.0
      %v1446 = vmax.f32 %v1050, 0.0
      %v1447 = vmax.f32 %v1052, 0.0
      %v1448 = vmax.f32 %v1054, 0.0
      %v1449 = vmax.f32 %v1056, 0.0
      %v1450 = vmax.f32 %v1060, 0.0
      %v1451 = vmax.f32 %v1062, 0.0
      %v1452 = vmax.f32 %v1064, 0.0
      %v1453 = vmax.f32 %v1066, 0.0
      %v1454 = vmax.f32 %v1070, 0.0
      %v1455 = vmax.f32 %v1072, 0.0
      %v1456 = vmax.f32 %v1074, 0.0
      %v1457 = vmax.f32 %v1076, 0.0
      %v1458 = vmax.f32 %v1080, 0.0
      %v1459 = vmax.f32 %v1082, 0.0
      %v1460 = vmax.f32 %v1084, 0.0
      %v1461 = vmax.f32 %v1086, 0.0
      %v1462 = vmax.f32 %v1090, 0.0
      %v1463 = vmax.f32 %v1092, 0.0
      %v1464 = vmax.f32 %v1094, 0.0
      %v1465 = vmax.f32 %v1096, 0.0
      %v1466 = vmax.f32 %v1100, 0.0
      %v1467 = vmax.f32 %v1102, 0.0
      %v1468 = vmax.f32 %v1104, 0.0
      %v1469 = vmax.f32 %v1106, 0.0
      %v1470 = vmax.f32 %v1110, 0.0
      %v1471 = vmax.f32 %v1112, 0.0
      %v1472 = vmax.f32 %v1114, 0.0
      %v1473 = vmax.f32 %v1116, 0.0
      %v1474 = vmax.f32 %v1120, 0.0
      %v1475 = vmax.f32 %v1122, 0.0
      %v1476 = vmax.f32 %v1124, 0.0
      %v1477 = vmax.f32 %v1126, 0.0
      %v1478 = vmax.f32 %v1130, 0.0
      %v1479 = vmax.f32 %v1132, 0.0
      %v1480 = vmax.f32 %v1134, 0.0
      %v1481 = vmax.f32 %v1136, 0.0
      %v1482 = vmax.f32 %v1140, 0.0
      %v1483 = vmax.f32 %v1142, 0.0
      %v1484 = vmax.f32 %v1144, 0.0
      %v1485 = vmax.f32 %v1146, 0.0
      %v1486 = vmax.f32 %v1150, 0.0
      %v1487 = vmax.f32 %v1152, 0.0
      %v1488 = vmax.f32 %v1154, 0.0
      %v1489 = vmax.f32 %v1156, 0.0
      %v1490 = vmax.f32 %v1160, 0.0
      %v1491 = vmax.f32 %v1162, 0.0
      %v1492 = vmax.f32 %v1164, 0.0
      %v1493 = vmax.f32 %v1166, 0.0
      %v1494 = vmax.f32 %v1170, 0.0
      %v1495 = vmax.f32 %v1172, 0.0
      %v1496 = vmax.f32 %v1174, 0.0
      %v1497 = vmax.f32 %v1176, 0.0
      %v1498 = vmax.f32 %v1180, 0.0
      %v1499 = vmax.f32 %v1182, 0.0
      %v1500 = vmax.f32 %v1184, 0.0
      %v1501 = vmax.f32 %v1186, 0.0
      %v1502 = vmax.f32 %v1190, 0.0
      %v1503 = vmax.f32 %v1192, 0.0
      %v1504 = vmax.f32 %v1194, 0.0
      %v1505 = vmax.f32 %v1196, 0.0
      %v1506 = vmax.f32 %v1200, 0.0
      %v1507 = vmax.f32 %v1202, 0.0
      %v1508 = vmax.f32 %v1204, 0.0
      %v1509 = vmax.f32 %v1206, 0.0
      %v1510 = vmax.f32 %v1210, 0.0
      %v1511 = vmax.f32 %v1212, 0.0
      %v1512 = vmax.f32 %v1214, 0.0
      %v1513 = vmax.f32 %v1216, 0.0
      %v1514 = vmax.f32 %v1220, 0.0
      %v1515 = vmax.f32 %v1222, 0.0
      %v1516 = vmax.f32 %v1224, 0.0
      %v1517 = vmax.f32 %v1226, 0.0
      %v1518 = vmax.f32 %v1230, 0.0
      %v1519 = vmax.f32 %v1232, 0.0
      %v1520 = vmax.f32 %v1234, 0.0
      %v1521 = vmax.f32 %v1236, 0.0
      %v1522 = vmax.f32 %v1240, 0.0
      %v1523 = vmax.f32 %v1242, 0.0
      %v1524 = vmax.f32 %v1244, 0.0
      %v1525 = vmax.f32 %v1246, 0.0
      %v1526 = vmax.f32 %v1250, 0.0
      %v1527 = vmax.f32 %v1252, 0.0
      %v1528 = vmax.f32 %v1254, 0.0
      %v1529 = vmax.f32 %v1256, 0.0
      %v1530 = vmax.f32 %v1260, 0.0
      %v1531 = vmax.f32 %v1262, 0.0
      %v1532 = vmax.f32 %v1264, 0.0
      %v1533 = vmax.f32 %v1266, 0.0
      %v1534 = vmax.f32 %v1270, 0.0
      %v1535 = vmax.f32 %v1272, 0.0
      %v1536 = vmax.f32 %v1274, 0.0
      %v1537 = vmax.f32 %v1276, 0.0
      %v1538 = vmax.f32 %v1280, 0.0
      %v1539 = vmax.f32 %v1282, 0.0
      %v1540 = vmax.f32 %v1284, 0.0
      %v1541 = vmax.f32 %v1286, 0.0
      %v1542 = vmax.f32 %v1290, 0.0
      %v1543 = vmax.f32 %v1292, 0.0
      %v1544 = vmax.f32 %v1294, 0.0
      %v1545 = vmax.f32 %v1296, 0.0
      %v1546 = vmax.f32 %v1300, 0.0
      %v1547 = vmax.f32 %v1302, 0.0
      %v1548 = vmax.f32 %v1304, 0.0
      %v1549 = vmax.f32 %v1306, 0.0
      %v1550 = vmax.f32 %v1310, 0.0
      %v1551 = vmax.f32 %v1312, 0.0
      %v1552 = vmax.f32 %v1314, 0.0
      %v1553 = vmax.f32 %v1316, 0.0
      %v1554 = vmax.f32 %v1320, 0.0
      %v1555 = vmax.f32 %v1322, 0.0
      %v1556 = vmax.f32 %v1324, 0.0
      %v1557 = vmax.f32 %v1326, 0.0
      %v1558 = vmax.f32 %v1330, 0.0
      %v1559 = vmax.f32 %v1332, 0.0
      %v1560 = vmax.f32 %v1334, 0.0
      %v1561 = vmax.f32 %v1336, 0.0
      %v1562 = vmax.f32 %v1340, 0.0
      %v1563 = vmax.f32 %v1342, 0.0
      %v1564 = vmax.f32 %v1344, 0.0
      %v1565 = vmax.f32 %v1346, 0.0
      %v1566 = vmax.f32 %v1350, 0.0
      %v1567 = vmax.f32 %v1352, 0.0
      %v1568 = vmax.f32 %v1354, 0.0
      %v1569 = vmax.f32 %v1356, 0.0
      %v1570 = vmax.f32 %v1360, 0.0
      %v1571 = vmax.f32 %v1362, 0.0
      %v1572 = vmax.f32 %v1364, 0.0
      %v1573 = vmax.f32 %v1366, 0.0
      %v1574 = vmax.f32 %v1370, 0.0
      %v1575 = vmax.f32 %v1372, 0.0
      %v1576 = vmax.f32 %v1374, 0.0
      %v1577 = vmax.f32 %v1376, 0.0
      %v1578 = vadd.f32 %v1378, %v1379
      %1579 = vadd.xlane.f32.xlu0 %v1578
      %v1580 = vpop.xlane.xlu0 %1579
      %v1581 = vadd.f32 %v1380, %v1381
      %1582 = vadd.xlane.f32.xlu0 %v1581
      %v1583 = vpop.xlane.xlu0 %1582
      %v1584 = vadd.f32 %v1382, %v1383
      %1585 = vadd.xlane.f32.xlu0 %v1584
      %v1586 = vpop.xlane.xlu0 %1585
      %v1587 = vadd.f32 %v1384, %v1385
      %1588 = vadd.xlane.f32.xlu0 %v1587
      %v1589 = vpop.xlane.xlu0 %1588
      %v1590 = vadd.f32 %v1386, %v1387
      %1591 = vadd.xlane.f32.xlu0 %v1590
      %v1592 = vpop.xlane.xlu0 %1591
      %v1593 = vadd.f32 %v1388, %v1389
      %1594 = vadd.xlane.f32.xlu0 %v1593
      %v1595 = vpop.xlane.xlu0 %1594
      %v1596 = vadd.f32 %v1390, %v1391
      %1597 = vadd.xlane.f32.xlu0 %v1596
      %v1598 = vpop.xlane.xlu0 %1597
      %v1599 = vadd.f32 %v1392, %v1393
      %1600 = vadd.xlane.f32.xlu0 %v1599
      %v1601 = vpop.xlane.xlu0 %1600
      %v1602 = vadd.f32 %v1394, %v1395
      %1603 = vadd.xlane.f32.xlu0 %v1602
      %v1604 = vpop.xlane.xlu0 %1603
      %v1605 = vadd.f32 %v1396, %v1397
      %1606 = vadd.xlane.f32.xlu0 %v1605
      %v1607 = vpop.xlane.xlu0 %1606
      %v1608 = vadd.f32 %v1398, %v1399
      %1609 = vadd.xlane.f32.xlu0 %v1608
      %v1610 = vpop.xlane.xlu0 %1609
      %v1611 = vadd.f32 %v1400, %v1401
      %1612 = vadd.xlane.f32.xlu0 %v1611
      %v1613 = vpop.xlane.xlu0 %1612
      %v1614 = vadd.f32 %v1402, %v1403
      %1615 = vadd.xlane.f32.xlu0 %v1614
      %v1616 = vpop.xlane.xlu0 %1615
      %v1617 = vadd.f32 %v1404, %v1405
      %1618 = vadd.xlane.f32.xlu0 %v1617
      %v1619 = vpop.xlane.xlu0 %1618
      %v1620 = vadd.f32 %v1406, %v1407
      %1621 = vadd.xlane.f32.xlu0 %v1620
      %v1622 = vpop.xlane.xlu0 %1621
      %v1623 = vadd.f32 %v1408, %v1409
      %1624 = vadd.xlane.f32.xlu0 %v1623
      %v1625 = vpop.xlane.xlu0 %1624
      %v1626 = vadd.f32 %v1410, %v1411
      %1627 = vadd.xlane.f32.xlu0 %v1626
      %v1628 = vpop.xlane.xlu0 %1627
      %v1629 = vadd.f32 %v1412, %v1413
      %1630 = vadd.xlane.f32.xlu0 %v1629
      %v1631 = vpop.xlane.xlu0 %1630
      %v1632 = vadd.f32 %v1414, %v1415
      %1633 = vadd.xlane.f32.xlu0 %v1632
      %v1634 = vpop.xlane.xlu0 %1633
      %v1635 = vadd.f32 %v1416, %v1417
      %1636 = vadd.xlane.f32.xlu0 %v1635
      %v1637 = vpop.xlane.xlu0 %1636
      %v1638 = vadd.f32 %v1418, %v1419
      %1639 = vadd.xlane.f32.xlu0 %v1638
      %v1640 = vpop.xlane.xlu0 %1639
      %v1641 = vadd.f32 %v1420, %v1421
      %1642 = vadd.xlane.f32.xlu0 %v1641
      %v1643 = vpop.xlane.xlu0 %1642
      %v1644 = vadd.f32 %v1422, %v1423
      %1645 = vadd.xlane.f32.xlu0 %v1644
      %v1646 = vpop.xlane.xlu0 %1645
      %v1647 = vadd.f32 %v1424, %v1425
      %1648 = vadd.xlane.f32.xlu0 %v1647
      %v1649 = vpop.xlane.xlu0 %1648
      %v1650 = vadd.f32 %v1426, %v1427
      %1651 = vadd.xlane.f32.xlu0 %v1650
      %v1652 = vpop.xlane.xlu0 %1651
      %v1653 = vadd.f32 %v1428, %v1429
      %1654 = vadd.xlane.f32.xlu0 %v1653
      %v1655 = vpop.xlane.xlu0 %1654
      %v1656 = vadd.f32 %v1430, %v1431
      %1657 = vadd.xlane.f32.xlu0 %v1656
      %v1658 = vpop.xlane.xlu0 %1657
      %v1659 = vadd.f32 %v1432, %v1433
      %1660 = vadd.xlane.f32.xlu0 %v1659
      %v1661 = vpop.xlane.xlu0 %1660
      %v1662 = vadd.f32 %v1434, %v1435
      %1663 = vadd.xlane.f32.xlu0 %v1662
      %v1664 = vpop.xlane.xlu0 %1663
      %v1665 = vadd.f32 %v1436, %v1437
      %1666 = vadd.xlane.f32.xlu0 %v1665
      %v1667 = vpop.xlane.xlu0 %1666
      %v1668 = vadd.f32 %v1438, %v1439
      %1669 = vadd.xlane.f32.xlu0 %v1668
      %v1670 = vpop.xlane.xlu0 %1669
      %v1671 = vadd.f32 %v1440, %v1441
      %1672 = vadd.xlane.f32.xlu0 %v1671
      %v1673 = vpop.xlane.xlu0 %1672
      %v1674 = vadd.f32 %v1442, %v1443
      %1675 = vadd.xlane.f32.xlu0 %v1674
      %v1676 = vpop.xlane.xlu0 %1675
      %v1677 = vadd.f32 %v1444, %v1445
      %1678 = vadd.xlane.f32.xlu0 %v1677
      %v1679 = vpop.xlane.xlu0 %1678
      %v1680 = vadd.f32 %v1446, %v1447
      %1681 = vadd.xlane.f32.xlu0 %v1680
      %v1682 = vpop.xlane.xlu0 %1681
      %v1683 = vadd.f32 %v1448, %v1449
      %1684 = vadd.xlane.f32.xlu0 %v1683
      %v1685 = vpop.xlane.xlu0 %1684
      %v1686 = vadd.f32 %v1450, %v1451
      %1687 = vadd.xlane.f32.xlu0 %v1686
      %v1688 = vpop.xlane.xlu0 %1687
      %v1689 = vadd.f32 %v1452, %v1453
      %1690 = vadd.xlane.f32.xlu0 %v1689
      %v1691 = vpop.xlane.xlu0 %1690
      %v1692 = vadd.f32 %v1454, %v1455
      %1693 = vadd.xlane.f32.xlu0 %v1692
      %v1694 = vpop.xlane.xlu0 %1693
      %v1695 = vadd.f32 %v1456, %v1457
      %1696 = vadd.xlane.f32.xlu0 %v1695
      %v1697 = vpop.xlane.xlu0 %1696
      %v1698 = vadd.f32 %v1458, %v1459
      %1699 = vadd.xlane.f32.xlu0 %v1698
      %v1700 = vpop.xlane.xlu0 %1699
      %v1701 = vadd.f32 %v1460, %v1461
      %1702 = vadd.xlane.f32.xlu0 %v1701
      %v1703 = vpop.xlane.xlu0 %1702
      %v1704 = vadd.f32 %v1462, %v1463
      %1705 = vadd.xlane.f32.xlu0 %v1704
      %v1706 = vpop.xlane.xlu0 %1705
      %v1707 = vadd.f32 %v1464, %v1465
      %1708 = vadd.xlane.f32.xlu0 %v1707
      %v1709 = vpop.xlane.xlu0 %1708
      %v1710 = vadd.f32 %v1466, %v1467
      %1711 = vadd.xlane.f32.xlu0 %v1710
      %v1712 = vpop.xlane.xlu0 %1711
      %v1713 = vadd.f32 %v1468, %v1469
      %1714 = vadd.xlane.f32.xlu0 %v1713
      %v1715 = vpop.xlane.xlu0 %1714
      %v1716 = vadd.f32 %v1470, %v1471
      %1717 = vadd.xlane.f32.xlu0 %v1716
      %v1718 = vpop.xlane.xlu0 %1717
      %v1719 = vadd.f32 %v1472, %v1473
      %1720 = vadd.xlane.f32.xlu0 %v1719
      %v1721 = vpop.xlane.xlu0 %1720
      %v1722 = vadd.f32 %v1474, %v1475
      %1723 = vadd.xlane.f32.xlu0 %v1722
      %v1724 = vpop.xlane.xlu0 %1723
      %v1725 = vadd.f32 %v1476, %v1477
      %1726 = vadd.xlane.f32.xlu0 %v1725
      %v1727 = vpop.xlane.xlu0 %1726
      %v1728 = vadd.f32 %v1478, %v1479
      %1729 = vadd.xlane.f32.xlu0 %v1728
      %v1730 = vpop.xlane.xlu0 %1729
      %v1731 = vadd.f32 %v1480, %v1481
      %1732 = vadd.xlane.f32.xlu0 %v1731
      %v1733 = vpop.xlane.xlu0 %1732
      %v1734 = vadd.f32 %v1482, %v1483
      %1735 = vadd.xlane.f32.xlu0 %v1734
      %v1736 = vpop.xlane.xlu0 %1735
      %v1737 = vadd.f32 %v1484, %v1485
      %1738 = vadd.xlane.f32.xlu0 %v1737
      %v1739 = vpop.xlane.xlu0 %1738
      %v1740 = vadd.f32 %v1486, %v1487
      %1741 = vadd.xlane.f32.xlu0 %v1740
      %v1742 = vpop.xlane.xlu0 %1741
      %v1743 = vadd.f32 %v1488, %v1489
      %1744 = vadd.xlane.f32.xlu0 %v1743
      %v1745 = vpop.xlane.xlu0 %1744
      %v1746 = vadd.f32 %v1490, %v1491
      %1747 = vadd.xlane.f32.xlu0 %v1746
      %v1748 = vpop.xlane.xlu0 %1747
      %v1749 = vadd.f32 %v1492, %v1493
      %1750 = vadd.xlane.f32.xlu0 %v1749
      %v1751 = vpop.xlane.xlu0 %1750
      %v1752 = vadd.f32 %v1494, %v1495
      %1753 = vadd.xlane.f32.xlu0 %v1752
      %v1754 = vpop.xlane.xlu0 %1753
      %v1755 = vadd.f32 %v1496, %v1497
      %1756 = vadd.xlane.f32.xlu0 %v1755
      %v1757 = vpop.xlane.xlu0 %1756
      %v1758 = vadd.f32 %v1498, %v1499
      %1759 = vadd.xlane.f32.xlu0 %v1758
      %v1760 = vpop.xlane.xlu0 %1759
      %v1761 = vadd.f32 %v1500, %v1501
      %1762 = vadd.xlane.f32.xlu0 %v1761
      %v1763 = vpop.xlane.xlu0 %1762
      %v1764 = vadd.f32 %v1502, %v1503
      %1765 = vadd.xlane.f32.xlu0 %v1764
      %v1766 = vpop.xlane.xlu0 %1765
      %v1767 = vadd.f32 %v1504, %v1505
      %1768 = vadd.xlane.f32.xlu0 %v1767
      %v1769 = vpop.xlane.xlu0 %1768
      %v1770 = vadd.f32 %v1506, %v1507
      %1771 = vadd.xlane.f32.xlu0 %v1770
      %v1772 = vpop.xlane.xlu0 %1771
      %v1773 = vadd.f32 %v1508, %v1509
      %1774 = vadd.xlane.f32.xlu0 %v1773
      %v1775 = vpop.xlane.xlu0 %1774
      %v1776 = vadd.f32 %v1510, %v1511
      %1777 = vadd.xlane.f32.xlu0 %v1776
      %v1778 = vpop.xlane.xlu0 %1777
      %v1779 = vadd.f32 %v1512, %v1513
      %1780 = vadd.xlane.f32.xlu0 %v1779
      %v1781 = vpop.xlane.xlu0 %1780
      %v1782 = vadd.f32 %v1514, %v1515
      %1783 = vadd.xlane.f32.xlu0 %v1782
      %v1784 = vpop.xlane.xlu0 %1783
      %v1785 = vadd.f32 %v1516, %v1517
      %1786 = vadd.xlane.f32.xlu0 %v1785
      %v1787 = vpop.xlane.xlu0 %1786
      %v1788 = vadd.f32 %v1518, %v1519
      %1789 = vadd.xlane.f32.xlu0 %v1788
      %v1790 = vpop.xlane.xlu0 %1789
      %v1791 = vadd.f32 %v1520, %v1521
      %1792 = vadd.xlane.f32.xlu0 %v1791
      %v1793 = vpop.xlane.xlu0 %1792
      %v1794 = vadd.f32 %v1522, %v1523
      %1795 = vadd.xlane.f32.xlu0 %v1794
      %v1796 = vpop.xlane.xlu0 %1795
      %v1797 = vadd.f32 %v1524, %v1525
      %1798 = vadd.xlane.f32.xlu0 %v1797
      %v1799 = vpop.xlane.xlu0 %1798
      %v1800 = vadd.f32 %v1526, %v1527
      %1801 = vadd.xlane.f32.xlu0 %v1800
      %v1802 = vpop.xlane.xlu0 %1801
      %v1803 = vadd.f32 %v1528, %v1529
      %1804 = vadd.xlane.f32.xlu0 %v1803
      %v1805 = vpop.xlane.xlu0 %1804
      %v1806 = vadd.f32 %v1530, %v1531
      %1807 = vadd.xlane.f32.xlu0 %v1806
      %v1808 = vpop.xlane.xlu0 %1807
      %v1809 = vadd.f32 %v1532, %v1533
      %1810 = vadd.xlane.f32.xlu0 %v1809
      %v1811 = vpop.xlane.xlu0 %1810
      %v1812 = vadd.f32 %v1534, %v1535
      %1813 = vadd.xlane.f32.xlu0 %v1812
      %v1814 = vpop.xlane.xlu0 %1813
      %v1815 = vadd.f32 %v1536, %v1537
      %1816 = vadd.xlane.f32.xlu0 %v1815
      %v1817 = vpop.xlane.xlu0 %1816
      %v1818 = vadd.f32 %v1538, %v1539
      %1819 = vadd.xlane.f32.xlu0 %v1818
      %v1820 = vpop.xlane.xlu0 %1819
      %v1821 = vadd.f32 %v1540, %v1541
      %1822 = vadd.xlane.f32.xlu0 %v1821
      %v1823 = vpop.xlane.xlu0 %1822
      %v1824 = vadd.f32 %v1542, %v1543
      %1825 = vadd.xlane.f32.xlu0 %v1824
      %v1826 = vpop.xlane.xlu0 %1825
      %v1827 = vadd.f32 %v1544, %v1545
      %1828 = vadd.xlane.f32.xlu0 %v1827
      %v1829 = vpop.xlane.xlu0 %1828
      %v1830 = vadd.f32 %v1546, %v1547
      %1831 = vadd.xlane.f32.xlu0 %v1830
      %v1832 = vpop.xlane.xlu0 %1831
      %v1833 = vadd.f32 %v1548, %v1549
      %1834 = vadd.xlane.f32.xlu0 %v1833
      %v1835 = vpop.xlane.xlu0 %1834
      %v1836 = vadd.f32 %v1550, %v1551
      %1837 = vadd.xlane.f32.xlu0 %v1836
      %v1838 = vpop.xlane.xlu0 %1837
      %v1839 = vadd.f32 %v1552, %v1553
      %1840 = vadd.xlane.f32.xlu0 %v1839
      %v1841 = vpop.xlane.xlu0 %1840
      %v1842 = vadd.f32 %v1554, %v1555
      %1843 = vadd.xlane.f32.xlu0 %v1842
      %v1844 = vpop.xlane.xlu0 %1843
      %v1845 = vadd.f32 %v1556, %v1557
      %1846 = vadd.xlane.f32.xlu0 %v1845
      %v1847 = vpop.xlane.xlu0 %1846
      %v1848 = vadd.f32 %v1558, %v1559
      %1849 = vadd.xlane.f32.xlu0 %v1848
      %v1850 = vpop.xlane.xlu0 %1849
      %v1851 = vadd.f32 %v1560, %v1561
      %1852 = vadd.xlane.f32.xlu0 %v1851
      %v1853 = vpop.xlane.xlu0 %1852
      %v1854 = vadd.f32 %v1562, %v1563
      %1855 = vadd.xlane.f32.xlu0 %v1854
      %v1856 = vpop.xlane.xlu0 %1855
      %v1857 = vadd.f32 %v1564, %v1565
      %1858 = vadd.xlane.f32.xlu0 %v1857
      %v1859 = vpop.xlane.xlu0 %1858
      %v1860 = vadd.f32 %v1566, %v1567
      %1861 = vadd.xlane.f32.xlu0 %v1860
      %v1862 = vpop.xlane.xlu0 %1861
      %v1863 = vadd.f32 %v1568, %v1569
      %1864 = vadd.xlane.f32.xlu0 %v1863
      %v1865 = vpop.xlane.xlu0 %1864
      %v1866 = vadd.f32 %v1570, %v1571
      %1867 = vadd.xlane.f32.xlu0 %v1866
      %v1868 = vpop.xlane.xlu0 %1867
      %v1869 = vadd.f32 %v1572, %v1573
      %1870 = vadd.xlane.f32.xlu0 %v1869
      %v1871 = vpop.xlane.xlu0 %1870
      %v1872 = vadd.f32 %v1574, %v1575
      %1873 = vadd.xlane.f32.xlu0 %v1872
      %v1874 = vpop.xlane.xlu0 %1873
      %v1875 = vadd.f32 %v1576, %v1577
      %1876 = vadd.xlane.f32.xlu0 %v1875
      %v1877 = vpop.xlane.xlu0 %1876
      %v1878 = vrcp.pop 256.0
      %v1879 = vmul.f32 %v1580, %v1878
      %v1880 = vmul.f32 %v1583, %v1878
      %v1881 = vmul.f32 %v1586, %v1878
      %v1882 = vmul.f32 %v1589, %v1878
      %v1883 = vmul.f32 %v1592, %v1878
      %v1884 = vmul.f32 %v1595, %v1878
      %v1885 = vmul.f32 %v1598, %v1878
      %v1886 = vmul.f32 %v1601, %v1878
      %v1887 = vmul.f32 %v1604, %v1878
      %v1888 = vmul.f32 %v1607, %v1878
      %v1889 = vmul.f32 %v1610, %v1878
      %v1890 = vmul.f32 %v1613, %v1878
      %v1891 = vmul.f32 %v1616, %v1878
      %v1892 = vmul.f32 %v1619, %v1878
      %v1893 = vmul.f32 %v1622, %v1878
      %v1894 = vmul.f32 %v1625, %v1878
      %v1895 = vmul.f32 %v1628, %v1878
      %v1896 = vmul.f32 %v1631, %v1878
      %v1897 = vmul.f32 %v1634, %v1878
      %v1898 = vmul.f32 %v1637, %v1878
      %v1899 = vmul.f32 %v1640, %v1878
      %v1900 = vmul.f32 %v1643, %v1878
      %v1901 = vmul.f32 %v1646, %v1878
      %v1902 = vmul.f32 %v1649, %v1878
      %v1903 = vmul.f32 %v1652, %v1878
      %v1904 = vmul.f32 %v1655, %v1878
      %v1905 = vmul.f32 %v1658, %v1878
      %v1906 = vmul.f32 %v1661, %v1878
      %v1907 = vmul.f32 %v1664, %v1878
      %v1908 = vmul.f32 %v1667, %v1878
      %v1909 = vmul.f32 %v1670, %v1878
      %v1910 = vmul.f32 %v1673, %v1878
      %v1911 = vmul.f32 %v1676, %v1878
      %v1912 = vmul.f32 %v1679, %v1878
      %v1913 = vmul.f32 %v1682, %v1878
      %v1914 = vmul.f32 %v1685, %v1878
      %v1915 = vmul.f32 %v1688, %v1878
      %v1916 = vmul.f32 %v1691, %v1878
      %v1917 = vmul.f32 %v1694, %v1878
      %v1918 = vmul.f32 %v1697, %v1878
      %v1919 = vmul.f32 %v1700, %v1878
      %v1920 = vmul.f32 %v1703, %v1878
      %v1921 = vmul.f32 %v1706, %v1878
      %v1922 = vmul.f32 %v1709, %v1878
      %v1923 = vmul.f32 %v1712, %v1878
      %v1924 = vmul.f32 %v1715, %v1878
      %v1925 = vmul.f32 %v1718, %v1878
      %v1926 = vmul.f32 %v1721, %v1878
      %v1927 = vmul.f32 %v1724, %v1878
      %v1928 = vmul.f32 %v1727, %v1878
      %v1929 = vmul.f32 %v1730, %v1878
      %v1930 = vmul.f32 %v1733, %v1878
      %v1931 = vmul.f32 %v1736, %v1878
      %v1932 = vmul.f32 %v1739, %v1878
      %v1933 = vmul.f32 %v1742, %v1878
      %v1934 = vmul.f32 %v1745, %v1878
      %v1935 = vmul.f32 %v1748, %v1878
      %v1936 = vmul.f32 %v1751, %v1878
      %v1937 = vmul.f32 %v1754, %v1878
      %v1938 = vmul.f32 %v1757, %v1878
      %v1939 = vmul.f32 %v1760, %v1878
      %v1940 = vmul.f32 %v1763, %v1878
      %v1941 = vmul.f32 %v1766, %v1878
      %v1942 = vmul.f32 %v1769, %v1878
      %v1943 = vmul.f32 %v1772, %v1878
      %v1944 = vmul.f32 %v1775, %v1878
      %v1945 = vmul.f32 %v1778, %v1878
      %v1946 = vmul.f32 %v1781, %v1878
      %v1947 = vmul.f32 %v1784, %v1878
      %v1948 = vmul.f32 %v1787, %v1878
      %v1949 = vmul.f32 %v1790, %v1878
      %v1950 = vmul.f32 %v1793, %v1878
      %v1951 = vmul.f32 %v1796, %v1878
      %v1952 = vmul.f32 %v1799, %v1878
      %v1953 = vmul.f32 %v1802, %v1878
      %v1954 = vmul.f32 %v1805, %v1878
      %v1955 = vmul.f32 %v1808, %v1878
      %v1956 = vmul.f32 %v1811, %v1878
      %v1957 = vmul.f32 %v1814, %v1878
      %v1958 = vmul.f32 %v1817, %v1878
      %v1959 = vmul.f32 %v1820, %v1878
      %v1960 = vmul.f32 %v1823, %v1878
      %v1961 = vmul.f32 %v1826, %v1878
      %v1962 = vmul.f32 %v1829, %v1878
      %v1963 = vmul.f32 %v1832, %v1878
      %v1964 = vmul.f32 %v1835, %v1878
      %v1965 = vmul.f32 %v1838, %v1878
      %v1966 = vmul.f32 %v1841, %v1878
      %v1967 = vmul.f32 %v1844, %v1878
      %v1968 = vmul.f32 %v1847, %v1878
      %v1969 = vmul.f32 %v1850, %v1878
      %v1970 = vmul.f32 %v1853, %v1878
      %v1971 = vmul.f32 %v1856, %v1878
      %v1972 = vmul.f32 %v1859, %v1878
      %v1973 = vmul.f32 %v1862, %v1878
      %v1974 = vmul.f32 %v1865, %v1878
      %v1975 = vmul.f32 %v1868, %v1878
      %v1976 = vmul.f32 %v1871, %v1878
      %v1977 = vmul.f32 %v1874, %v1878
      %v1978 = vmul.f32 %v1877, %v1878
      %v1979 = vsub.f32 %v1378, %v1879
      %v1980 = vsub.f32 %v1379, %v1879
      %v1981 = vsub.f32 %v1380, %v1880
      %v1982 = vsub.f32 %v1381, %v1880
      %v1983 = vsub.f32 %v1382, %v1881
      %v1984 = vsub.f32 %v1383, %v1881
      %v1985 = vsub.f32 %v1384, %v1882
      %v1986 = vsub.f32 %v1385, %v1882
      %v1987 = vsub.f32 %v1386, %v1883
      %v1988 = vsub.f32 %v1387, %v1883
      %v1989 = vsub.f32 %v1388, %v1884
      %v1990 = vsub.f32 %v1389, %v1884
      %v1991 = vsub.f32 %v1390, %v1885
      %v1992 = vsub.f32 %v1391, %v1885
      %v1993 = vsub.f32 %v1392, %v1886
      %v1994 = vsub.f32 %v1393, %v1886
      %v1995 = vsub.f32 %v1394, %v1887
      %v1996 = vsub.f32 %v1395, %v1887
      %v1997 = vsub.f32 %v1396, %v1888
      %v1998 = vsub.f32 %v1397, %v1888
      %v1999 = vsub.f32 %v1398, %v1889
      %v2000 = vsub.f32 %v1399, %v1889
      %v2001 = vsub.f32 %v1400, %v1890
      %v2002 = vsub.f32 %v1401, %v1890
      %v2003 = vsub.f32 %v1402, %v1891
      %v2004 = vsub.f32 %v1403, %v1891
      %v2005 = vsub.f32 %v1404, %v1892
      %v2006 = vsub.f32 %v1405, %v1892
      %v2007 = vsub.f32 %v1406, %v1893
      %v2008 = vsub.f32 %v1407, %v1893
      %v2009 = vsub.f32 %v1408, %v1894
      %v2010 = vsub.f32 %v1409, %v1894
      %v2011 = vsub.f32 %v1410, %v1895
      %v2012 = vsub.f32 %v1411, %v1895
      %v2013 = vsub.f32 %v1412, %v1896
      %v2014 = vsub.f32 %v1413, %v1896
      %v2015 = vsub.f32 %v1414, %v1897
      %v2016 = vsub.f32 %v1415, %v1897
      %v2017 = vsub.f32 %v1416, %v1898
      %v2018 = vsub.f32 %v1417, %v1898
      %v2019 = vsub.f32 %v1418, %v1899
      %v2020 = vsub.f32 %v1419, %v1899
      %v2021 = vsub.f32 %v1420, %v1900
      %v2022 = vsub.f32 %v1421, %v1900
      %v2023 = vsub.f32 %v1422, %v1901
      %v2024 = vsub.f32 %v1423, %v1901
      %v2025 = vsub.f32 %v1424, %v1902
      %v2026 = vsub.f32 %v1425, %v1902
      %v2027 = vsub.f32 %v1426, %v1903
      %v2028 = vsub.f32 %v1427, %v1903
      %v2029 = vsub.f32 %v1428, %v1904
      %v2030 = vsub.f32 %v1429, %v1904
      %v2031 = vsub.f32 %v1430, %v1905
      %v2032 = vsub.f32 %v1431, %v1905
      %v2033 = vsub.f32 %v1432, %v1906
      %v2034 = vsub.f32 %v1433, %v1906
      %v2035 = vsub.f32 %v1434, %v1907
      %v2036 = vsub.f32 %v1435, %v1907
      %v2037 = vsub.f32 %v1436, %v1908
      %v2038 = vsub.f32 %v1437, %v1908
      %v2039 = vsub.f32 %v1438, %v1909
      %v2040 = vsub.f32 %v1439, %v1909
      %v2041 = vsub.f32 %v1440, %v1910
      %v2042 = vsub.f32 %v1441, %v1910
      %v2043 = vsub.f32 %v1442, %v1911
      %v2044 = vsub.f32 %v1443, %v1911
      %v2045 = vsub.f32 %v1444, %v1912
      %v2046 = vsub.f32 %v1445, %v1912
      %v2047 = vsub.f32 %v1446, %v1913
      %v2048 = vsub.f32 %v1447, %v1913
      %v2049 = vsub.f32 %v1448, %v1914
      %v2050 = vsub.f32 %v1449, %v1914
      %v2051 = vsub.f32 %v1450, %v1915
      %v2052 = vsub.f32 %v1451, %v1915
      %v2053 = vsub.f32 %v1452, %v1916
      %v2054 = vsub.f32 %v1453, %v1916
      %v2055 = vsub.f32 %v1454, %v1917
      %v2056 = vsub.f32 %v1455, %v1917
      %v2057 = vsub.f32 %v1456, %v1918
      %v2058 = vsub.f32 %v1457, %v1918
      %v2059 = vsub.f32 %v1458, %v1919
      %v2060 = vsub.f32 %v1459, %v1919
      %v2061 = vsub.f32 %v1460, %v1920
      %v2062 = vsub.f32 %v1461, %v1920
      %v2063 = vsub.f32 %v1462, %v1921
      %v2064 = vsub.f32 %v1463, %v1921
      %v2065 = vsub.f32 %v1464, %v1922
      %v2066 = vsub.f32 %v1465, %v1922
      %v2067 = vsub.f32 %v1466, %v1923
      %v2068 = vsub.f32 %v1467, %v1923
      %v2069 = vsub.f32 %v1468, %v1924
      %v2070 = vsub.f32 %v1469, %v1924
      %v2071 = vsub.f32 %v1470, %v1925
      %v2072 = vsub.f32 %v1471, %v1925
      %v2073 = vsub.f32 %v1472, %v1926
      %v2074 = vsub.f32 %v1473, %v1926
      %v2075 = vsub.f32 %v1474, %v1927
      %v2076 = vsub.f32 %v1475, %v1927
      %v2077 = vsub.f32 %v1476, %v1928
      %v2078 = vsub.f32 %v1477, %v1928
      %v2079 = vsub.f32 %v1478, %v1929
      %v2080 = vsub.f32 %v1479, %v1929
      %v2081 = vsub.f32 %v1480, %v1930
      %v2082 = vsub.f32 %v1481, %v1930
      %v2083 = vsub.f32 %v1482, %v1931
      %v2084 = vsub.f32 %v1483, %v1931
      %v2085 = vsub.f32 %v1484, %v1932
      %v2086 = vsub.f32 %v1485, %v1932
      %v2087 = vsub.f32 %v1486, %v1933
      %v2088 = vsub.f32 %v1487, %v1933
      %v2089 = vsub.f32 %v1488, %v1934
      %v2090 = vsub.f32 %v1489, %v1934
      %v2091 = vsub.f32 %v1490, %v1935
      %v2092 = vsub.f32 %v1491, %v1935
      %v2093 = vsub.f32 %v1492, %v1936
      %v2094 = vsub.f32 %v1493, %v1936
      %v2095 = vsub.f32 %v1494, %v1937
      %v2096 = vsub.f32 %v1495, %v1937
      %v2097 = vsub.f32 %v1496, %v1938
      %v2098 = vsub.f32 %v1497, %v1938
      %v2099 = vsub.f32 %v1498, %v1939
      %v2100 = vsub.f32 %v1499, %v1939
      %v2101 = vsub.f32 %v1500, %v1940
      %v2102 = vsub.f32 %v1501, %v1940
      %v2103 = vsub.f32 %v1502, %v1941
      %v2104 = vsub.f32 %v1503, %v1941
      %v2105 = vsub.f32 %v1504, %v1942
      %v2106 = vsub.f32 %v1505, %v1942
      %v2107 = vsub.f32 %v1506, %v1943
      %v2108 = vsub.f32 %v1507, %v1943
      %v2109 = vsub.f32 %v1508, %v1944
      %v2110 = vsub.f32 %v1509, %v1944
      %v2111 = vsub.f32 %v1510, %v1945
      %v2112 = vsub.f32 %v1511, %v1945
      %v2113 = vsub.f32 %v1512, %v1946
      %v2114 = vsub.f32 %v1513, %v1946
      %v2115 = vsub.f32 %v1514, %v1947
      %v2116 = vsub.f32 %v1515, %v1947
      %v2117 = vsub.f32 %v1516, %v1948
      %v2118 = vsub.f32 %v1517, %v1948
      %v2119 = vsub.f32 %v1518, %v1949
      %v2120 = vsub.f32 %v1519, %v1949
      %v2121 = vsub.f32 %v1520, %v1950
      %v2122 = vsub.f32 %v1521, %v1950
      %v2123 = vsub.f32 %v1522, %v1951
      %v2124 = vsub.f32 %v1523, %v1951
      %v2125 = vsub.f32 %v1524, %v1952
      %v2126 = vsub.f32 %v1525, %v1952
      %v2127 = vsub.f32 %v1526, %v1953
      %v2128 = vsub.f32 %v1527, %v1953
      %v2129 = vsub.f32 %v1528, %v1954
      %v2130 = vsub.f32 %v1529, %v1954
      %v2131 = vsub.f32 %v1530, %v1955
      %v2132 = vsub.f32 %v1531, %v1955
      %v2133 = vsub.f32 %v1532, %v1956
      %v2134 = vsub.f32 %v1533, %v1956
      %v2135 = vsub.f32 %v1534, %v1957
      %v2136 = vsub.f32 %v1535, %v1957
      %v2137 = vsub.f32 %v1536, %v1958
      %v2138 = vsub.f32 %v1537, %v1958
      %v2139 = vsub.f32 %v1538, %v1959
      %v2140 = vsub.f32 %v1539, %v1959
      %v2141 = vsub.f32 %v1540, %v1960
      %v2142 = vsub.f32 %v1541, %v1960
      %v2143 = vsub.f32 %v1542, %v1961
      %v2144 = vsub.f32 %v1543, %v1961
      %v2145 = vsub.f32 %v1544, %v1962
      %v2146 = vsub.f32 %v1545, %v1962
      %v2147 = vsub.f32 %v1546, %v1963
      %v2148 = vsub.f32 %v1547, %v1963
      %v2149 = vsub.f32 %v1548, %v1964
      %v2150 = vsub.f32 %v1549, %v1964
      %v2151 = vsub.f32 %v1550, %v1965
      %v2152 = vsub.f32 %v1551, %v1965
      %v2153 = vsub.f32 %v1552, %v1966
      %v2154 = vsub.f32 %v1553, %v1966
      %v2155 = vsub.f32 %v1554, %v1967
      %v2156 = vsub.f32 %v1555, %v1967
      %v2157 = vsub.f32 %v1556, %v1968
      %v2158 = vsub.f32 %v1557, %v1968
      %v2159 = vsub.f32 %v1558, %v1969
      %v2160 = vsub.f32 %v1559, %v1969
      %v2161 = vsub.f32 %v1560, %v1970
      %v2162 = vsub.f32 %v1561, %v1970
      %v2163 = vsub.f32 %v1562, %v1971
      %v2164 = vsub.f32 %v1563, %v1971
      %v2165 = vsub.f32 %v1564, %v1972
      %v2166 = vsub.f32 %v1565, %v1972
      %v2167 = vsub.f32 %v1566, %v1973
      %v2168 = vsub.f32 %v1567, %v1973
      %v2169 = vsub.f32 %v1568, %v1974
      %v2170 = vsub.f32 %v1569, %v1974
      %v2171 = vsub.f32 %v1570, %v1975
      %v2172 = vsub.f32 %v1571, %v1975
      %v2173 = vsub.f32 %v1572, %v1976
      %v2174 = vsub.f32 %v1573, %v1976
      %v2175 = vsub.f32 %v1574, %v1977
      %v2176 = vsub.f32 %v1575, %v1977
      %v2177 = vsub.f32 %v1576, %v1978
      %v2178 = vsub.f32 %v1577, %v1978
      %v2179 = vmul.f32 %v1979, %v1979
      %v2180 = vmul.f32 %v1980, %v1980
      %v2181 = vmul.f32 %v1981, %v1981
      %v2182 = vmul.f32 %v1982, %v1982
      %v2183 = vmul.f32 %v1983, %v1983
      %v2184 = vmul.f32 %v1984, %v1984
      %v2185 = vmul.f32 %v1985, %v1985
      %v2186 = vmul.f32 %v1986, %v1986
      %v2187 = vmul.f32 %v1987, %v1987
      %v2188 = vmul.f32 %v1988, %v1988
      %v2189 = vmul.f32 %v1989, %v1989
      %v2190 = vmul.f32 %v1990, %v1990
      %v2191 = vmul.f32 %v1991, %v1991
      %v2192 = vmul.f32 %v1992, %v1992
      %v2193 = vmul.f32 %v1993, %v1993
      %v2194 = vmul.f32 %v1994, %v1994
      %v2195 = vmul.f32 %v1995, %v1995
      %v2196 = vmul.f32 %v1996, %v1996
      %v2197 = vmul.f32 %v1997, %v1997
      %v2198 = vmul.f32 %v1998, %v1998
      %v2199 = vmul.f32 %v1999, %v1999
      %v2200 = vmul.f32 %v2000, %v2000
      %v2201 = vmul.f32 %v2001, %v2001
      %v2202 = vmul.f32 %v2002, %v2002
      %v2203 = vmul.f32 %v2003, %v2003
      %v2204 = vmul.f32 %v2004, %v2004
      %v2205 = vmul.f32 %v2005, %v2005
      %v2206 = vmul.f32 %v2006, %v2006
      %v2207 = vmul.f32 %v2007, %v2007
      %v2208 = vmul.f32 %v2008, %v2008
      %v2209 = vmul.f32 %v2009, %v2009
      %v2210 = vmul.f32 %v2010, %v2010
      %v2211 = vmul.f32 %v2011, %v2011
      %v2212 = vmul.f32 %v2012, %v2012
      %v2213 = vmul.f32 %v2013, %v2013
      %v2214 = vmul.f32 %v2014, %v2014
      %v2215 = vmul.f32 %v2015, %v2015
      %v2216 = vmul.f32 %v2016, %v2016
      %v2217 = vmul.f32 %v2017, %v2017
      %v2218 = vmul.f32 %v2018, %v2018
      %v2219 = vmul.f32 %v2019, %v2019
      %v2220 = vmul.f32 %v2020, %v2020
      %v2221 = vmul.f32 %v2021, %v2021
      %v2222 = vmul.f32 %v2022, %v2022
      %v2223 = vmul.f32 %v2023, %v2023
      %v2224 = vmul.f32 %v2024, %v2024
      %v2225 = vmul.f32 %v2025, %v2025
      %v2226 = vmul.f32 %v2026, %v2026
      %v2227 = vmul.f32 %v2027, %v2027
      %v2228 = vmul.f32 %v2028, %v2028
      %v2229 = vmul.f32 %v2029, %v2029
      %v2230 = vmul.f32 %v2030, %v2030
      %v2231 = vmul.f32 %v2031, %v2031
      %v2232 = vmul.f32 %v2032, %v2032
      %v2233 = vmul.f32 %v2033, %v2033
      %v2234 = vmul.f32 %v2034, %v2034
      %v2235 = vmul.f32 %v2035, %v2035
      %v2236 = vmul.f32 %v2036, %v2036
      %v2237 = vmul.f32 %v2037, %v2037
      %v2238 = vmul.f32 %v2038, %v2038
      %v2239 = vmul.f32 %v2039, %v2039
      %v2240 = vmul.f32 %v2040, %v2040
      %v2241 = vmul.f32 %v2041, %v2041
      %v2242 = vmul.f32 %v2042, %v2042
      %v2243 = vmul.f32 %v2043, %v2043
      %v2244 = vmul.f32 %v2044, %v2044
      %v2245 = vmul.f32 %v2045, %v2045
      %v2246 = vmul.f32 %v2046, %v2046
      %v2247 = vmul.f32 %v2047, %v2047
      %v2248 = vmul.f32 %v2048, %v2048
      %v2249 = vmul.f32 %v2049, %v2049
      %v2250 = vmul.f32 %v2050, %v2050
      %v2251 = vmul.f32 %v2051, %v2051
      %v2252 = vmul.f32 %v2052, %v2052
      %v2253 = vmul.f32 %v2053, %v2053
      %v2254 = vmul.f32 %v2054, %v2054
      %v2255 = vmul.f32 %v2055, %v2055
      %v2256 = vmul.f32 %v2056, %v2056
      %v2257 = vmul.f32 %v2057, %v2057
      %v2258 = vmul.f32 %v2058, %v2058
      %v2259 = vmul.f32 %v2059, %v2059
      %v2260 = vmul.f32 %v2060, %v2060
      %v2261 = vmul.f32 %v2061, %v2061
      %v2262 = vmul.f32 %v2062, %v2062
      %v2263 = vmul.f32 %v2063, %v2063
      %v2264 = vmul.f32 %v2064, %v2064
      %v2265 = vmul.f32 %v2065, %v2065
      %v2266 = vmul.f32 %v2066, %v2066
      %v2267 = vmul.f32 %v2067, %v2067
      %v2268 = vmul.f32 %v2068, %v2068
      %v2269 = vmul.f32 %v2069, %v2069
      %v2270 = vmul.f32 %v2070, %v2070
      %v2271 = vmul.f32 %v2071, %v2071
      %v2272 = vmul.f32 %v2072, %v2072
      %v2273 = vmul.f32 %v2073, %v2073
      %v2274 = vmul.f32 %v2074, %v2074
      %v2275 = vmul.f32 %v2075, %v2075
      %v2276 = vmul.f32 %v2076, %v2076
      %v2277 = vmul.f32 %v2077, %v2077
      %v2278 = vmul.f32 %v2078, %v2078
      %v2279 = vmul.f32 %v2079, %v2079
      %v2280 = vmul.f32 %v2080, %v2080
      %v2281 = vmul.f32 %v2081, %v2081
      %v2282 = vmul.f32 %v2082, %v2082
      %v2283 = vmul.f32 %v2083, %v2083
      %v2284 = vmul.f32 %v2084, %v2084
      %v2285 = vmul.f32 %v2085, %v2085
      %v2286 = vmul.f32 %v2086, %v2086
      %v2287 = vmul.f32 %v2087, %v2087
      %v2288 = vmul.f32 %v2088, %v2088
      %v2289 = vmul.f32 %v2089, %v2089
      %v2290 = vmul.f32 %v2090, %v2090
      %v2291 = vmul.f32 %v2091, %v2091
      %v2292 = vmul.f32 %v2092, %v2092
      %v2293 = vmul.f32 %v2093, %v2093
      %v2294 = vmul.f32 %v2094, %v2094
      %v2295 = vmul.f32 %v2095, %v2095
      %v2296 = vmul.f32 %v2096, %v2096
      %v2297 = vmul.f32 %v2097, %v2097
      %v2298 = vmul.f32 %v2098, %v2098
      %v2299 = vmul.f32 %v2099, %v2099
      %v2300 = vmul.f32 %v2100, %v2100
      %v2301 = vmul.f32 %v2101, %v2101
      %v2302 = vmul.f32 %v2102, %v2102
      %v2303 = vmul.f32 %v2103, %v2103
      %v2304 = vmul.f32 %v2104, %v2104
      %v2305 = vmul.f32 %v2105, %v2105
      %v2306 = vmul.f32 %v2106, %v2106
      %v2307 = vmul.f32 %v2107, %v2107
      %v2308 = vmul.f32 %v2108, %v2108
      %v2309 = vmul.f32 %v2109, %v2109
      %v2310 = vmul.f32 %v2110, %v2110
      %v2311 = vmul.f32 %v2111, %v2111
      %v2312 = vmul.f32 %v2112, %v2112
      %v2313 = vmul.f32 %v2113, %v2113
      %v2314 = vmul.f32 %v2114, %v2114
      %v2315 = vmul.f32 %v2115, %v2115
      %v2316 = vmul.f32 %v2116, %v2116
      %v2317 = vmul.f32 %v2117, %v2117
      %v2318 = vmul.f32 %v2118, %v2118
      %v2319 = vmul.f32 %v2119, %v2119
      %v2320 = vmul.f32 %v2120, %v2120
      %v2321 = vmul.f32 %v2121, %v2121
      %v2322 = vmul.f32 %v2122, %v2122
      %v2323 = vmul.f32 %v2123, %v2123
      %v2324 = vmul.f32 %v2124, %v2124
      %v2325 = vmul.f32 %v2125, %v2125
      %v2326 = vmul.f32 %v2126, %v2126
      %v2327 = vmul.f32 %v2127, %v2127
      %v2328 = vmul.f32 %v2128, %v2128
      %v2329 = vmul.f32 %v2129, %v2129
      %v2330 = vmul.f32 %v2130, %v2130
      %v2331 = vmul.f32 %v2131, %v2131
      %v2332 = vmul.f32 %v2132, %v2132
      %v2333 = vmul.f32 %v2133, %v2133
      %v2334 = vmul.f32 %v2134, %v2134
      %v2335 = vmul.f32 %v2135, %v2135
      %v2336 = vmul.f32 %v2136, %v2136
      %v2337 = vmul.f32 %v2137, %v2137
      %v2338 = vmul.f32 %v2138, %v2138
      %v2339 = vmul.f32 %v2139, %v2139
      %v2340 = vmul.f32 %v2140, %v2140
      %v2341 = vmul.f32 %v2141, %v2141
      %v2342 = vmul.f32 %v2142, %v2142
      %v2343 = vmul.f32 %v2143, %v2143
      %v2344 = vmul.f32 %v2144, %v2144
      %v2345 = vmul.f32 %v2145, %v2145
      %v2346 = vmul.f32 %v2146, %v2146
      %v2347 = vmul.f32 %v2147, %v2147
      %v2348 = vmul.f32 %v2148, %v2148
      %v2349 = vmul.f32 %v2149, %v2149
      %v2350 = vmul.f32 %v2150, %v2150
      %v2351 = vmul.f32 %v2151, %v2151
      %v2352 = vmul.f32 %v2152, %v2152
      %v2353 = vmul.f32 %v2153, %v2153
      %v2354 = vmul.f32 %v2154, %v2154
      %v2355 = vmul.f32 %v2155, %v2155
      %v2356 = vmul.f32 %v2156, %v2156
      %v2357 = vmul.f32 %v2157, %v2157
      %v2358 = vmul.f32 %v2158, %v2158
      %v2359 = vmul.f32 %v2159, %v2159
      %v2360 = vmul.f32 %v2160, %v2160
      %v2361 = vmul.f32 %v2161, %v2161
      %v2362 = vmul.f32 %v2162, %v2162
      %v2363 = vmul.f32 %v2163, %v2163
      %v2364 = vmul.f32 %v2164, %v2164
      %v2365 = vmul.f32 %v2165, %v2165
      %v2366 = vmul.f32 %v2166, %v2166
      %v2367 = vmul.f32 %v2167, %v2167
      %v2368 = vmul.f32 %v2168, %v2168
      %v2369 = vmul.f32 %v2169, %v2169
      %v2370 = vmul.f32 %v2170, %v2170
      %v2371 = vmul.f32 %v2171, %v2171
      %v2372 = vmul.f32 %v2172, %v2172
      %v2373 = vmul.f32 %v2173, %v2173
      %v2374 = vmul.f32 %v2174, %v2174
      %v2375 = vmul.f32 %v2175, %v2175
      %v2376 = vmul.f32 %v2176, %v2176
      %v2377 = vmul.f32 %v2177, %v2177
      %v2378 = vmul.f32 %v2178, %v2178
      %v2379 = vadd.f32 %v2179, %v2180
      %2380 = vadd.xlane.f32.xlu0 %v2379
      %v2381 = vpop.xlane.xlu0 %2380
      %v2382 = vadd.f32 %v2181, %v2182
      %2383 = vadd.xlane.f32.xlu0 %v2382
      %v2384 = vpop.xlane.xlu0 %2383
      %v2385 = vadd.f32 %v2183, %v2184
      %2386 = vadd.xlane.f32.xlu0 %v2385
      %v2387 = vpop.xlane.xlu0 %2386
      %v2388 = vadd.f32 %v2185, %v2186
      %2389 = vadd.xlane.f32.xlu0 %v2388
      %v2390 = vpop.xlane.xlu0 %2389
      %v2391 = vadd.f32 %v2187, %v2188
      %2392 = vadd.xlane.f32.xlu0 %v2391
      %v2393 = vpop.xlane.xlu0 %2392
      %v2394 = vadd.f32 %v2189, %v2190
      %2395 = vadd.xlane.f32.xlu0 %v2394
      %v2396 = vpop.xlane.xlu0 %2395
      %v2397 = vadd.f32 %v2191, %v2192
      %2398 = vadd.xlane.f32.xlu0 %v2397
      %v2399 = vpop.xlane.xlu0 %2398
      %v2400 = vadd.f32 %v2193, %v2194
      %2401 = vadd.xlane.f32.xlu0 %v2400
      %v2402 = vpop.xlane.xlu0 %2401
      %v2403 = vadd.f32 %v2195, %v2196
      %2404 = vadd.xlane.f32.xlu0 %v2403
      %v2405 = vpop.xlane.xlu0 %2404
      %v2406 = vadd.f32 %v2197, %v2198
      %2407 = vadd.xlane.f32.xlu0 %v2406
      %v2408 = vpop.xlane.xlu0 %2407
      %v2409 = vadd.f32 %v2199, %v2200
      %2410 = vadd.xlane.f32.xlu0 %v2409
      %v2411 = vpop.xlane.xlu0 %2410
      %v2412 = vadd.f32 %v2201, %v2202
      %2413 = vadd.xlane.f32.xlu0 %v2412
      %v2414 = vpop.xlane.xlu0 %2413
      %v2415 = vadd.f32 %v2203, %v2204
      %2416 = vadd.xlane.f32.xlu0 %v2415
      %v2417 = vpop.xlane.xlu0 %2416
      %v2418 = vadd.f32 %v2205, %v2206
      %2419 = vadd.xlane.f32.xlu0 %v2418
      %v2420 = vpop.xlane.xlu0 %2419
      %v2421 = vadd.f32 %v2207, %v2208
      %2422 = vadd.xlane.f32.xlu0 %v2421
      %v2423 = vpop.xlane.xlu0 %2422
      %v2424 = vadd.f32 %v2209, %v2210
      %2425 = vadd.xlane.f32.xlu0 %v2424
      %v2426 = vpop.xlane.xlu0 %2425
      %v2427 = vadd.f32 %v2211, %v2212
      %2428 = vadd.xlane.f32.xlu0 %v2427
      %v2429 = vpop.xlane.xlu0 %2428
      %v2430 = vadd.f32 %v2213, %v2214
      %2431 = vadd.xlane.f32.xlu0 %v2430
      %v2432 = vpop.xlane.xlu0 %2431
      %v2433 = vadd.f32 %v2215, %v2216
      %2434 = vadd.xlane.f32.xlu0 %v2433
      %v2435 = vpop.xlane.xlu0 %2434
      %v2436 = vadd.f32 %v2217, %v2218
      %2437 = vadd.xlane.f32.xlu0 %v2436
      %v2438 = vpop.xlane.xlu0 %2437
      %v2439 = vadd.f32 %v2219, %v2220
      %2440 = vadd.xlane.f32.xlu0 %v2439
      %v2441 = vpop.xlane.xlu0 %2440
      %v2442 = vadd.f32 %v2221, %v2222
      %2443 = vadd.xlane.f32.xlu0 %v2442
      %v2444 = vpop.xlane.xlu0 %2443
      %v2445 = vadd.f32 %v2223, %v2224
      %2446 = vadd.xlane.f32.xlu0 %v2445
      %v2447 = vpop.xlane.xlu0 %2446
      %v2448 = vadd.f32 %v2225, %v2226
      %2449 = vadd.xlane.f32.xlu0 %v2448
      %v2450 = vpop.xlane.xlu0 %2449
      %v2451 = vadd.f32 %v2227, %v2228
      %2452 = vadd.xlane.f32.xlu0 %v2451
      %v2453 = vpop.xlane.xlu0 %2452
      %v2454 = vadd.f32 %v2229, %v2230
      %2455 = vadd.xlane.f32.xlu0 %v2454
      %v2456 = vpop.xlane.xlu0 %2455
      %v2457 = vadd.f32 %v2231, %v2232
      %2458 = vadd.xlane.f32.xlu0 %v2457
      %v2459 = vpop.xlane.xlu0 %2458
      %v2460 = vadd.f32 %v2233, %v2234
      %2461 = vadd.xlane.f32.xlu0 %v2460
      %v2462 = vpop.xlane.xlu0 %2461
      %v2463 = vadd.f32 %v2235, %v2236
      %2464 = vadd.xlane.f32.xlu0 %v2463
      %v2465 = vpop.xlane.xlu0 %2464
      %v2466 = vadd.f32 %v2237, %v2238
      %2467 = vadd.xlane.f32.xlu0 %v2466
      %v2468 = vpop.xlane.xlu0 %2467
      %v2469 = vadd.f32 %v2239, %v2240
      %2470 = vadd.xlane.f32.xlu0 %v2469
      %v2471 = vpop.xlane.xlu0 %2470
      %v2472 = vadd.f32 %v2241, %v2242
      %2473 = vadd.xlane.f32.xlu0 %v2472
      %v2474 = vpop.xlane.xlu0 %2473
      %v2475 = vadd.f32 %v2243, %v2244
      %2476 = vadd.xlane.f32.xlu0 %v2475
      %v2477 = vpop.xlane.xlu0 %2476
      %v2478 = vadd.f32 %v2245, %v2246
      %2479 = vadd.xlane.f32.xlu0 %v2478
      %v2480 = vpop.xlane.xlu0 %2479
      %v2481 = vadd.f32 %v2247, %v2248
      %2482 = vadd.xlane.f32.xlu0 %v2481
      %v2483 = vpop.xlane.xlu0 %2482
      %v2484 = vadd.f32 %v2249, %v2250
      %2485 = vadd.xlane.f32.xlu0 %v2484
      %v2486 = vpop.xlane.xlu0 %2485
      %v2487 = vadd.f32 %v2251, %v2252
      %2488 = vadd.xlane.f32.xlu0 %v2487
      %v2489 = vpop.xlane.xlu0 %2488
      %v2490 = vadd.f32 %v2253, %v2254
      %2491 = vadd.xlane.f32.xlu0 %v2490
      %v2492 = vpop.xlane.xlu0 %2491
      %v2493 = vadd.f32 %v2255, %v2256
      %2494 = vadd.xlane.f32.xlu0 %v2493
      %v2495 = vpop.xlane.xlu0 %2494
      %v2496 = vadd.f32 %v2257, %v2258
      %2497 = vadd.xlane.f32.xlu0 %v2496
      %v2498 = vpop.xlane.xlu0 %2497
      %v2499 = vadd.f32 %v2259, %v2260
      %2500 = vadd.xlane.f32.xlu0 %v2499
      %v2501 = vpop.xlane.xlu0 %2500
      %v2502 = vadd.f32 %v2261, %v2262
      %2503 = vadd.xlane.f32.xlu0 %v2502
      %v2504 = vpop.xlane.xlu0 %2503
      %v2505 = vadd.f32 %v2263, %v2264
      %2506 = vadd.xlane.f32.xlu0 %v2505
      %v2507 = vpop.xlane.xlu0 %2506
      %v2508 = vadd.f32 %v2265, %v2266
      %2509 = vadd.xlane.f32.xlu0 %v2508
      %v2510 = vpop.xlane.xlu0 %2509
      %v2511 = vadd.f32 %v2267, %v2268
      %2512 = vadd.xlane.f32.xlu0 %v2511
      %v2513 = vpop.xlane.xlu0 %2512
      %v2514 = vadd.f32 %v2269, %v2270
      %2515 = vadd.xlane.f32.xlu0 %v2514
      %v2516 = vpop.xlane.xlu0 %2515
      %v2517 = vadd.f32 %v2271, %v2272
      %2518 = vadd.xlane.f32.xlu0 %v2517
      %v2519 = vpop.xlane.xlu0 %2518
      %v2520 = vadd.f32 %v2273, %v2274
      %2521 = vadd.xlane.f32.xlu0 %v2520
      %v2522 = vpop.xlane.xlu0 %2521
      %v2523 = vadd.f32 %v2275, %v2276
      %2524 = vadd.xlane.f32.xlu0 %v2523
      %v2525 = vpop.xlane.xlu0 %2524
      %v2526 = vadd.f32 %v2277, %v2278
      %2527 = vadd.xlane.f32.xlu0 %v2526
      %v2528 = vpop.xlane.xlu0 %2527
      %v2529 = vadd.f32 %v2279, %v2280
      %2530 = vadd.xlane.f32.xlu0 %v2529
      %v2531 = vpop.xlane.xlu0 %2530
      %v2532 = vadd.f32 %v2281, %v2282
      %2533 = vadd.xlane.f32.xlu0 %v2532
      %v2534 = vpop.xlane.xlu0 %2533
      %v2535 = vadd.f32 %v2283, %v2284
      %2536 = vadd.xlane.f32.xlu0 %v2535
      %v2537 = vpop.xlane.xlu0 %2536
      %v2538 = vadd.f32 %v2285, %v2286
      %2539 = vadd.xlane.f32.xlu0 %v2538
      %v2540 = vpop.xlane.xlu0 %2539
      %v2541 = vadd.f32 %v2287, %v2288
      %2542 = vadd.xlane.f32.xlu0 %v2541
      %v2543 = vpop.xlane.xlu0 %2542
      %v2544 = vadd.f32 %v2289, %v2290
      %2545 = vadd.xlane.f32.xlu0 %v2544
      %v2546 = vpop.xlane.xlu0 %2545
      %v2547 = vadd.f32 %v2291, %v2292
      %2548 = vadd.xlane.f32.xlu0 %v2547
      %v2549 = vpop.xlane.xlu0 %2548
      %v2550 = vadd.f32 %v2293, %v2294
      %2551 = vadd.xlane.f32.xlu0 %v2550
      %v2552 = vpop.xlane.xlu0 %2551
      %v2553 = vadd.f32 %v2295, %v2296
      %2554 = vadd.xlane.f32.xlu0 %v2553
      %v2555 = vpop.xlane.xlu0 %2554
      %v2556 = vadd.f32 %v2297, %v2298
      %2557 = vadd.xlane.f32.xlu0 %v2556
      %v2558 = vpop.xlane.xlu0 %2557
      %v2559 = vadd.f32 %v2299, %v2300
      %2560 = vadd.xlane.f32.xlu0 %v2559
      %v2561 = vpop.xlane.xlu0 %2560
      %v2562 = vadd.f32 %v2301, %v2302
      %2563 = vadd.xlane.f32.xlu0 %v2562
      %v2564 = vpop.xlane.xlu0 %2563
      %v2565 = vadd.f32 %v2303, %v2304
      %2566 = vadd.xlane.f32.xlu0 %v2565
      %v2567 = vpop.xlane.xlu0 %2566
      %v2568 = vadd.f32 %v2305, %v2306
      %2569 = vadd.xlane.f32.xlu0 %v2568
      %v2570 = vpop.xlane.xlu0 %2569
      %v2571 = vadd.f32 %v2307, %v2308
      %2572 = vadd.xlane.f32.xlu0 %v2571
      %v2573 = vpop.xlane.xlu0 %2572
      %v2574 = vadd.f32 %v2309, %v2310
      %2575 = vadd.xlane.f32.xlu0 %v2574
      %v2576 = vpop.xlane.xlu0 %2575
      %v2577 = vadd.f32 %v2311, %v2312
      %2578 = vadd.xlane.f32.xlu0 %v2577
      %v2579 = vpop.xlane.xlu0 %2578
      %v2580 = vadd.f32 %v2313, %v2314
      %2581 = vadd.xlane.f32.xlu0 %v2580
      %v2582 = vpop.xlane.xlu0 %2581
      %v2583 = vadd.f32 %v2315, %v2316
      %2584 = vadd.xlane.f32.xlu0 %v2583
      %v2585 = vpop.xlane.xlu0 %2584
      %v2586 = vadd.f32 %v2317, %v2318
      %2587 = vadd.xlane.f32.xlu0 %v2586
      %v2588 = vpop.xlane.xlu0 %2587
      %v2589 = vadd.f32 %v2319, %v2320
      %2590 = vadd.xlane.f32.xlu0 %v2589
      %v2591 = vpop.xlane.xlu0 %2590
      %v2592 = vadd.f32 %v2321, %v2322
      %2593 = vadd.xlane.f32.xlu0 %v2592
      %v2594 = vpop.xlane.xlu0 %2593
      %v2595 = vadd.f32 %v2323, %v2324
      %2596 = vadd.xlane.f32.xlu0 %v2595
      %v2597 = vpop.xlane.xlu0 %2596
      %v2598 = vadd.f32 %v2325, %v2326
      %2599 = vadd.xlane.f32.xlu0 %v2598
      %v2600 = vpop.xlane.xlu0 %2599
      %v2601 = vadd.f32 %v2327, %v2328
      %2602 = vadd.xlane.f32.xlu0 %v2601
      %v2603 = vpop.xlane.xlu0 %2602
      %v2604 = vadd.f32 %v2329, %v2330
      %2605 = vadd.xlane.f32.xlu0 %v2604
      %v2606 = vpop.xlane.xlu0 %2605
      %v2607 = vadd.f32 %v2331, %v2332
      %2608 = vadd.xlane.f32.xlu0 %v2607
      %v2609 = vpop.xlane.xlu0 %2608
      %v2610 = vadd.f32 %v2333, %v2334
      %2611 = vadd.xlane.f32.xlu0 %v2610
      %v2612 = vpop.xlane.xlu0 %2611
      %v2613 = vadd.f32 %v2335, %v2336
      %2614 = vadd.xlane.f32.xlu0 %v2613
      %v2615 = vpop.xlane.xlu0 %2614
      %v2616 = vadd.f32 %v2337, %v2338
      %2617 = vadd.xlane.f32.xlu0 %v2616
      %v2618 = vpop.xlane.xlu0 %2617
      %v2619 = vadd.f32 %v2339, %v2340
      %2620 = vadd.xlane.f32.xlu0 %v2619
      %v2621 = vpop.xlane.xlu0 %2620
      %v2622 = vadd.f32 %v2341, %v2342
      %2623 = vadd.xlane.f32.xlu0 %v2622
      %v2624 = vpop.xlane.xlu0 %2623
      %v2625 = vadd.f32 %v2343, %v2344
      %2626 = vadd.xlane.f32.xlu0 %v2625
      %v2627 = vpop.xlane.xlu0 %2626
      %v2628 = vadd.f32 %v2345, %v2346
      %2629 = vadd.xlane.f32.xlu0 %v2628
      %v2630 = vpop.xlane.xlu0 %2629
      %v2631 = vadd.f32 %v2347, %v2348
      %2632 = vadd.xlane.f32.xlu0 %v2631
      %v2633 = vpop.xlane.xlu0 %2632
      %v2634 = vadd.f32 %v2349, %v2350
      %2635 = vadd.xlane.f32.xlu0 %v2634
      %v2636 = vpop.xlane.xlu0 %2635
      %v2637 = vadd.f32 %v2351, %v2352
      %2638 = vadd.xlane.f32.xlu0 %v2637
      %v2639 = vpop.xlane.xlu0 %2638
      %v2640 = vadd.f32 %v2353, %v2354
      %2641 = vadd.xlane.f32.xlu0 %v2640
      %v2642 = vpop.xlane.xlu0 %2641
      %v2643 = vadd.f32 %v2355, %v2356
      %2644 = vadd.xlane.f32.xlu0 %v2643
      %v2645 = vpop.xlane.xlu0 %2644
      %v2646 = vadd.f32 %v2357, %v2358
      %2647 = vadd.xlane.f32.xlu0 %v2646
      %v2648 = vpop.xlane.xlu0 %2647
      %v2649 = vadd.f32 %v2359, %v2360
      %2650 = vadd.xlane.f32.xlu0 %v2649
      %v2651 = vpop.xlane.xlu0 %2650
      %v2652 = vadd.f32 %v2361, %v2362
      %2653 = vadd.xlane.f32.xlu0 %v2652
      %v2654 = vpop.xlane.xlu0 %2653
      %v2655 = vadd.f32 %v2363, %v2364
      %2656 = vadd.xlane.f32.xlu0 %v2655
      %v2657 = vpop.xlane.xlu0 %2656
      %v2658 = vadd.f32 %v2365, %v2366
      %2659 = vadd.xlane.f32.xlu0 %v2658
      %v2660 = vpop.xlane.xlu0 %2659
      %v2661 = vadd.f32 %v2367, %v2368
      %2662 = vadd.xlane.f32.xlu0 %v2661
      %v2663 = vpop.xlane.xlu0 %2662
      %v2664 = vadd.f32 %v2369, %v2370
      %2665 = vadd.xlane.f32.xlu0 %v2664
      %v2666 = vpop.xlane.xlu0 %2665
      %v2667 = vadd.f32 %v2371, %v2372
      %2668 = vadd.xlane.f32.xlu0 %v2667
      %v2669 = vpop.xlane.xlu0 %2668
      %v2670 = vadd.f32 %v2373, %v2374
      %2671 = vadd.xlane.f32.xlu0 %v2670
      %v2672 = vpop.xlane.xlu0 %2671
      %v2673 = vadd.f32 %v2375, %v2376
      %2674 = vadd.xlane.f32.xlu0 %v2673
      %v2675 = vpop.xlane.xlu0 %2674
      %v2676 = vadd.f32 %v2377, %v2378
      %2677 = vadd.xlane.f32.xlu0 %v2676
      %v2678 = vpop.xlane.xlu0 %2677
      %v2679 = vmul.f32 %v2381, %v1878
      %v2680 = vmul.f32 %v2384, %v1878
      %v2681 = vmul.f32 %v2387, %v1878
      %v2682 = vmul.f32 %v2390, %v1878
      %v2683 = vmul.f32 %v2393, %v1878
      %v2684 = vmul.f32 %v2396, %v1878
      %v2685 = vmul.f32 %v2399, %v1878
      %v2686 = vmul.f32 %v2402, %v1878
      %v2687 = vmul.f32 %v2405, %v1878
      %v2688 = vmul.f32 %v2408, %v1878
      %v2689 = vmul.f32 %v2411, %v1878
      %v2690 = vmul.f32 %v2414, %v1878
      %v2691 = vmul.f32 %v2417, %v1878
      %v2692 = vmul.f32 %v2420, %v1878
      %v2693 = vmul.f32 %v2423, %v1878
      %v2694 = vmul.f32 %v2426, %v1878
      %v2695 = vmul.f32 %v2429, %v1878
      %v2696 = vmul.f32 %v2432, %v1878
      %v2697 = vmul.f32 %v2435, %v1878
      %v2698 = vmul.f32 %v2438, %v1878
      %v2699 = vmul.f32 %v2441, %v1878
      %v2700 = vmul.f32 %v2444, %v1878
      %v2701 = vmul.f32 %v2447, %v1878
      %v2702 = vmul.f32 %v2450, %v1878
      %v2703 = vmul.f32 %v2453, %v1878
      %v2704 = vmul.f32 %v2456, %v1878
      %v2705 = vmul.f32 %v2459, %v1878
      %v2706 = vmul.f32 %v2462, %v1878
      %v2707 = vmul.f32 %v2465, %v1878
      %v2708 = vmul.f32 %v2468, %v1878
      %v2709 = vmul.f32 %v2471, %v1878
      %v2710 = vmul.f32 %v2474, %v1878
      %v2711 = vmul.f32 %v2477, %v1878
      %v2712 = vmul.f32 %v2480, %v1878
      %v2713 = vmul.f32 %v2483, %v1878
      %v2714 = vmul.f32 %v2486, %v1878
      %v2715 = vmul.f32 %v2489, %v1878
      %v2716 = vmul.f32 %v2492, %v1878
      %v2717 = vmul.f32 %v2495, %v1878
      %v2718 = vmul.f32 %v2498, %v1878
      %v2719 = vmul.f32 %v2501, %v1878
      %v2720 = vmul.f32 %v2504, %v1878
      %v2721 = vmul.f32 %v2507, %v1878
      %v2722 = vmul.f32 %v2510, %v1878
      %v2723 = vmul.f32 %v2513, %v1878
      %v2724 = vmul.f32 %v2516, %v1878
      %v2725 = vmul.f32 %v2519, %v1878
      %v2726 = vmul.f32 %v2522, %v1878
      %v2727 = vmul.f32 %v2525, %v1878
      %v2728 = vmul.f32 %v2528, %v1878
      %v2729 = vmul.f32 %v2531, %v1878
      %v2730 = vmul.f32 %v2534, %v1878
      %v2731 = vmul.f32 %v2537, %v1878
      %v2732 = vmul.f32 %v2540, %v1878
      %v2733 = vmul.f32 %v2543, %v1878
      %v2734 = vmul.f32 %v2546, %v1878
      %v2735 = vmul.f32 %v2549, %v1878
      %v2736 = vmul.f32 %v2552, %v1878
      %v2737 = vmul.f32 %v2555, %v1878
      %v2738 = vmul.f32 %v2558, %v1878
      %v2739 = vmul.f32 %v2561, %v1878
      %v2740 = vmul.f32 %v2564, %v1878
      %v2741 = vmul.f32 %v2567, %v1878
      %v2742 = vmul.f32 %v2570, %v1878
      %v2743 = vmul.f32 %v2573, %v1878
      %v2744 = vmul.f32 %v2576, %v1878
      %v2745 = vmul.f32 %v2579, %v1878
      %v2746 = vmul.f32 %v2582, %v1878
      %v2747 = vmul.f32 %v2585, %v1878
      %v2748 = vmul.f32 %v2588, %v1878
      %v2749 = vmul.f32 %v2591, %v1878
      %v2750 = vmul.f32 %v2594, %v1878
      %v2751 = vmul.f32 %v2597, %v1878
      %v2752 = vmul.f32 %v2600, %v1878
      %v2753 = vmul.f32 %v2603, %v1878
      %v2754 = vmul.f32 %v2606, %v1878
      %v2755 = vmul.f32 %v2609, %v1878
      %v2756 = vmul.f32 %v2612, %v1878
      %v2757 = vmul.f32 %v2615, %v1878
      %v2758 = vmul.f32 %v2618, %v1878
      %v2759 = vmul.f32 %v2621, %v1878
      %v2760 = vmul.f32 %v2624, %v1878
      %v2761 = vmul.f32 %v2627, %v1878
      %v2762 = vmul.f32 %v2630, %v1878
      %v2763 = vmul.f32 %v2633, %v1878
      %v2764 = vmul.f32 %v2636, %v1878
      %v2765 = vmul.f32 %v2639, %v1878
      %v2766 = vmul.f32 %v2642, %v1878
      %v2767 = vmul.f32 %v2645, %v1878
      %v2768 = vmul.f32 %v2648, %v1878
      %v2769 = vmul.f32 %v2651, %v1878
      %v2770 = vmul.f32 %v2654, %v1878
      %v2771 = vmul.f32 %v2657, %v1878
      %v2772 = vmul.f32 %v2660, %v1878
      %v2773 = vmul.f32 %v2663, %v1878
      %v2774 = vmul.f32 %v2666, %v1878
      %v2775 = vmul.f32 %v2669, %v1878
      %v2776 = vmul.f32 %v2672, %v1878
      %v2777 = vmul.f32 %v2675, %v1878
      %v2778 = vmul.f32 %v2678, %v1878
      %v2779 = vadd.f32 %v2679, 1e-05
      %v2780 = vadd.f32 %v2680, 1e-05
      %v2781 = vadd.f32 %v2681, 1e-05
      %v2782 = vadd.f32 %v2682, 1e-05
      %v2783 = vadd.f32 %v2683, 1e-05
      %v2784 = vadd.f32 %v2684, 1e-05
      %v2785 = vadd.f32 %v2685, 1e-05
      %v2786 = vadd.f32 %v2686, 1e-05
      %v2787 = vadd.f32 %v2687, 1e-05
      %v2788 = vadd.f32 %v2688, 1e-05
      %v2789 = vadd.f32 %v2689, 1e-05
      %v2790 = vadd.f32 %v2690, 1e-05
      %v2791 = vadd.f32 %v2691, 1e-05
      %v2792 = vadd.f32 %v2692, 1e-05
      %v2793 = vadd.f32 %v2693, 1e-05
      %v2794 = vadd.f32 %v2694, 1e-05
      %v2795 = vadd.f32 %v2695, 1e-05
      %v2796 = vadd.f32 %v2696, 1e-05
      %v2797 = vadd.f32 %v2697, 1e-05
      %v2798 = vadd.f32 %v2698, 1e-05
      %v2799 = vadd.f32 %v2699, 1e-05
      %v2800 = vadd.f32 %v2700, 1e-05
      %v2801 = vadd.f32 %v2701, 1e-05
      %v2802 = vadd.f32 %v2702, 1e-05
      %v2803 = vadd.f32 %v2703, 1e-05
      %v2804 = vadd.f32 %v2704, 1e-05
      %v2805 = vadd.f32 %v2705, 1e-05
      %v2806 = vadd.f32 %v2706, 1e-05
      %v2807 = vadd.f32 %v2707, 1e-05
      %v2808 = vadd.f32 %v2708, 1e-05
      %v2809 = vadd.f32 %v2709, 1e-05
      %v2810 = vadd.f32 %v2710, 1e-05
      %v2811 = vadd.f32 %v2711, 1e-05
      %v2812 = vadd.f32 %v2712, 1e-05
      %v2813 = vadd.f32 %v2713, 1e-05
      %v2814 = vadd.f32 %v2714, 1e-05
      %v2815 = vadd.f32 %v2715, 1e-05
      %v2816 = vadd.f32 %v2716, 1e-05
      %v2817 = vadd.f32 %v2717, 1e-05
      %v2818 = vadd.f32 %v2718, 1e-05
      %v2819 = vadd.f32 %v2719, 1e-05
      %v2820 = vadd.f32 %v2720, 1e-05
      %v2821 = vadd.f32 %v2721, 1e-05
      %v2822 = vadd.f32 %v2722, 1e-05
      %v2823 = vadd.f32 %v2723, 1e-05
      %v2824 = vadd.f32 %v2724, 1e-05
      %v2825 = vadd.f32 %v2725, 1e-05
      %v2826 = vadd.f32 %v2726, 1e-05
      %v2827 = vadd.f32 %v2727, 1e-05
      %v2828 = vadd.f32 %v2728, 1e-05
      %v2829 = vadd.f32 %v2729, 1e-05
      %v2830 = vadd.f32 %v2730, 1e-05
      %v2831 = vadd.f32 %v2731, 1e-05
      %v2832 = vadd.f32 %v2732, 1e-05
      %v2833 = vadd.f32 %v2733, 1e-05
      %v2834 = vadd.f32 %v2734, 1e-05
      %v2835 = vadd.f32 %v2735, 1e-05
      %v2836 = vadd.f32 %v2736, 1e-05
      %v2837 = vadd.f32 %v2737, 1e-05
      %v2838 = vadd.f32 %v2738, 1e-05
      %v2839 = vadd.f32 %v2739, 1e-05
      %v2840 = vadd.f32 %v2740, 1e-05
      %v2841 = vadd.f32 %v2741, 1e-05
      %v2842 = vadd.f32 %v2742, 1e-05
      %v2843 = vadd.f32 %v2743, 1e-05
      %v2844 = vadd.f32 %v2744, 1e-05
      %v2845 = vadd.f32 %v2745, 1e-05
      %v2846 = vadd.f32 %v2746, 1e-05
      %v2847 = vadd.f32 %v2747, 1e-05
      %v2848 = vadd.f32 %v2748, 1e-05
      %v2849 = vadd.f32 %v2749, 1e-05
      %v2850 = vadd.f32 %v2750, 1e-05
      %v2851 = vadd.f32 %v2751, 1e-05
      %v2852 = vadd.f32 %v2752, 1e-05
      %v2853 = vadd.f32 %v2753, 1e-05
      %v2854 = vadd.f32 %v2754, 1e-05
      %v2855 = vadd.f32 %v2755, 1e-05
      %v2856 = vadd.f32 %v2756, 1e-05
      %v2857 = vadd.f32 %v2757, 1e-05
      %v2858 = vadd.f32 %v2758, 1e-05
      %v2859 = vadd.f32 %v2759, 1e-05
      %v2860 = vadd.f32 %v2760, 1e-05
      %v2861 = vadd.f32 %v2761, 1e-05
      %v2862 = vadd.f32 %v2762, 1e-05
      %v2863 = vadd.f32 %v2763, 1e-05
      %v2864 = vadd.f32 %v2764, 1e-05
      %v2865 = vadd.f32 %v2765, 1e-05
      %v2866 = vadd.f32 %v2766, 1e-05
      %v2867 = vadd.f32 %v2767, 1e-05
      %v2868 = vadd.f32 %v2768, 1e-05
      %v2869 = vadd.f32 %v2769, 1e-05
      %v2870 = vadd.f32 %v2770, 1e-05
      %v2871 = vadd.f32 %v2771, 1e-05
      %v2872 = vadd.f32 %v2772, 1e-05
      %v2873 = vadd.f32 %v2773, 1e-05
      %v2874 = vadd.f32 %v2774, 1e-05
      %v2875 = vadd.f32 %v2775, 1e-05
      %v2876 = vadd.f32 %v2776, 1e-05
      %v2877 = vadd.f32 %v2777, 1e-05
      %v2878 = vadd.f32 %v2778, 1e-05
      %v2879 = vrsqrt.pop %v2779
      %v2880 = vrsqrt.pop %v2780
      %v2881 = vrsqrt.pop %v2781
      %v2882 = vrsqrt.pop %v2782
      %v2883 = vrsqrt.pop %v2783
      %v2884 = vrsqrt.pop %v2784
      %v2885 = vrsqrt.pop %v2785
      %v2886 = vrsqrt.pop %v2786
      %v2887 = vrsqrt.pop %v2787
      %v2888 = vrsqrt.pop %v2788
      %v2889 = vrsqrt.pop %v2789
      %v2890 = vrsqrt.pop %v2790
      %v2891 = vrsqrt.pop %v2791
      %v2892 = vrsqrt.pop %v2792
      %v2893 = vrsqrt.pop %v2793
      %v2894 = vrsqrt.pop %v2794
      %v2895 = vrsqrt.pop %v2795
      %v2896 = vrsqrt.pop %v2796
      %v2897 = vrsqrt.pop %v2797
      %v2898 = vrsqrt.pop %v2798
      %v2899 = vrsqrt.pop %v2799
      %v2900 = vrsqrt.pop %v2800
      %v2901 = vrsqrt.pop %v2801
      %v2902 = vrsqrt.pop %v2802
      %v2903 = vrsqrt.pop %v2803
      %v2904 = vrsqrt.pop %v2804
      %v2905 = vrsqrt.pop %v2805
      %v2906 = vrsqrt.pop %v2806
      %v2907 = vrsqrt.pop %v2807
      %v2908 = vrsqrt.pop %v2808
      %v2909 = vrsqrt.pop %v2809
      %v2910 = vrsqrt.pop %v2810
      %v2911 = vrsqrt.pop %v2811
      %v2912 = vrsqrt.pop %v2812
      %v2913 = vrsqrt.pop %v2813
      %v2914 = vrsqrt.pop %v2814
      %v2915 = vrsqrt.pop %v2815
      %v2916 = vrsqrt.pop %v2816
      %v2917 = vrsqrt.pop %v2817
      %v2918 = vrsqrt.pop %v2818
      %v2919 = vrsqrt.pop %v2819
      %v2920 = vrsqrt.pop %v2820
      %v2921 = vrsqrt.pop %v2821
      %v2922 = vrsqrt.pop %v2822
      %v2923 = vrsqrt.pop %v2823
      %v2924 = vrsqrt.pop %v2824
      %v2925 = vrsqrt.pop %v2825
      %v2926 = vrsqrt.pop %v2826
      %v2927 = vrsqrt.pop %v2827
      %v2928 = vrsqrt.pop %v2828
      %v2929 = vrsqrt.pop %v2829
      %v2930 = vrsqrt.pop %v2830
      %v2931 = vrsqrt.pop %v2831
      %v2932 = vrsqrt.pop %v2832
      %v2933 = vrsqrt.pop %v2833
      %v2934 = vrsqrt.pop %v2834
      %v2935 = vrsqrt.pop %v2835
      %v2936 = vrsqrt.pop %v2836
      %v2937 = vrsqrt.pop %v2837
      %v2938 = vrsqrt.pop %v2838
      %v2939 = vrsqrt.pop %v2839
      %v2940 = vrsqrt.pop %v2840
      %v2941 = vrsqrt.pop %v2841
      %v2942 = vrsqrt.pop %v2842
      %v2943 = vrsqrt.pop %v2843
      %v2944 = vrsqrt.pop %v2844
      %v2945 = vrsqrt.pop %v2845
      %v2946 = vrsqrt.pop %v2846
      %v2947 = vrsqrt.pop %v2847
      %v2948 = vrsqrt.pop %v2848
      %v2949 = vrsqrt.pop %v2849
      %v2950 = vrsqrt.pop %v2850
      %v2951 = vrsqrt.pop %v2851
      %v2952 = vrsqrt.pop %v2852
      %v2953 = vrsqrt.pop %v2853
      %v2954 = vrsqrt.pop %v2854
      %v2955 = vrsqrt.pop %v2855
      %v2956 = vrsqrt.pop %v2856
      %v2957 = vrsqrt.pop %v2857
      %v2958 = vrsqrt.pop %v2858
      %v2959 = vrsqrt.pop %v2859
      %v2960 = vrsqrt.pop %v2860
      %v2961 = vrsqrt.pop %v2861
      %v2962 = vrsqrt.pop %v2862
      %v2963 = vrsqrt.pop %v2863
      %v2964 = vrsqrt.pop %v2864
      %v2965 = vrsqrt.pop %v2865
      %v2966 = vrsqrt.pop %v2866
      %v2967 = vrsqrt.pop %v2867
      %v2968 = vrsqrt.pop %v2868
      %v2969 = vrsqrt.pop %v2869
      %v2970 = vrsqrt.pop %v2870
      %v2971 = vrsqrt.pop %v2871
      %v2972 = vrsqrt.pop %v2872
      %v2973 = vrsqrt.pop %v2873
      %v2974 = vrsqrt.pop %v2874
      %v2975 = vrsqrt.pop %v2875
      %v2976 = vrsqrt.pop %v2876
      %v2977 = vrsqrt.pop %v2877
      %v2978 = vrsqrt.pop %v2878
      %v2979 = vmul.f32 %v1979, %v2879
      %v2980 = vmul.f32 %v1980, %v2879
      %v2981 = vmul.f32 %v1981, %v2880
      %v2982 = vmul.f32 %v1982, %v2880
      %v2983 = vmul.f32 %v1983, %v2881
      %v2984 = vmul.f32 %v1984, %v2881
      %v2985 = vmul.f32 %v1985, %v2882
      %v2986 = vmul.f32 %v1986, %v2882
      %v2987 = vmul.f32 %v1987, %v2883
      %v2988 = vmul.f32 %v1988, %v2883
      %v2989 = vmul.f32 %v1989, %v2884
      %v2990 = vmul.f32 %v1990, %v2884
      %v2991 = vmul.f32 %v1991, %v2885
      %v2992 = vmul.f32 %v1992, %v2885
      %v2993 = vmul.f32 %v1993, %v2886
      %v2994 = vmul.f32 %v1994, %v2886
      %v2995 = vmul.f32 %v1995, %v2887
      %v2996 = vmul.f32 %v1996, %v2887
      %v2997 = vmul.f32 %v1997, %v2888
      %v2998 = vmul.f32 %v1998, %v2888
      %v2999 = vmul.f32 %v1999, %v2889
      %v3000 = vmul.f32 %v2000, %v2889
      %v3001 = vmul.f32 %v2001, %v2890
      %v3002 = vmul.f32 %v2002, %v2890
      %v3003 = vmul.f32 %v2003, %v2891
      %v3004 = vmul.f32 %v2004, %v2891
      %v3005 = vmul.f32 %v2005, %v2892
      %v3006 = vmul.f32 %v2006, %v2892
      %v3007 = vmul.f32 %v2007, %v2893
      %v3008 = vmul.f32 %v2008, %v2893
      %v3009 = vmul.f32 %v2009, %v2894
      %v3010 = vmul.f32 %v2010, %v2894
      %v3011 = vmul.f32 %v2011, %v2895
      %v3012 = vmul.f32 %v2012, %v2895
      %v3013 = vmul.f32 %v2013, %v2896
      %v3014 = vmul.f32 %v2014, %v2896
      %v3015 = vmul.f32 %v2015, %v2897
      %v3016 = vmul.f32 %v2016, %v2897
      %v3017 = vmul.f32 %v2017, %v2898
      %v3018 = vmul.f32 %v2018, %v2898
      %v3019 = vmul.f32 %v2019, %v2899
      %v3020 = vmul.f32 %v2020, %v2899
      %v3021 = vmul.f32 %v2021, %v2900
      %v3022 = vmul.f32 %v2022, %v2900
      %v3023 = vmul.f32 %v2023, %v2901
      %v3024 = vmul.f32 %v2024, %v2901
      %v3025 = vmul.f32 %v2025, %v2902
      %v3026 = vmul.f32 %v2026, %v2902
      %v3027 = vmul.f32 %v2027, %v2903
      %v3028 = vmul.f32 %v2028, %v2903
      %v3029 = vmul.f32 %v2029, %v2904
      %v3030 = vmul.f32 %v2030, %v2904
      %v3031 = vmul.f32 %v2031, %v2905
      %v3032 = vmul.f32 %v2032, %v2905
      %v3033 = vmul.f32 %v2033, %v2906
      %v3034 = vmul.f32 %v2034, %v2906
      %v3035 = vmul.f32 %v2035, %v2907
      %v3036 = vmul.f32 %v2036, %v2907
      %v3037 = vmul.f32 %v2037, %v2908
      %v3038 = vmul.f32 %v2038, %v2908
      %v3039 = vmul.f32 %v2039, %v2909
      %v3040 = vmul.f32 %v2040, %v2909
      %v3041 = vmul.f32 %v2041, %v2910
      %v3042 = vmul.f32 %v2042, %v2910
      %v3043 = vmul.f32 %v2043, %v2911
      %v3044 = vmul.f32 %v2044, %v2911
      %v3045 = vmul.f32 %v2045, %v2912
      %v3046 = vmul.f32 %v2046, %v2912
      %v3047 = vmul.f32 %v2047, %v2913
      %v3048 = vmul.f32 %v2048, %v2913
      %v3049 = vmul.f32 %v2049, %v2914
      %v3050 = vmul.f32 %v2050, %v2914
      %v3051 = vmul.f32 %v2051, %v2915
      %v3052 = vmul.f32 %v2052, %v2915
      %v3053 = vmul.f32 %v2053, %v2916
      %v3054 = vmul.f32 %v2054, %v2916
      %v3055 = vmul.f32 %v2055, %v2917
      %v3056 = vmul.f32 %v2056, %v2917
      %v3057 = vmul.f32 %v2057, %v2918
      %v3058 = vmul.f32 %v2058, %v2918
      %v3059 = vmul.f32 %v2059, %v2919
      %v3060 = vmul.f32 %v2060, %v2919
      %v3061 = vmul.f32 %v2061, %v2920
      %v3062 = vmul.f32 %v2062, %v2920
      %v3063 = vmul.f32 %v2063, %v2921
      %v3064 = vmul.f32 %v2064, %v2921
      %v3065 = vmul.f32 %v2065, %v2922
      %v3066 = vmul.f32 %v2066, %v2922
      %v3067 = vmul.f32 %v2067, %v2923
      %v3068 = vmul.f32 %v2068, %v2923
      %v3069 = vmul.f32 %v2069, %v2924
      %v3070 = vmul.f32 %v2070, %v2924
      %v3071 = vmul.f32 %v2071, %v2925
      %v3072 = vmul.f32 %v2072, %v2925
      %v3073 = vmul.f32 %v2073, %v2926
      %v3074 = vmul.f32 %v2074, %v2926
      %v3075 = vmul.f32 %v2075, %v2927
      %v3076 = vmul.f32 %v2076, %v2927
      %v3077 = vmul.f32 %v2077, %v2928
      %v3078 = vmul.f32 %v2078, %v2928
      %v3079 = vmul.f32 %v2079, %v2929
      %v3080 = vmul.f32 %v2080, %v2929
      %v3081 = vmul.f32 %v2081, %v2930
      %v3082 = vmul.f32 %v2082, %v2930
      %v3083 = vmul.f32 %v2083, %v2931
      %v3084 = vmul.f32 %v2084, %v2931
      %v3085 = vmul.f32 %v2085, %v2932
      %v3086 = vmul.f32 %v2086, %v2932
      %v3087 = vmul.f32 %v2087, %v2933
      %v3088 = vmul.f32 %v2088, %v2933
      %v3089 = vmul.f32 %v2089, %v2934
      %v3090 = vmul.f32 %v2090, %v2934
      %v3091 = vmul.f32 %v2091, %v2935
      %v3092 = vmul.f32 %v2092, %v2935
      %v3093 = vmul.f32 %v2093, %v2936
      %v3094 = vmul.f32 %v2094, %v2936
      %v3095 = vmul.f32 %v2095, %v2937
      %v3096 = vmul.f32 %v2096, %v2937
      %v3097 = vmul.f32 %v2097, %v2938
      %v3098 = vmul.f32 %v2098, %v2938
      %v3099 = vmul.f32 %v2099, %v2939
      %v3100 = vmul.f32 %v2100, %v2939
      %v3101 = vmul.f32 %v2101, %v2940
      %v3102 = vmul.f32 %v2102, %v2940
      %v3103 = vmul.f32 %v2103, %v2941
      %v3104 = vmul.f32 %v2104, %v2941
      %v3105 = vmul.f32 %v2105, %v2942
      %v3106 = vmul.f32 %v2106, %v2942
      %v3107 = vmul.f32 %v2107, %v2943
      %v3108 = vmul.f32 %v2108, %v2943
      %v3109 = vmul.f32 %v2109, %v2944
      %v3110 = vmul.f32 %v2110, %v2944
      %v3111 = vmul.f32 %v2111, %v2945
      %v3112 = vmul.f32 %v2112, %v2945
      %v3113 = vmul.f32 %v2113, %v2946
      %v3114 = vmul.f32 %v2114, %v2946
      %v3115 = vmul.f32 %v2115, %v2947
      %v3116 = vmul.f32 %v2116, %v2947
      %v3117 = vmul.f32 %v2117, %v2948
      %v3118 = vmul.f32 %v2118, %v2948
      %v3119 = vmul.f32 %v2119, %v2949
      %v3120 = vmul.f32 %v2120, %v2949
      %v3121 = vmul.f32 %v2121, %v2950
      %v3122 = vmul.f32 %v2122, %v2950
      %v3123 = vmul.f32 %v2123, %v2951
      %v3124 = vmul.f32 %v2124, %v2951
      %v3125 = vmul.f32 %v2125, %v2952
      %v3126 = vmul.f32 %v2126, %v2952
      %v3127 = vmul.f32 %v2127, %v2953
      %v3128 = vmul.f32 %v2128, %v2953
      %v3129 = vmul.f32 %v2129, %v2954
      %v3130 = vmul.f32 %v2130, %v2954
      %v3131 = vmul.f32 %v2131, %v2955
      %v3132 = vmul.f32 %v2132, %v2955
      %v3133 = vmul.f32 %v2133, %v2956
      %v3134 = vmul.f32 %v2134, %v2956
      %v3135 = vmul.f32 %v2135, %v2957
      %v3136 = vmul.f32 %v2136, %v2957
      %v3137 = vmul.f32 %v2137, %v2958
      %v3138 = vmul.f32 %v2138, %v2958
      %v3139 = vmul.f32 %v2139, %v2959
      %v3140 = vmul.f32 %v2140, %v2959
      %v3141 = vmul.f32 %v2141, %v2960
      %v3142 = vmul.f32 %v2142, %v2960
      %v3143 = vmul.f32 %v2143, %v2961
      %v3144 = vmul.f32 %v2144, %v2961
      %v3145 = vmul.f32 %v2145, %v2962
      %v3146 = vmul.f32 %v2146, %v2962
      %v3147 = vmul.f32 %v2147, %v2963
      %v3148 = vmul.f32 %v2148, %v2963
      %v3149 = vmul.f32 %v2149, %v2964
      %v3150 = vmul.f32 %v2150, %v2964
      %v3151 = vmul.f32 %v2151, %v2965
      %v3152 = vmul.f32 %v2152, %v2965
      %v3153 = vmul.f32 %v2153, %v2966
      %v3154 = vmul.f32 %v2154, %v2966
      %v3155 = vmul.f32 %v2155, %v2967
      %v3156 = vmul.f32 %v2156, %v2967
      %v3157 = vmul.f32 %v2157, %v2968
      %v3158 = vmul.f32 %v2158, %v2968
      %v3159 = vmul.f32 %v2159, %v2969
      %v3160 = vmul.f32 %v2160, %v2969
      %v3161 = vmul.f32 %v2161, %v2970
      %v3162 = vmul.f32 %v2162, %v2970
      %v3163 = vmul.f32 %v2163, %v2971
      %v3164 = vmul.f32 %v2164, %v2971
      %v3165 = vmul.f32 %v2165, %v2972
      %v3166 = vmul.f32 %v2166, %v2972
      %v3167 = vmul.f32 %v2167, %v2973
      %v3168 = vmul.f32 %v2168, %v2973
      %v3169 = vmul.f32 %v2169, %v2974
      %v3170 = vmul.f32 %v2170, %v2974
      %v3171 = vmul.f32 %v2171, %v2975
      %v3172 = vmul.f32 %v2172, %v2975
      %v3173 = vmul.f32 %v2173, %v2976
      %v3174 = vmul.f32 %v2174, %v2976
      %v3175 = vmul.f32 %v2175, %v2977
      %v3176 = vmul.f32 %v2176, %v2977
      %v3177 = vmul.f32 %v2177, %v2978
      %v3178 = vmul.f32 %v2178, %v2978
      %v3179 = vld [vmem:[%s3] sm:$0x3]
      %v3181 = vlaneseq
      %v3182 = vshrl.u32 %v3181, 7
      %v3183 = vsub.s32 0, %v3182
      %v3184 = vrot.slane %v3179, %v3183
      %v3185 = vlaneseq
      %v3186 = vshrl.u32 %v3185, 7
      %v3187 = vsub.s32 1, %v3186
      %v3188 = vrot.slane %v3179, %v3187
      %v3191 = vmul.f32 %v2979, %v3184
      %v3192 = vmul.f32 %v2980, %v3188
      %v3193 = vmul.f32 %v2981, %v3184
      %v3194 = vmul.f32 %v2982, %v3188
      %v3195 = vmul.f32 %v2983, %v3184
      %v3196 = vmul.f32 %v2984, %v3188
      %v3197 = vmul.f32 %v2985, %v3184
      %v3198 = vmul.f32 %v2986, %v3188
      %v3199 = vmul.f32 %v2987, %v3184
      %v3200 = vmul.f32 %v2988, %v3188
      %v3201 = vmul.f32 %v2989, %v3184
      %v3202 = vmul.f32 %v2990, %v3188
      %v3203 = vmul.f32 %v2991, %v3184
      %v3204 = vmul.f32 %v2992, %v3188
      %v3205 = vmul.f32 %v2993, %v3184
      %v3206 = vmul.f32 %v2994, %v3188
      %v3207 = vmul.f32 %v2995, %v3184
      %v3208 = vmul.f32 %v2996, %v3188
      %v3209 = vmul.f32 %v2997, %v3184
      %v3210 = vmul.f32 %v2998, %v3188
      %v3211 = vmul.f32 %v2999, %v3184
      %v3212 = vmul.f32 %v3000, %v3188
      %v3213 = vmul.f32 %v3001, %v3184
      %v3214 = vmul.f32 %v3002, %v3188
      %v3215 = vmul.f32 %v3003, %v3184
      %v3216 = vmul.f32 %v3004, %v3188
      %v3217 = vmul.f32 %v3005, %v3184
      %v3218 = vmul.f32 %v3006, %v3188
      %v3219 = vmul.f32 %v3007, %v3184
      %v3220 = vmul.f32 %v3008, %v3188
      %v3221 = vmul.f32 %v3009, %v3184
      %v3222 = vmul.f32 %v3010, %v3188
      %v3223 = vmul.f32 %v3011, %v3184
      %v3224 = vmul.f32 %v3012, %v3188
      %v3225 = vmul.f32 %v3013, %v3184
      %v3226 = vmul.f32 %v3014, %v3188
      %v3227 = vmul.f32 %v3015, %v3184
      %v3228 = vmul.f32 %v3016, %v3188
      %v3229 = vmul.f32 %v3017, %v3184
      %v3230 = vmul.f32 %v3018, %v3188
      %v3231 = vmul.f32 %v3019, %v3184
      %v3232 = vmul.f32 %v3020, %v3188
      %v3233 = vmul.f32 %v3021, %v3184
      %v3234 = vmul.f32 %v3022, %v3188
      %v3235 = vmul.f32 %v3023, %v3184
      %v3236 = vmul.f32 %v3024, %v3188
      %v3237 = vmul.f32 %v3025, %v3184
      %v3238 = vmul.f32 %v3026, %v3188
      %v3239 = vmul.f32 %v3027, %v3184
      %v3240 = vmul.f32 %v3028, %v3188
      %v3241 = vmul.f32 %v3029, %v3184
      %v3242 = vmul.f32 %v3030, %v3188
      %v3243 = vmul.f32 %v3031, %v3184
      %v3244 = vmul.f32 %v3032, %v3188
      %v3245 = vmul.f32 %v3033, %v3184
      %v3246 = vmul.f32 %v3034, %v3188
      %v3247 = vmul.f32 %v3035, %v3184
      %v3248 = vmul.f32 %v3036, %v3188
      %v3249 = vmul.f32 %v3037, %v3184
      %v3250 = vmul.f32 %v3038, %v3188
      %v3251 = vmul.f32 %v3039, %v3184
      %v3252 = vmul.f32 %v3040, %v3188
      %v3253 = vmul.f32 %v3041, %v3184
      %v3254 = vmul.f32 %v3042, %v3188
      %v3255 = vmul.f32 %v3043, %v3184
      %v3256 = vmul.f32 %v3044, %v3188
      %v3257 = vmul.f32 %v3045, %v3184
      %v3258 = vmul.f32 %v3046, %v3188
      %v3259 = vmul.f32 %v3047, %v3184
      %v3260 = vmul.f32 %v3048, %v3188
      %v3261 = vmul.f32 %v3049, %v3184
      %v3262 = vmul.f32 %v3050, %v3188
      %v3263 = vmul.f32 %v3051, %v3184
      %v3264 = vmul.f32 %v3052, %v3188
      %v3265 = vmul.f32 %v3053, %v3184
      %v3266 = vmul.f32 %v3054, %v3188
      %v3267 = vmul.f32 %v3055, %v3184
      %v3268 = vmul.f32 %v3056, %v3188
      %v3269 = vmul.f32 %v3057, %v3184
      %v3270 = vmul.f32 %v3058, %v3188
      %v3271 = vmul.f32 %v3059, %v3184
      %v3272 = vmul.f32 %v3060, %v3188
      %v3273 = vmul.f32 %v3061, %v3184
      %v3274 = vmul.f32 %v3062, %v3188
      %v3275 = vmul.f32 %v3063, %v3184
      %v3276 = vmul.f32 %v3064, %v3188
      %v3277 = vmul.f32 %v3065, %v3184
      %v3278 = vmul.f32 %v3066, %v3188
      %v3279 = vmul.f32 %v3067, %v3184
      %v3280 = vmul.f32 %v3068, %v3188
      %v3281 = vmul.f32 %v3069, %v3184
      %v3282 = vmul.f32 %v3070, %v3188
      %v3283 = vmul.f32 %v3071, %v3184
      %v3284 = vmul.f32 %v3072, %v3188
      %v3285 = vmul.f32 %v3073, %v3184
      %v3286 = vmul.f32 %v3074, %v3188
      %v3287 = vmul.f32 %v3075, %v3184
      %v3288 = vmul.f32 %v3076, %v3188
      %v3289 = vmul.f32 %v3077, %v3184
      %v3290 = vmul.f32 %v3078, %v3188
      %v3291 = vmul.f32 %v3079, %v3184
      %v3292 = vmul.f32 %v3080, %v3188
      %v3293 = vmul.f32 %v3081, %v3184
      %v3294 = vmul.f32 %v3082, %v3188
      %v3295 = vmul.f32 %v3083, %v3184
      %v3296 = vmul.f32 %v3084, %v3188
      %v3297 = vmul.f32 %v3085, %v3184
      %v3298 = vmul.f32 %v3086, %v3188
      %v3299 = vmul.f32 %v3087, %v3184
      %v3300 = vmul.f32 %v3088, %v3188
      %v3301 = vmul.f32 %v3089, %v3184
      %v3302 = vmul.f32 %v3090, %v3188
      %v3303 = vmul.f32 %v3091, %v3184
      %v3304 = vmul.f32 %v3092, %v3188
      %v3305 = vmul.f32 %v3093, %v3184
      %v3306 = vmul.f32 %v3094, %v3188
      %v3307 = vmul.f32 %v3095, %v3184
      %v3308 = vmul.f32 %v3096, %v3188
      %v3309 = vmul.f32 %v3097, %v3184
      %v3310 = vmul.f32 %v3098, %v3188
      %v3311 = vmul.f32 %v3099, %v3184
      %v3312 = vmul.f32 %v3100, %v3188
      %v3313 = vmul.f32 %v3101, %v3184
      %v3314 = vmul.f32 %v3102, %v3188
      %v3315 = vmul.f32 %v3103, %v3184
      %v3316 = vmul.f32 %v3104, %v3188
      %v3317 = vmul.f32 %v3105, %v3184
      %v3318 = vmul.f32 %v3106, %v3188
      %v3319 = vmul.f32 %v3107, %v3184
      %v3320 = vmul.f32 %v3108, %v3188
      %v3321 = vmul.f32 %v3109, %v3184
      %v3322 = vmul.f32 %v3110, %v3188
      %v3323 = vmul.f32 %v3111, %v3184
      %v3324 = vmul.f32 %v3112, %v3188
      %v3325 = vmul.f32 %v3113, %v3184
      %v3326 = vmul.f32 %v3114, %v3188
      %v3327 = vmul.f32 %v3115, %v3184
      %v3328 = vmul.f32 %v3116, %v3188
      %v3329 = vmul.f32 %v3117, %v3184
      %v3330 = vmul.f32 %v3118, %v3188
      %v3331 = vmul.f32 %v3119, %v3184
      %v3332 = vmul.f32 %v3120, %v3188
      %v3333 = vmul.f32 %v3121, %v3184
      %v3334 = vmul.f32 %v3122, %v3188
      %v3335 = vmul.f32 %v3123, %v3184
      %v3336 = vmul.f32 %v3124, %v3188
      %v3337 = vmul.f32 %v3125, %v3184
      %v3338 = vmul.f32 %v3126, %v3188
      %v3339 = vmul.f32 %v3127, %v3184
      %v3340 = vmul.f32 %v3128, %v3188
      %v3341 = vmul.f32 %v3129, %v3184
      %v3342 = vmul.f32 %v3130, %v3188
      %v3343 = vmul.f32 %v3131, %v3184
      %v3344 = vmul.f32 %v3132, %v3188
      %v3345 = vmul.f32 %v3133, %v3184
      %v3346 = vmul.f32 %v3134, %v3188
      %v3347 = vmul.f32 %v3135, %v3184
      %v3348 = vmul.f32 %v3136, %v3188
      %v3349 = vmul.f32 %v3137, %v3184
      %v3350 = vmul.f32 %v3138, %v3188
      %v3351 = vmul.f32 %v3139, %v3184
      %v3352 = vmul.f32 %v3140, %v3188
      %v3353 = vmul.f32 %v3141, %v3184
      %v3354 = vmul.f32 %v3142, %v3188
      %v3355 = vmul.f32 %v3143, %v3184
      %v3356 = vmul.f32 %v3144, %v3188
      %v3357 = vmul.f32 %v3145, %v3184
      %v3358 = vmul.f32 %v3146, %v3188
      %v3359 = vmul.f32 %v3147, %v3184
      %v3360 = vmul.f32 %v3148, %v3188
      %v3361 = vmul.f32 %v3149, %v3184
      %v3362 = vmul.f32 %v3150, %v3188
      %v3363 = vmul.f32 %v3151, %v3184
      %v3364 = vmul.f32 %v3152, %v3188
      %v3365 = vmul.f32 %v3153, %v3184
      %v3366 = vmul.f32 %v3154, %v3188
      %v3367 = vmul.f32 %v3155, %v3184
      %v3368 = vmul.f32 %v3156, %v3188
      %v3369 = vmul.f32 %v3157, %v3184
      %v3370 = vmul.f32 %v3158, %v3188
      %v3371 = vmul.f32 %v3159, %v3184
      %v3372 = vmul.f32 %v3160, %v3188
      %v3373 = vmul.f32 %v3161, %v3184
      %v3374 = vmul.f32 %v3162, %v3188
      %v3375 = vmul.f32 %v3163, %v3184
      %v3376 = vmul.f32 %v3164, %v3188
      %v3377 = vmul.f32 %v3165, %v3184
      %v3378 = vmul.f32 %v3166, %v3188
      %v3379 = vmul.f32 %v3167, %v3184
      %v3380 = vmul.f32 %v3168, %v3188
      %v3381 = vmul.f32 %v3169, %v3184
      %v3382 = vmul.f32 %v3170, %v3188
      %v3383 = vmul.f32 %v3171, %v3184
      %v3384 = vmul.f32 %v3172, %v3188
      %v3385 = vmul.f32 %v3173, %v3184
      %v3386 = vmul.f32 %v3174, %v3188
      %v3387 = vmul.f32 %v3175, %v3184
      %v3388 = vmul.f32 %v3176, %v3188
      %v3389 = vmul.f32 %v3177, %v3184
      %v3390 = vmul.f32 %v3178, %v3188
      %v3391 = vld [vmem:[%s4] sm:$0x3]
      %v3393 = vlaneseq
      %v3394 = vshrl.u32 %v3393, 7
      %v3395 = vsub.s32 0, %v3394
      %v3396 = vrot.slane %v3391, %v3395
      %v3397 = vlaneseq
      %v3398 = vshrl.u32 %v3397, 7
      %v3399 = vsub.s32 1, %v3398
      %v3400 = vrot.slane %v3391, %v3399
      %v3403 = vadd.f32 %v3191, %v3396
      %v3404 = vadd.f32 %v3192, %v3400
      %v3405 = vadd.f32 %v3193, %v3396
      %v3406 = vadd.f32 %v3194, %v3400
      %v3407 = vadd.f32 %v3195, %v3396
      %v3408 = vadd.f32 %v3196, %v3400
      %v3409 = vadd.f32 %v3197, %v3396
      %v3410 = vadd.f32 %v3198, %v3400
      %v3411 = vadd.f32 %v3199, %v3396
      %v3412 = vadd.f32 %v3200, %v3400
      %v3413 = vadd.f32 %v3201, %v3396
      %v3414 = vadd.f32 %v3202, %v3400
      %v3415 = vadd.f32 %v3203, %v3396
      %v3416 = vadd.f32 %v3204, %v3400
      %v3417 = vadd.f32 %v3205, %v3396
      %v3418 = vadd.f32 %v3206, %v3400
      %v3419 = vadd.f32 %v3207, %v3396
      %v3420 = vadd.f32 %v3208, %v3400
      %v3421 = vadd.f32 %v3209, %v3396
      %v3422 = vadd.f32 %v3210, %v3400
      %v3423 = vadd.f32 %v3211, %v3396
      %v3424 = vadd.f32 %v3212, %v3400
      %v3425 = vadd.f32 %v3213, %v3396
      %v3426 = vadd.f32 %v3214, %v3400
      %v3427 = vadd.f32 %v3215, %v3396
      %v3428 = vadd.f32 %v3216, %v3400
      %v3429 = vadd.f32 %v3217, %v3396
      %v3430 = vadd.f32 %v3218, %v3400
      %v3431 = vadd.f32 %v3219, %v3396
      %v3432 = vadd.f32 %v3220, %v3400
      %v3433 = vadd.f32 %v3221, %v3396
      %v3434 = vadd.f32 %v3222, %v3400
      %v3435 = vadd.f32 %v3223, %v3396
      %v3436 = vadd.f32 %v3224, %v3400
      %v3437 = vadd.f32 %v3225, %v3396
      %v3438 = vadd.f32 %v3226, %v3400
      %v3439 = vadd.f32 %v3227, %v3396
      %v3440 = vadd.f32 %v3228, %v3400
      %v3441 = vadd.f32 %v3229, %v3396
      %v3442 = vadd.f32 %v3230, %v3400
      %v3443 = vadd.f32 %v3231, %v3396
      %v3444 = vadd.f32 %v3232, %v3400
      %v3445 = vadd.f32 %v3233, %v3396
      %v3446 = vadd.f32 %v3234, %v3400
      %v3447 = vadd.f32 %v3235, %v3396
      %v3448 = vadd.f32 %v3236, %v3400
      %v3449 = vadd.f32 %v3237, %v3396
      %v3450 = vadd.f32 %v3238, %v3400
      %v3451 = vadd.f32 %v3239, %v3396
      %v3452 = vadd.f32 %v3240, %v3400
      %v3453 = vadd.f32 %v3241, %v3396
      %v3454 = vadd.f32 %v3242, %v3400
      %v3455 = vadd.f32 %v3243, %v3396
      %v3456 = vadd.f32 %v3244, %v3400
      %v3457 = vadd.f32 %v3245, %v3396
      %v3458 = vadd.f32 %v3246, %v3400
      %v3459 = vadd.f32 %v3247, %v3396
      %v3460 = vadd.f32 %v3248, %v3400
      %v3461 = vadd.f32 %v3249, %v3396
      %v3462 = vadd.f32 %v3250, %v3400
      %v3463 = vadd.f32 %v3251, %v3396
      %v3464 = vadd.f32 %v3252, %v3400
      %v3465 = vadd.f32 %v3253, %v3396
      %v3466 = vadd.f32 %v3254, %v3400
      %v3467 = vadd.f32 %v3255, %v3396
      %v3468 = vadd.f32 %v3256, %v3400
      %v3469 = vadd.f32 %v3257, %v3396
      %v3470 = vadd.f32 %v3258, %v3400
      %v3471 = vadd.f32 %v3259, %v3396
      %v3472 = vadd.f32 %v3260, %v3400
      %v3473 = vadd.f32 %v3261, %v3396
      %v3474 = vadd.f32 %v3262, %v3400
      %v3475 = vadd.f32 %v3263, %v3396
      %v3476 = vadd.f32 %v3264, %v3400
      %v3477 = vadd.f32 %v3265, %v3396
      %v3478 = vadd.f32 %v3266, %v3400
      %v3479 = vadd.f32 %v3267, %v3396
      %v3480 = vadd.f32 %v3268, %v3400
      %v3481 = vadd.f32 %v3269, %v3396
      %v3482 = vadd.f32 %v3270, %v3400
      %v3483 = vadd.f32 %v3271, %v3396
      %v3484 = vadd.f32 %v3272, %v3400
      %v3485 = vadd.f32 %v3273, %v3396
      %v3486 = vadd.f32 %v3274, %v3400
      %v3487 = vadd.f32 %v3275, %v3396
      %v3488 = vadd.f32 %v3276, %v3400
      %v3489 = vadd.f32 %v3277, %v3396
      %v3490 = vadd.f32 %v3278, %v3400
      %v3491 = vadd.f32 %v3279, %v3396
      %v3492 = vadd.f32 %v3280, %v3400
      %v3493 = vadd.f32 %v3281, %v3396
      %v3494 = vadd.f32 %v3282, %v3400
      %v3495 = vadd.f32 %v3283, %v3396
      %v3496 = vadd.f32 %v3284, %v3400
      %v3497 = vadd.f32 %v3285, %v3396
      %v3498 = vadd.f32 %v3286, %v3400
      %v3499 = vadd.f32 %v3287, %v3396
      %v3500 = vadd.f32 %v3288, %v3400
      %v3501 = vadd.f32 %v3289, %v3396
      %v3502 = vadd.f32 %v3290, %v3400
      %v3503 = vadd.f32 %v3291, %v3396
      %v3504 = vadd.f32 %v3292, %v3400
      %v3505 = vadd.f32 %v3293, %v3396
      %v3506 = vadd.f32 %v3294, %v3400
      %v3507 = vadd.f32 %v3295, %v3396
      %v3508 = vadd.f32 %v3296, %v3400
      %v3509 = vadd.f32 %v3297, %v3396
      %v3510 = vadd.f32 %v3298, %v3400
      %v3511 = vadd.f32 %v3299, %v3396
      %v3512 = vadd.f32 %v3300, %v3400
      %v3513 = vadd.f32 %v3301, %v3396
      %v3514 = vadd.f32 %v3302, %v3400
      %v3515 = vadd.f32 %v3303, %v3396
      %v3516 = vadd.f32 %v3304, %v3400
      %v3517 = vadd.f32 %v3305, %v3396
      %v3518 = vadd.f32 %v3306, %v3400
      %v3519 = vadd.f32 %v3307, %v3396
      %v3520 = vadd.f32 %v3308, %v3400
      %v3521 = vadd.f32 %v3309, %v3396
      %v3522 = vadd.f32 %v3310, %v3400
      %v3523 = vadd.f32 %v3311, %v3396
      %v3524 = vadd.f32 %v3312, %v3400
      %v3525 = vadd.f32 %v3313, %v3396
      %v3526 = vadd.f32 %v3314, %v3400
      %v3527 = vadd.f32 %v3315, %v3396
      %v3528 = vadd.f32 %v3316, %v3400
      %v3529 = vadd.f32 %v3317, %v3396
      %v3530 = vadd.f32 %v3318, %v3400
      %v3531 = vadd.f32 %v3319, %v3396
      %v3532 = vadd.f32 %v3320, %v3400
      %v3533 = vadd.f32 %v3321, %v3396
      %v3534 = vadd.f32 %v3322, %v3400
      %v3535 = vadd.f32 %v3323, %v3396
      %v3536 = vadd.f32 %v3324, %v3400
      %v3537 = vadd.f32 %v3325, %v3396
      %v3538 = vadd.f32 %v3326, %v3400
      %v3539 = vadd.f32 %v3327, %v3396
      %v3540 = vadd.f32 %v3328, %v3400
      %v3541 = vadd.f32 %v3329, %v3396
      %v3542 = vadd.f32 %v3330, %v3400
      %v3543 = vadd.f32 %v3331, %v3396
      %v3544 = vadd.f32 %v3332, %v3400
      %v3545 = vadd.f32 %v3333, %v3396
      %v3546 = vadd.f32 %v3334, %v3400
      %v3547 = vadd.f32 %v3335, %v3396
      %v3548 = vadd.f32 %v3336, %v3400
      %v3549 = vadd.f32 %v3337, %v3396
      %v3550 = vadd.f32 %v3338, %v3400
      %v3551 = vadd.f32 %v3339, %v3396
      %v3552 = vadd.f32 %v3340, %v3400
      %v3553 = vadd.f32 %v3341, %v3396
      %v3554 = vadd.f32 %v3342, %v3400
      %v3555 = vadd.f32 %v3343, %v3396
      %v3556 = vadd.f32 %v3344, %v3400
      %v3557 = vadd.f32 %v3345, %v3396
      %v3558 = vadd.f32 %v3346, %v3400
      %v3559 = vadd.f32 %v3347, %v3396
      %v3560 = vadd.f32 %v3348, %v3400
      %v3561 = vadd.f32 %v3349, %v3396
      %v3562 = vadd.f32 %v3350, %v3400
      %v3563 = vadd.f32 %v3351, %v3396
      %v3564 = vadd.f32 %v3352, %v3400
      %v3565 = vadd.f32 %v3353, %v3396
      %v3566 = vadd.f32 %v3354, %v3400
      %v3567 = vadd.f32 %v3355, %v3396
      %v3568 = vadd.f32 %v3356, %v3400
      %v3569 = vadd.f32 %v3357, %v3396
      %v3570 = vadd.f32 %v3358, %v3400
      %v3571 = vadd.f32 %v3359, %v3396
      %v3572 = vadd.f32 %v3360, %v3400
      %v3573 = vadd.f32 %v3361, %v3396
      %v3574 = vadd.f32 %v3362, %v3400
      %v3575 = vadd.f32 %v3363, %v3396
      %v3576 = vadd.f32 %v3364, %v3400
      %v3577 = vadd.f32 %v3365, %v3396
      %v3578 = vadd.f32 %v3366, %v3400
      %v3579 = vadd.f32 %v3367, %v3396
      %v3580 = vadd.f32 %v3368, %v3400
      %v3581 = vadd.f32 %v3369, %v3396
      %v3582 = vadd.f32 %v3370, %v3400
      %v3583 = vadd.f32 %v3371, %v3396
      %v3584 = vadd.f32 %v3372, %v3400
      %v3585 = vadd.f32 %v3373, %v3396
      %v3586 = vadd.f32 %v3374, %v3400
      %v3587 = vadd.f32 %v3375, %v3396
      %v3588 = vadd.f32 %v3376, %v3400
      %v3589 = vadd.f32 %v3377, %v3396
      %v3590 = vadd.f32 %v3378, %v3400
      %v3591 = vadd.f32 %v3379, %v3396
      %v3592 = vadd.f32 %v3380, %v3400
      %v3593 = vadd.f32 %v3381, %v3396
      %v3594 = vadd.f32 %v3382, %v3400
      %v3595 = vadd.f32 %v3383, %v3396
      %v3596 = vadd.f32 %v3384, %v3400
      %v3597 = vadd.f32 %v3385, %v3396
      %v3598 = vadd.f32 %v3386, %v3400
      %v3599 = vadd.f32 %v3387, %v3396
      %v3600 = vadd.f32 %v3388, %v3400
      %v3601 = vadd.f32 %v3389, %v3396
      %v3602 = vadd.f32 %v3390, %v3400
      %v3603 = vpack.c.bf16 %v3405, %v3403
      %v3604 = vpack.c.bf16 %v3406, %v3404
      %v3605 = vpack.c.bf16 %v3409, %v3407
      %v3606 = vpack.c.bf16 %v3410, %v3408
      %v3607 = vpack.c.bf16 %v3413, %v3411
      %v3608 = vpack.c.bf16 %v3414, %v3412
      %v3609 = vpack.c.bf16 %v3417, %v3415
      %v3610 = vpack.c.bf16 %v3418, %v3416
      %v3611 = vpack.c.bf16 %v3421, %v3419
      %v3612 = vpack.c.bf16 %v3422, %v3420
      %v3613 = vpack.c.bf16 %v3425, %v3423
      %v3614 = vpack.c.bf16 %v3426, %v3424
      %v3615 = vpack.c.bf16 %v3429, %v3427
      %v3616 = vpack.c.bf16 %v3430, %v3428
      %v3617 = vpack.c.bf16 %v3433, %v3431
      %v3618 = vpack.c.bf16 %v3434, %v3432
      %v3619 = vpack.c.bf16 %v3437, %v3435
      %v3620 = vpack.c.bf16 %v3438, %v3436
      %v3621 = vpack.c.bf16 %v3441, %v3439
      %v3622 = vpack.c.bf16 %v3442, %v3440
      %v3623 = vpack.c.bf16 %v3445, %v3443
      %v3624 = vpack.c.bf16 %v3446, %v3444
      %v3625 = vpack.c.bf16 %v3449, %v3447
      %v3626 = vpack.c.bf16 %v3450, %v3448
      %v3627 = vpack.c.bf16 %v3453, %v3451
      %v3628 = vpack.c.bf16 %v3454, %v3452
      %v3629 = vpack.c.bf16 %v3457, %v3455
      %v3630 = vpack.c.bf16 %v3458, %v3456
      %v3631 = vpack.c.bf16 %v3461, %v3459
      %v3632 = vpack.c.bf16 %v3462, %v3460
      %v3633 = vpack.c.bf16 %v3465, %v3463
      %v3634 = vpack.c.bf16 %v3466, %v3464
      %v3635 = vpack.c.bf16 %v3469, %v3467
      %v3636 = vpack.c.bf16 %v3470, %v3468
      %v3637 = vpack.c.bf16 %v3473, %v3471
      %v3638 = vpack.c.bf16 %v3474, %v3472
      %v3639 = vpack.c.bf16 %v3477, %v3475
      %v3640 = vpack.c.bf16 %v3478, %v3476
      %v3641 = vpack.c.bf16 %v3481, %v3479
      %v3642 = vpack.c.bf16 %v3482, %v3480
      %v3643 = vpack.c.bf16 %v3485, %v3483
      %v3644 = vpack.c.bf16 %v3486, %v3484
      %v3645 = vpack.c.bf16 %v3489, %v3487
      %v3646 = vpack.c.bf16 %v3490, %v3488
      %v3647 = vpack.c.bf16 %v3493, %v3491
      %v3648 = vpack.c.bf16 %v3494, %v3492
      %v3649 = vpack.c.bf16 %v3497, %v3495
      %v3650 = vpack.c.bf16 %v3498, %v3496
      %v3651 = vpack.c.bf16 %v3501, %v3499
      %v3652 = vpack.c.bf16 %v3502, %v3500
      %v3653 = vpack.c.bf16 %v3505, %v3503
      %v3654 = vpack.c.bf16 %v3506, %v3504
      %v3655 = vpack.c.bf16 %v3509, %v3507
      %v3656 = vpack.c.bf16 %v3510, %v3508
      %v3657 = vpack.c.bf16 %v3513, %v3511
      %v3658 = vpack.c.bf16 %v3514, %v3512
      %v3659 = vpack.c.bf16 %v3517, %v3515
      %v3660 = vpack.c.bf16 %v3518, %v3516
      %v3661 = vpack.c.bf16 %v3521, %v3519
      %v3662 = vpack.c.bf16 %v3522, %v3520
      %v3663 = vpack.c.bf16 %v3525, %v3523
      %v3664 = vpack.c.bf16 %v3526, %v3524
      %v3665 = vpack.c.bf16 %v3529, %v3527
      %v3666 = vpack.c.bf16 %v3530, %v3528
      %v3667 = vpack.c.bf16 %v3533, %v3531
      %v3668 = vpack.c.bf16 %v3534, %v3532
      %v3669 = vpack.c.bf16 %v3537, %v3535
      %v3670 = vpack.c.bf16 %v3538, %v3536
      %v3671 = vpack.c.bf16 %v3541, %v3539
      %v3672 = vpack.c.bf16 %v3542, %v3540
      %v3673 = vpack.c.bf16 %v3545, %v3543
      %v3674 = vpack.c.bf16 %v3546, %v3544
      %v3675 = vpack.c.bf16 %v3549, %v3547
      %v3676 = vpack.c.bf16 %v3550, %v3548
      %v3677 = vpack.c.bf16 %v3553, %v3551
      %v3678 = vpack.c.bf16 %v3554, %v3552
      %v3679 = vpack.c.bf16 %v3557, %v3555
      %v3680 = vpack.c.bf16 %v3558, %v3556
      %v3681 = vpack.c.bf16 %v3561, %v3559
      %v3682 = vpack.c.bf16 %v3562, %v3560
      %v3683 = vpack.c.bf16 %v3565, %v3563
      %v3684 = vpack.c.bf16 %v3566, %v3564
      %v3685 = vpack.c.bf16 %v3569, %v3567
      %v3686 = vpack.c.bf16 %v3570, %v3568
      %v3687 = vpack.c.bf16 %v3573, %v3571
      %v3688 = vpack.c.bf16 %v3574, %v3572
      %v3689 = vpack.c.bf16 %v3577, %v3575
      %v3690 = vpack.c.bf16 %v3578, %v3576
      %v3691 = vpack.c.bf16 %v3581, %v3579
      %v3692 = vpack.c.bf16 %v3582, %v3580
      %v3693 = vpack.c.bf16 %v3585, %v3583
      %v3694 = vpack.c.bf16 %v3586, %v3584
      %v3695 = vpack.c.bf16 %v3589, %v3587
      %v3696 = vpack.c.bf16 %v3590, %v3588
      %v3697 = vpack.c.bf16 %v3593, %v3591
      %v3698 = vpack.c.bf16 %v3594, %v3592
      %v3699 = vpack.c.bf16 %v3597, %v3595
      %v3700 = vpack.c.bf16 %v3598, %v3596
      %v3701 = vpack.c.bf16 %v3601, %v3599
      %v3702 = vpack.c.bf16 %v3602, %v3600
      %v3703 = vld [vmem:[%s5] sm:$0xf]
      %v3704 = vld [vmem:[%s5 + $0x4] sm:$0xf]
      %v3705 = vld [vmem:[%s5 + $0x8] sm:$0xf]
      %v3706 = vld [vmem:[%s5 + $0xc] sm:$0xf]
      %v3707 = vld [vmem:[%s5 + $0x10] sm:$0xf]
      %v3708 = vld [vmem:[%s5 + $0x14] sm:$0xf]
      %v3709 = vld [vmem:[%s5 + $0x18] sm:$0xf]
      %v3710 = vld [vmem:[%s5 + $0x1c] sm:$0xf]
      %v3711 = vld [vmem:[%s5 + $0x20] sm:$0xf]
      %v3712 = vld [vmem:[%s5 + $0x24] sm:$0xf]
      %v3713 = vld [vmem:[%s5 + $0x28] sm:$0xf]
      %v3714 = vld [vmem:[%s5 + $0x2c] sm:$0xf]
      %v3715 = vld [vmem:[%s5 + $0x30] sm:$0xf]
      %v3716 = vld [vmem:[%s5 + $0x34] sm:$0xf]
      %v3717 = vld [vmem:[%s5 + $0x38] sm:$0xf]
      %v3718 = vld [vmem:[%s5 + $0x3c] sm:$0xf]
      %v3719 = vld [vmem:[%s5 + $0x40] sm:$0xf]
      %v3720 = vld [vmem:[%s5 + $0x44] sm:$0xf]
      %v3721 = vld [vmem:[%s5 + $0x48] sm:$0xf]
      %v3722 = vld [vmem:[%s5 + $0x4c] sm:$0xf]
      %v3723 = vld [vmem:[%s5 + $0x50] sm:$0xf]
      %v3724 = vld [vmem:[%s5 + $0x54] sm:$0xf]
      %v3725 = vld [vmem:[%s5 + $0x58] sm:$0xf]
      %v3726 = vld [vmem:[%s5 + $0x5c] sm:$0xf]
      %v3727 = vld [vmem:[%s5 + $0x60] sm:$0xf]
      %v3728 = vld [vmem:[%s5 + $0x64] sm:$0xf]
      %v3729 = vld [vmem:[%s5 + $0x68] sm:$0xf]
      %v3730 = vld [vmem:[%s5 + $0x6c] sm:$0xf]
      %v3731 = vld [vmem:[%s5 + $0x70] sm:$0xf]
      %v3732 = vld [vmem:[%s5 + $0x74] sm:$0xf]
      %v3733 = vld [vmem:[%s5 + $0x78] sm:$0xf]
      %v3734 = vld [vmem:[%s5 + $0x7c] sm:$0xf]
      %v3735 = vld [vmem:[%s6] sm:$0x1]
      %v3737 = vlaneseq
      %v3738 = vshrl.u32 %v3737, 7
      %v3739 = vsub.s32 0, %v3738
      %v3740 = vrot.slane %v3735, %v3739
      %v3774 = vunpack.c.l.b16 %v3703
      %v3775 = vunpack.c.l.b16 %v3704
      %v3776 = vunpack.c.l.b16 %v3705
      %v3777 = vunpack.c.l.b16 %v3706
      %v3778 = vunpack.c.l.b16 %v3707
      %v3779 = vunpack.c.l.b16 %v3708
      %v3780 = vunpack.c.l.b16 %v3709
      %v3781 = vunpack.c.l.b16 %v3710
      %v3782 = vunpack.c.l.b16 %v3711
      %v3783 = vunpack.c.l.b16 %v3712
      %v3784 = vunpack.c.l.b16 %v3713
      %v3785 = vunpack.c.l.b16 %v3714
      %v3786 = vunpack.c.l.b16 %v3715
      %v3787 = vunpack.c.l.b16 %v3716
      %v3788 = vunpack.c.l.b16 %v3717
      %v3789 = vunpack.c.l.b16 %v3718
      %v3790 = vunpack.c.l.b16 %v3719
      %v3791 = vunpack.c.l.b16 %v3720
      %v3792 = vunpack.c.l.b16 %v3721
      %v3793 = vunpack.c.l.b16 %v3722
      %v3794 = vunpack.c.l.b16 %v3723
      %v3795 = vunpack.c.l.b16 %v3724
      %v3796 = vunpack.c.l.b16 %v3725
      %v3797 = vunpack.c.l.b16 %v3726
      %v3798 = vunpack.c.l.b16 %v3727
      %v3799 = vunpack.c.l.b16 %v3728
      %v3800 = vunpack.c.l.b16 %v3729
      %v3801 = vunpack.c.l.b16 %v3730
      %v3802 = vunpack.c.l.b16 %v3731
      %v3803 = vunpack.c.l.b16 %v3732
      %v3804 = vunpack.c.l.b16 %v3733
      %v3805 = vunpack.c.l.b16 %v3734
      %v3806 = vpack.c.b16 %v3775, %v3774
      %v3807 = vpack.c.b16 %v3777, %v3776
      %v3808 = vpack.c.b16 %v3779, %v3778
      %v3809 = vpack.c.b16 %v3781, %v3780
      %v3810 = vpack.c.b16 %v3783, %v3782
      %v3811 = vpack.c.b16 %v3785, %v3784
      %v3812 = vpack.c.b16 %v3787, %v3786
      %v3813 = vpack.c.b16 %v3789, %v3788
      %v3814 = vpack.c.b16 %v3791, %v3790
      %v3815 = vpack.c.b16 %v3793, %v3792
      %v3816 = vpack.c.b16 %v3795, %v3794
      %v3817 = vpack.c.b16 %v3797, %v3796
      %v3818 = vpack.c.b16 %v3799, %v3798
      %v3819 = vpack.c.b16 %v3801, %v3800
      %v3820 = vpack.c.b16 %v3803, %v3802
      %v3821 = vpack.c.b16 %v3805, %v3804
      %3838 = vmatprep.subr.bf16.mxu0 0
      %3839 = vmatpush1.bf16.msra.mxu0 %v3806
      %3840 = vmatprep.subr.bf16.mxu0 0
      %3841 = vmatpush1.bf16.msra.mxu0 %v3807
      %3842 = vmatprep.subr.bf16.mxu0 0
      %3843 = vmatpush1.bf16.msra.mxu0 %v3808
      %3844 = vmatprep.subr.bf16.mxu0 0
      %3845 = vmatpush1.bf16.msra.mxu0 %v3809
      %3846 = vmatprep.subr.bf16.mxu0 0
      %3847 = vmatpush1.bf16.msra.mxu0 %v3810
      %3848 = vmatprep.subr.bf16.mxu0 0
      %3849 = vmatpush1.bf16.msra.mxu0 %v3811
      %3850 = vmatprep.subr.bf16.mxu0 0
      %3851 = vmatpush1.bf16.msra.mxu0 %v3812
      %3852 = vmatprep.subr.bf16.mxu0 0
      %3853 = vmatpush1.bf16.msra.mxu0 %v3813
      %3854 = vmatprep.subr.bf16.mxu0 0
      %3855 = vmatpush1.bf16.msra.mxu0 %v3814
      %3856 = vmatprep.subr.bf16.mxu0 0
      %3857 = vmatpush1.bf16.msra.mxu0 %v3815
      %3858 = vmatprep.subr.bf16.mxu0 0
      %3859 = vmatpush1.bf16.msra.mxu0 %v3816
      %3860 = vmatprep.subr.bf16.mxu0 0
      %3861 = vmatpush1.bf16.msra.mxu0 %v3817
      %3862 = vmatprep.subr.bf16.mxu0 0
      %3863 = vmatpush1.bf16.msra.mxu0 %v3818
      %3864 = vmatprep.subr.bf16.mxu0 0
      %3865 = vmatpush1.bf16.msra.mxu0 %v3819
      %3866 = vmatprep.subr.bf16.mxu0 0
      %3867 = vmatpush1.bf16.msra.mxu0 %v3820
      %3868 = vmatprep.subr.bf16.mxu0 0
      %3869 = vmatpush1.bf16.msra.mxu0 %v3821
      %3870 = vmatprep.mubr.bf16.mxu0 %v3604
      %3871 = vmatmul.mubr.bf16.gmra.mrb[0].mxu0 %v3603
      %v3872 = vpop.f32.mrb[0].mxu0
      %v3873 = vadd.f32 %v3740, %v3872
      %v3874 = vpop.f32.mrb[0].mxu0
      %v3875 = vpop.f32.mrb[0].mxu0
      %v3876 = vadd.f32 %v3740, %v3875
      %v3877 = vpop.f32.mrb[0].mxu0
      %3878 = vmatprep.mubr.bf16.mxu0 %v3606
      %3879 = vmatmul.mubr.bf16.gmra.mrb[0].mxu0 %v3605
      %v3880 = vpop.f32.mrb[0].mxu0
      %v3881 = vadd.f32 %v3740, %v3880
      %v3882 = vpop.f32.mrb[0].mxu0
      %v3883 = vpop.f32.mrb[0].mxu0
      %v3884 = vadd.f32 %v3740, %v3883
      %v3885 = vpop.f32.mrb[0].mxu0
      %3886 = vmatprep.mubr.bf16.mxu0 %v3608
      %3887 = vmatmul.mubr.bf16.gmra.mrb[0].mxu0 %v3607
      %v3888 = vpop.f32.mrb[0].mxu0
      %v3889 = vadd.f32 %v3740, %v3888
      %v3890 = vpop.f32.mrb[0].mxu0
      %v3891 = vpop.f32.mrb[0].mxu0
      %v3892 = vadd.f32 %v3740, %v3891
      %v3893 = vpop.f32.mrb[0].mxu0
      %3894 = vmatprep.mubr.bf16.mxu0 %v3610
      %3895 = vmatmul.mubr.bf16.gmra.mrb[0].mxu0 %v3609
      %v3896 = vpop.f32.mrb[0].mxu0
      %v3897 = vadd.f32 %v3740, %v3896
      %v3898 = vpop.f32.mrb[0].mxu0
      %v3899 = vpop.f32.mrb[0].mxu0
      %v3900 = vadd.f32 %v3740, %v3899
      %v3901 = vpop.f32.mrb[0].mxu0
      %3902 = vmatprep.mubr.bf16.mxu0 %v3612
      %3903 = vmatmul.mubr.bf16.gmra.mrb[0].mxu0 %v3611
      %v3904 = vpop.f32.mrb[0].mxu0
      %v3905 = vadd.f32 %v3740, %v3904
      %v3906 = vpop.f32.mrb[0].mxu0
      %v3907 = vpop.f32.mrb[0].mxu0
      %v3908 = vadd.f32 %v3740, %v3907
      %v3909 = vpop.f32.mrb[0].mxu0
      %3910 = vmatprep.mubr.bf16.mxu0 %v3614
      %3911 = vmatmul.mubr.bf16.gmra.mrb[0].mxu0 %v3613
      %v3912 = vpop.f32.mrb[0].mxu0
      %v3913 = vadd.f32 %v3740, %v3912
      %v3914 = vpop.f32.mrb[0].mxu0
      %v3915 = vpop.f32.mrb[0].mxu0
      %v3916 = vadd.f32 %v3740, %v3915
      %v3917 = vpop.f32.mrb[0].mxu0
      %3918 = vmatprep.mubr.bf16.mxu0 %v3616
      %3919 = vmatmul.mubr.bf16.gmra.mrb[0].mxu0 %v3615
      %v3920 = vpop.f32.mrb[0].mxu0
      %v3921 = vadd.f32 %v3740, %v3920
      %v3922 = vpop.f32.mrb[0].mxu0
      %v3923 = vpop.f32.mrb[0].mxu0
      %v3924 = vadd.f32 %v3740, %v3923
      %v3925 = vpop.f32.mrb[0].mxu0
      %3926 = vmatprep.mubr.bf16.mxu0 %v3618
      %3927 = vmatmul.mubr.bf16.gmra.mrb[0].mxu0 %v3617
      %v3928 = vpop.f32.mrb[0].mxu0
      %v3929 = vadd.f32 %v3740, %v3928
      %v3930 = vpop.f32.mrb[0].mxu0
      %v3931 = vpop.f32.mrb[0].mxu0
      %v3932 = vadd.f32 %v3740, %v3931
      %v3933 = vpop.f32.mrb[0].mxu0
      %3934 = vmatprep.mubr.bf16.mxu0 %v3620
      %3935 = vmatmul.mubr.bf16.gmra.mrb[0].mxu0 %v3619
      %v3936 = vpop.f32.mrb[0].mxu0
      %v3937 = vadd.f32 %v3740, %v3936
      %v3938 = vpop.f32.mrb[0].mxu0
      %v3939 = vpop.f32.mrb[0].mxu0
      %v3940 = vadd.f32 %v3740, %v3939
      %v3941 = vpop.f32.mrb[0].mxu0
      %3942 = vmatprep.mubr.bf16.mxu0 %v3622
      %3943 = vmatmul.mubr.bf16.gmra.mrb[0].mxu0 %v3621
      %v3944 = vpop.f32.mrb[0].mxu0
      %v3945 = vadd.f32 %v3740, %v3944
      %v3946 = vpop.f32.mrb[0].mxu0
      %v3947 = vpop.f32.mrb[0].mxu0
      %v3948 = vadd.f32 %v3740, %v3947
      %v3949 = vpop.f32.mrb[0].mxu0
      %3950 = vmatprep.mubr.bf16.mxu0 %v3624
      %3951 = vmatmul.mubr.bf16.gmra.mrb[0].mxu0 %v3623
      %v3952 = vpop.f32.mrb[0].mxu0
      %v3953 = vadd.f32 %v3740, %v3952
      %v3954 = vpop.f32.mrb[0].mxu0
      %v3955 = vpop.f32.mrb[0].mxu0
      %v3956 = vadd.f32 %v3740, %v3955
      %v3957 = vpop.f32.mrb[0].mxu0
      %3958 = vmatprep.mubr.bf16.mxu0 %v3626
      %3959 = vmatmul.mubr.bf16.gmra.mrb[0].mxu0 %v3625
      %v3960 = vpop.f32.mrb[0].mxu0
      %v3961 = vadd.f32 %v3740, %v3960
      %v3962 = vpop.f32.mrb[0].mxu0
      %v3963 = vpop.f32.mrb[0].mxu0
      %v3964 = vadd.f32 %v3740, %v3963
      %v3965 = vpop.f32.mrb[0].mxu0
      %3966 = vmatprep.mubr.bf16.mxu0 %v3628
      %3967 = vmatmul.mubr.bf16.gmra.mrb[0].mxu0 %v3627
      %v3968 = vpop.f32.mrb[0].mxu0
      %v3969 = vadd.f32 %v3740, %v3968
      %v3970 = vpop.f32.mrb[0].mxu0
      %v3971 = vpop.f32.mrb[0].mxu0
      %v3972 = vadd.f32 %v3740, %v3971
      %v3973 = vpop.f32.mrb[0].mxu0
      %3974 = vmatprep.mubr.bf16.mxu0 %v3630
      %3975 = vmatmul.mubr.bf16.gmra.mrb[0].mxu0 %v3629
      %v3976 = vpop.f32.mrb[0].mxu0
      %v3977 = vadd.f32 %v3740, %v3976
      %v3978 = vpop.f32.mrb[0].mxu0
      %v3979 = vpop.f32.mrb[0].mxu0
      %v3980 = vadd.f32 %v3740, %v3979
      %v3981 = vpop.f32.mrb[0].mxu0
      %3982 = vmatprep.mubr.bf16.mxu0 %v3632
      %3983 = vmatmul.mubr.bf16.gmra.mrb[0].mxu0 %v3631
      %v3984 = vpop.f32.mrb[0].mxu0
      %v3985 = vadd.f32 %v3740, %v3984
      %v3986 = vpop.f32.mrb[0].mxu0
      %v3987 = vpop.f32.mrb[0].mxu0
      %v3988 = vadd.f32 %v3740, %v3987
      %v3989 = vpop.f32.mrb[0].mxu0
      %3990 = vmatprep.mubr.bf16.mxu0 %v3634
      %3991 = vmatmul.mubr.bf16.gmra.mrb[0].mxu0 %v3633
      %v3992 = vpop.f32.mrb[0].mxu0
      %v3993 = vadd.f32 %v3740, %v3992
      %v3994 = vpop.f32.mrb[0].mxu0
      %v3995 = vpop.f32.mrb[0].mxu0
      %v3996 = vadd.f32 %v3740, %v3995
      %v3997 = vpop.f32.mrb[0].mxu0
      %3998 = vmatprep.mubr.bf16.mxu0 %v3636
      %3999 = vmatmul.mubr.bf16.gmra.mrb[0].mxu0 %v3635
      %v4000 = vpop.f32.mrb[0].mxu0
      %v4001 = vadd.f32 %v3740, %v4000
      %v4002 = vpop.f32.mrb[0].mxu0
      %v4003 = vpop.f32.mrb[0].mxu0
      %v4004 = vadd.f32 %v3740, %v4003
      %v4005 = vpop.f32.mrb[0].mxu0
      %4006 = vmatprep.mubr.bf16.mxu0 %v3638
      %4007 = vmatmul.mubr.bf16.gmra.mrb[0].mxu0 %v3637
      %v4008 = vpop.f32.mrb[0].mxu0
      %v4009 = vadd.f32 %v3740, %v4008
      %v4010 = vpop.f32.mrb[0].mxu0
      %v4011 = vpop.f32.mrb[0].mxu0
      %v4012 = vadd.f32 %v3740, %v4011
      %v4013 = vpop.f32.mrb[0].mxu0
      %4014 = vmatprep.mubr.bf16.mxu0 %v3640
      %4015 = vmatmul.mubr.bf16.gmra.mrb[0].mxu0 %v3639
      %v4016 = vpop.f32.mrb[0].mxu0
      %v4017 = vadd.f32 %v3740, %v4016
      %v4018 = vpop.f32.mrb[0].mxu0
      %v4019 = vpop.f32.mrb[0].mxu0
      %v4020 = vadd.f32 %v3740, %v4019
      %v4021 = vpop.f32.mrb[0].mxu0
      %4022 = vmatprep.mubr.bf16.mxu0 %v3642
      %4023 = vmatmul.mubr.bf16.gmra.mrb[0].mxu0 %v3641
      %v4024 = vpop.f32.mrb[0].mxu0
      %v4025 = vadd.f32 %v3740, %v4024
      %v4026 = vpop.f32.mrb[0].mxu0
      %v4027 = vpop.f32.mrb[0].mxu0
      %v4028 = vadd.f32 %v3740, %v4027
      %v4029 = vpop.f32.mrb[0].mxu0
      %4030 = vmatprep.mubr.bf16.mxu0 %v3644
      %4031 = vmatmul.mubr.bf16.gmra.mrb[0].mxu0 %v3643
      %v4032 = vpop.f32.mrb[0].mxu0
      %v4033 = vadd.f32 %v3740, %v4032
      %v4034 = vpop.f32.mrb[0].mxu0
      %v4035 = vpop.f32.mrb[0].mxu0
      %v4036 = vadd.f32 %v3740, %v4035
      %v4037 = vpop.f32.mrb[0].mxu0
      %4038 = vmatprep.mubr.bf16.mxu0 %v3646
      %4039 = vmatmul.mubr.bf16.gmra.mrb[0].mxu0 %v3645
      %v4040 = vpop.f32.mrb[0].mxu0
      %v4041 = vadd.f32 %v3740, %v4040
      %v4042 = vpop.f32.mrb[0].mxu0
      %v4043 = vpop.f32.mrb[0].mxu0
      %v4044 = vadd.f32 %v3740, %v4043
      %v4045 = vpop.f32.mrb[0].mxu0
      %4046 = vmatprep.mubr.bf16.mxu0 %v3648
      %4047 = vmatmul.mubr.bf16.gmra.mrb[0].mxu0 %v3647
      %v4048 = vpop.f32.mrb[0].mxu0
      %v4049 = vadd.f32 %v3740, %v4048
      %v4050 = vpop.f32.mrb[0].mxu0
      %v4051 = vpop.f32.mrb[0].mxu0
      %v4052 = vadd.f32 %v3740, %v4051
      %v4053 = vpop.f32.mrb[0].mxu0
      %4054 = vmatprep.mubr.bf16.mxu0 %v3650
      %4055 = vmatmul.mubr.bf16.gmra.mrb[0].mxu0 %v3649
      %v4056 = vpop.f32.mrb[0].mxu0
      %v4057 = vadd.f32 %v3740, %v4056
      %v4058 = vpop.f32.mrb[0].mxu0
      %v4059 = vpop.f32.mrb[0].mxu0
      %v4060 = vadd.f32 %v3740, %v4059
      %v4061 = vpop.f32.mrb[0].mxu0
      %4062 = vmatprep.mubr.bf16.mxu0 %v3652
      %4063 = vmatmul.mubr.bf16.gmra.mrb[0].mxu0 %v3651
      %v4064 = vpop.f32.mrb[0].mxu0
      %v4065 = vadd.f32 %v3740, %v4064
      %v4066 = vpop.f32.mrb[0].mxu0
      %v4067 = vpop.f32.mrb[0].mxu0
      %v4068 = vadd.f32 %v3740, %v4067
      %v4069 = vpop.f32.mrb[0].mxu0
      %4070 = vmatprep.mubr.bf16.mxu0 %v3654
      %4071 = vmatmul.mubr.bf16.gmra.mrb[0].mxu0 %v3653
      %v4072 = vpop.f32.mrb[0].mxu0
      %v4073 = vadd.f32 %v3740, %v4072
      %v4074 = vpop.f32.mrb[0].mxu0
      %v4075 = vpop.f32.mrb[0].mxu0
      %v4076 = vadd.f32 %v3740, %v4075
      %v4077 = vpop.f32.mrb[0].mxu0
      %4078 = vmatprep.mubr.bf16.mxu0 %v3656
      %4079 = vmatmul.mubr.bf16.gmra.mrb[0].mxu0 %v3655
      %v4080 = vpop.f32.mrb[0].mxu0
      %v4081 = vadd.f32 %v3740, %v4080
      %v4082 = vpop.f32.mrb[0].mxu0
      %v4083 = vpop.f32.mrb[0].mxu0
      %v4084 = vadd.f32 %v3740, %v4083
      %v4085 = vpop.f32.mrb[0].mxu0
      %4086 = vmatprep.mubr.bf16.mxu0 %v3658
      %4087 = vmatmul.mubr.bf16.gmra.mrb[0].mxu0 %v3657
      %v4088 = vpop.f32.mrb[0].mxu0
      %v4089 = vadd.f32 %v3740, %v4088
      %v4090 = vpop.f32.mrb[0].mxu0
      %v4091 = vpop.f32.mrb[0].mxu0
      %v4092 = vadd.f32 %v3740, %v4091
      %v4093 = vpop.f32.mrb[0].mxu0
      %4094 = vmatprep.mubr.bf16.mxu0 %v3660
      %4095 = vmatmul.mubr.bf16.gmra.mrb[0].mxu0 %v3659
      %v4096 = vpop.f32.mrb[0].mxu0
      %v4097 = vadd.f32 %v3740, %v4096
      %v4098 = vpop.f32.mrb[0].mxu0
      %v4099 = vpop.f32.mrb[0].mxu0
      %v4100 = vadd.f32 %v3740, %v4099
      %v4101 = vpop.f32.mrb[0].mxu0
      %4102 = vmatprep.mubr.bf16.mxu0 %v3662
      %4103 = vmatmul.mubr.bf16.gmra.mrb[0].mxu0 %v3661
      %v4104 = vpop.f32.mrb[0].mxu0
      %v4105 = vadd.f32 %v3740, %v4104
      %v4106 = vpop.f32.mrb[0].mxu0
      %v4107 = vpop.f32.mrb[0].mxu0
      %v4108 = vadd.f32 %v3740, %v4107
      %v4109 = vpop.f32.mrb[0].mxu0
      %4110 = vmatprep.mubr.bf16.mxu0 %v3664
      %4111 = vmatmul.mubr.bf16.gmra.mrb[0].mxu0 %v3663
      %v4112 = vpop.f32.mrb[0].mxu0
      %v4113 = vadd.f32 %v3740, %v4112
      %v4114 = vpop.f32.mrb[0].mxu0
      %v4115 = vpop.f32.mrb[0].mxu0
      %v4116 = vadd.f32 %v3740, %v4115
      %v4117 = vpop.f32.mrb[0].mxu0
      %4118 = vmatprep.mubr.bf16.mxu0 %v3666
      %4119 = vmatmul.mubr.bf16.gmra.mrb[0].mxu0 %v3665
      %v4120 = vpop.f32.mrb[0].mxu0
      %v4121 = vadd.f32 %v3740, %v4120
      %v4122 = vpop.f32.mrb[0].mxu0
      %v4123 = vpop.f32.mrb[0].mxu0
      %v4124 = vadd.f32 %v3740, %v4123
      %v4125 = vpop.f32.mrb[0].mxu0
      %4126 = vmatprep.mubr.bf16.mxu0 %v3668
      %4127 = vmatmul.mubr.bf16.gmra.mrb[0].mxu0 %v3667
      %v4128 = vpop.f32.mrb[0].mxu0
      %v4129 = vadd.f32 %v3740, %v4128
      %v4130 = vpop.f32.mrb[0].mxu0
      %v4131 = vpop.f32.mrb[0].mxu0
      %v4132 = vadd.f32 %v3740, %v4131
      %v4133 = vpop.f32.mrb[0].mxu0
      %4134 = vmatprep.mubr.bf16.mxu0 %v3670
      %4135 = vmatmul.mubr.bf16.gmra.mrb[0].mxu0 %v3669
      %v4136 = vpop.f32.mrb[0].mxu0
      %v4137 = vadd.f32 %v3740, %v4136
      %v4138 = vpop.f32.mrb[0].mxu0
      %v4139 = vpop.f32.mrb[0].mxu0
      %v4140 = vadd.f32 %v3740, %v4139
      %v4141 = vpop.f32.mrb[0].mxu0
      %4142 = vmatprep.mubr.bf16.mxu0 %v3672
      %4143 = vmatmul.mubr.bf16.gmra.mrb[0].mxu0 %v3671
      %v4144 = vpop.f32.mrb[0].mxu0
      %v4145 = vadd.f32 %v3740, %v4144
      %v4146 = vpop.f32.mrb[0].mxu0
      %v4147 = vpop.f32.mrb[0].mxu0
      %v4148 = vadd.f32 %v3740, %v4147
      %v4149 = vpop.f32.mrb[0].mxu0
      %4150 = vmatprep.mubr.bf16.mxu0 %v3674
      %4151 = vmatmul.mubr.bf16.gmra.mrb[0].mxu0 %v3673
      %v4152 = vpop.f32.mrb[0].mxu0
      %v4153 = vadd.f32 %v3740, %v4152
      %v4154 = vpop.f32.mrb[0].mxu0
      %v4155 = vpop.f32.mrb[0].mxu0
      %v4156 = vadd.f32 %v3740, %v4155
      %v4157 = vpop.f32.mrb[0].mxu0
      %4158 = vmatprep.mubr.bf16.mxu0 %v3676
      %4159 = vmatmul.mubr.bf16.gmra.mrb[0].mxu0 %v3675
      %v4160 = vpop.f32.mrb[0].mxu0
      %v4161 = vadd.f32 %v3740, %v4160
      %v4162 = vpop.f32.mrb[0].mxu0
      %v4163 = vpop.f32.mrb[0].mxu0
      %v4164 = vadd.f32 %v3740, %v4163
      %v4165 = vpop.f32.mrb[0].mxu0
      %4166 = vmatprep.mubr.bf16.mxu0 %v3678
      %4167 = vmatmul.mubr.bf16.gmra.mrb[0].mxu0 %v3677
      %v4168 = vpop.f32.mrb[0].mxu0
      %v4169 = vadd.f32 %v3740, %v4168
      %v4170 = vpop.f32.mrb[0].mxu0
      %v4171 = vpop.f32.mrb[0].mxu0
      %v4172 = vadd.f32 %v3740, %v4171
      %v4173 = vpop.f32.mrb[0].mxu0
      %4174 = vmatprep.mubr.bf16.mxu0 %v3680
      %4175 = vmatmul.mubr.bf16.gmra.mrb[0].mxu0 %v3679
      %v4176 = vpop.f32.mrb[0].mxu0
      %v4177 = vadd.f32 %v3740, %v4176
      %v4178 = vpop.f32.mrb[0].mxu0
      %v4179 = vpop.f32.mrb[0].mxu0
      %v4180 = vadd.f32 %v3740, %v4179
      %v4181 = vpop.f32.mrb[0].mxu0
      %4182 = vmatprep.mubr.bf16.mxu0 %v3682
      %4183 = vmatmul.mubr.bf16.gmra.mrb[0].mxu0 %v3681
      %v4184 = vpop.f32.mrb[0].mxu0
      %v4185 = vadd.f32 %v3740, %v4184
      %v4186 = vpop.f32.mrb[0].mxu0
      %v4187 = vpop.f32.mrb[0].mxu0
      %v4188 = vadd.f32 %v3740, %v4187
      %v4189 = vpop.f32.mrb[0].mxu0
      %4190 = vmatprep.mubr.bf16.mxu0 %v3684
      %4191 = vmatmul.mubr.bf16.gmra.mrb[0].mxu0 %v3683
      %v4192 = vpop.f32.mrb[0].mxu0
      %v4193 = vadd.f32 %v3740, %v4192
      %v4194 = vpop.f32.mrb[0].mxu0
      %v4195 = vpop.f32.mrb[0].mxu0
      %v4196 = vadd.f32 %v3740, %v4195
      %v4197 = vpop.f32.mrb[0].mxu0
      %4198 = vmatprep.mubr.bf16.mxu0 %v3686
      %4199 = vmatmul.mubr.bf16.gmra.mrb[0].mxu0 %v3685
      %v4200 = vpop.f32.mrb[0].mxu0
      %v4201 = vadd.f32 %v3740, %v4200
      %v4202 = vpop.f32.mrb[0].mxu0
      %v4203 = vpop.f32.mrb[0].mxu0
      %v4204 = vadd.f32 %v3740, %v4203
      %v4205 = vpop.f32.mrb[0].mxu0
      %4206 = vmatprep.mubr.bf16.mxu0 %v3688
      %4207 = vmatmul.mubr.bf16.gmra.mrb[0].mxu0 %v3687
      %v4208 = vpop.f32.mrb[0].mxu0
      %v4209 = vadd.f32 %v3740, %v4208
      %v4210 = vpop.f32.mrb[0].mxu0
      %v4211 = vpop.f32.mrb[0].mxu0
      %v4212 = vadd.f32 %v3740, %v4211
      %v4213 = vpop.f32.mrb[0].mxu0
      %4214 = vmatprep.mubr.bf16.mxu0 %v3690
      %4215 = vmatmul.mubr.bf16.gmra.mrb[0].mxu0 %v3689
      %v4216 = vpop.f32.mrb[0].mxu0
      %v4217 = vadd.f32 %v3740, %v4216
      %v4218 = vpop.f32.mrb[0].mxu0
      %v4219 = vpop.f32.mrb[0].mxu0
      %v4220 = vadd.f32 %v3740, %v4219
      %v4221 = vpop.f32.mrb[0].mxu0
      %4222 = vmatprep.mubr.bf16.mxu0 %v3692
      %4223 = vmatmul.mubr.bf16.gmra.mrb[0].mxu0 %v3691
      %v4224 = vpop.f32.mrb[0].mxu0
      %v4225 = vadd.f32 %v3740, %v4224
      %v4226 = vpop.f32.mrb[0].mxu0
      %v4227 = vpop.f32.mrb[0].mxu0
      %v4228 = vadd.f32 %v3740, %v4227
      %v4229 = vpop.f32.mrb[0].mxu0
      %4230 = vmatprep.mubr.bf16.mxu0 %v3694
      %4231 = vmatmul.mubr.bf16.gmra.mrb[0].mxu0 %v3693
      %v4232 = vpop.f32.mrb[0].mxu0
      %v4233 = vadd.f32 %v3740, %v4232
      %v4234 = vpop.f32.mrb[0].mxu0
      %v4235 = vpop.f32.mrb[0].mxu0
      %v4236 = vadd.f32 %v3740, %v4235
      %v4237 = vpop.f32.mrb[0].mxu0
      %4238 = vmatprep.mubr.bf16.mxu0 %v3696
      %4239 = vmatmul.mubr.bf16.gmra.mrb[0].mxu0 %v3695
      %v4240 = vpop.f32.mrb[0].mxu0
      %v4241 = vadd.f32 %v3740, %v4240
      %v4242 = vpop.f32.mrb[0].mxu0
      %v4243 = vpop.f32.mrb[0].mxu0
      %v4244 = vadd.f32 %v3740, %v4243
      %v4245 = vpop.f32.mrb[0].mxu0
      %4246 = vmatprep.mubr.bf16.mxu0 %v3698
      %4247 = vmatmul.mubr.bf16.gmra.mrb[0].mxu0 %v3697
      %v4248 = vpop.f32.mrb[0].mxu0
      %v4249 = vadd.f32 %v3740, %v4248
      %v4250 = vpop.f32.mrb[0].mxu0
      %v4251 = vpop.f32.mrb[0].mxu0
      %v4252 = vadd.f32 %v3740, %v4251
      %v4253 = vpop.f32.mrb[0].mxu0
      %4254 = vmatprep.mubr.bf16.mxu0 %v3700
      %4255 = vmatmul.mubr.bf16.gmra.mrb[0].mxu0 %v3699
      %v4256 = vpop.f32.mrb[0].mxu0
      %v4257 = vadd.f32 %v3740, %v4256
      %v4258 = vpop.f32.mrb[0].mxu0
      %v4259 = vpop.f32.mrb[0].mxu0
      %v4260 = vadd.f32 %v3740, %v4259
      %v4261 = vpop.f32.mrb[0].mxu0
      %4262 = vmatprep.mubr.bf16.mxu0 %v3702
      %4263 = vmatmul.mubr.bf16.gmra.mrb[0].mxu0 %v3701
      %v4264 = vpop.f32.mrb[0].mxu0
      %v4265 = vadd.f32 %v3740, %v4264
      %v4266 = vpop.f32.mrb[0].mxu0
      %v4267 = vpop.f32.mrb[0].mxu0
      %v4268 = vadd.f32 %v3740, %v4267
      %v4269 = vpop.f32.mrb[0].mxu0
      %4270 = vdwg.mxu0
      %v4271 = vlaneseq
      %v4272 = vand.u32 %v4271, 127
      %vm4273 = vcmp.lt.s32.totalorder %v4272, 10
      %v4274 = vsel %vm4273, 1, 0
      %vm4275 = vcmp.eq.s32.totalorder %v4274, 1
      %v4276 = vsel %vm4275, %v3873, 0.0
      %v4277 = vsel %vm4275, %v3876, 0.0
      %v4278 = vsel %vm4275, %v3881, 0.0
      %v4279 = vsel %vm4275, %v3884, 0.0
      %v4280 = vsel %vm4275, %v3889, 0.0
      %v4281 = vsel %vm4275, %v3892, 0.0
      %v4282 = vsel %vm4275, %v3897, 0.0
      %v4283 = vsel %vm4275, %v3900, 0.0
      %v4284 = vsel %vm4275, %v3905, 0.0
      %v4285 = vsel %vm4275, %v3908, 0.0
      %v4286 = vsel %vm4275, %v3913, 0.0
      %v4287 = vsel %vm4275, %v3916, 0.0
      %v4288 = vsel %vm4275, %v3921, 0.0
      %v4289 = vsel %vm4275, %v3924, 0.0
      %v4290 = vsel %vm4275, %v3929, 0.0
      %v4291 = vsel %vm4275, %v3932, 0.0
      %v4292 = vsel %vm4275, %v3937, 0.0
      %v4293 = vsel %vm4275, %v3940, 0.0
      %v4294 = vsel %vm4275, %v3945, 0.0
      %v4295 = vsel %vm4275, %v3948, 0.0
      %v4296 = vsel %vm4275, %v3953, 0.0
      %v4297 = vsel %vm4275, %v3956, 0.0
      %v4298 = vsel %vm4275, %v3961, 0.0
      %v4299 = vsel %vm4275, %v3964, 0.0
      %v4300 = vsel %vm4275, %v3969, 0.0
      %v4301 = vsel %vm4275, %v3972, 0.0
      %v4302 = vsel %vm4275, %v3977, 0.0
      %v4303 = vsel %vm4275, %v3980, 0.0
      %v4304 = vsel %vm4275, %v3985, 0.0
      %v4305 = vsel %vm4275, %v3988, 0.0
      %v4306 = vsel %vm4275, %v3993, 0.0
      %v4307 = vsel %vm4275, %v3996, 0.0
      %v4308 = vsel %vm4275, %v4001, 0.0
      %v4309 = vsel %vm4275, %v4004, 0.0
      %v4310 = vsel %vm4275, %v4009, 0.0
      %v4311 = vsel %vm4275, %v4012, 0.0
      %v4312 = vsel %vm4275, %v4017, 0.0
      %v4313 = vsel %vm4275, %v4020, 0.0
      %v4314 = vsel %vm4275, %v4025, 0.0
      %v4315 = vsel %vm4275, %v4028, 0.0
      %v4316 = vsel %vm4275, %v4033, 0.0
      %v4317 = vsel %vm4275, %v4036, 0.0
      %v4318 = vsel %vm4275, %v4041, 0.0
      %v4319 = vsel %vm4275, %v4044, 0.0
      %v4320 = vsel %vm4275, %v4049, 0.0
      %v4321 = vsel %vm4275, %v4052, 0.0
      %v4322 = vsel %vm4275, %v4057, 0.0
      %v4323 = vsel %vm4275, %v4060, 0.0
      %v4324 = vsel %vm4275, %v4065, 0.0
      %v4325 = vsel %vm4275, %v4068, 0.0
      %v4326 = vsel %vm4275, %v4073, 0.0
      %v4327 = vsel %vm4275, %v4076, 0.0
      %v4328 = vsel %vm4275, %v4081, 0.0
      %v4329 = vsel %vm4275, %v4084, 0.0
      %v4330 = vsel %vm4275, %v4089, 0.0
      %v4331 = vsel %vm4275, %v4092, 0.0
      %v4332 = vsel %vm4275, %v4097, 0.0
      %v4333 = vsel %vm4275, %v4100, 0.0
      %v4334 = vsel %vm4275, %v4105, 0.0
      %v4335 = vsel %vm4275, %v4108, 0.0
      %v4336 = vsel %vm4275, %v4113, 0.0
      %v4337 = vsel %vm4275, %v4116, 0.0
      %v4338 = vsel %vm4275, %v4121, 0.0
      %v4339 = vsel %vm4275, %v4124, 0.0
      %v4340 = vsel %vm4275, %v4129, 0.0
      %v4341 = vsel %vm4275, %v4132, 0.0
      %v4342 = vsel %vm4275, %v4137, 0.0
      %v4343 = vsel %vm4275, %v4140, 0.0
      %v4344 = vsel %vm4275, %v4145, 0.0
      %v4345 = vsel %vm4275, %v4148, 0.0
      %v4346 = vsel %vm4275, %v4153, 0.0
      %v4347 = vsel %vm4275, %v4156, 0.0
      %v4348 = vsel %vm4275, %v4161, 0.0
      %v4349 = vsel %vm4275, %v4164, 0.0
      %v4350 = vsel %vm4275, %v4169, 0.0
      %v4351 = vsel %vm4275, %v4172, 0.0
      %v4352 = vsel %vm4275, %v4177, 0.0
      %v4353 = vsel %vm4275, %v4180, 0.0
      %v4354 = vsel %vm4275, %v4185, 0.0
      %v4355 = vsel %vm4275, %v4188, 0.0
      %v4356 = vsel %vm4275, %v4193, 0.0
      %v4357 = vsel %vm4275, %v4196, 0.0
      %v4358 = vsel %vm4275, %v4201, 0.0
      %v4359 = vsel %vm4275, %v4204, 0.0
      %v4360 = vsel %vm4275, %v4209, 0.0
      %v4361 = vsel %vm4275, %v4212, 0.0
      %v4362 = vsel %vm4275, %v4217, 0.0
      %v4363 = vsel %vm4275, %v4220, 0.0
      %v4364 = vsel %vm4275, %v4225, 0.0
      %v4365 = vsel %vm4275, %v4228, 0.0
      %v4366 = vsel %vm4275, %v4233, 0.0
      %v4367 = vsel %vm4275, %v4236, 0.0
      %v4368 = vsel %vm4275, %v4241, 0.0
      %v4369 = vsel %vm4275, %v4244, 0.0
      %v4370 = vsel %vm4275, %v4249, 0.0
      %v4371 = vsel %vm4275, %v4252, 0.0
      %v4372 = vsel %vm4275, %v4257, 0.0
      %v4373 = vsel %vm4275, %v4260, 0.0
      %v4374 = vsel %vm4275, %v4265, 0.0
      %v4375 = vsel %vm4275, %v4268, 0.0
      %4376 = vadd.xlane.f32.xlu0 %v4276
      %v4377 = vpop.xlane.xlu0 %4376
      %4378 = vadd.xlane.f32.xlu0 %v4277
      %v4379 = vpop.xlane.xlu0 %4378
      %4380 = vadd.xlane.f32.xlu0 %v4278
      %v4381 = vpop.xlane.xlu0 %4380
      %4382 = vadd.xlane.f32.xlu0 %v4279
      %v4383 = vpop.xlane.xlu0 %4382
      %4384 = vadd.xlane.f32.xlu0 %v4280
      %v4385 = vpop.xlane.xlu0 %4384
      %4386 = vadd.xlane.f32.xlu0 %v4281
      %v4387 = vpop.xlane.xlu0 %4386
      %4388 = vadd.xlane.f32.xlu0 %v4282
      %v4389 = vpop.xlane.xlu0 %4388
      %4390 = vadd.xlane.f32.xlu0 %v4283
      %v4391 = vpop.xlane.xlu0 %4390
      %4392 = vadd.xlane.f32.xlu0 %v4284
      %v4393 = vpop.xlane.xlu0 %4392
      %4394 = vadd.xlane.f32.xlu0 %v4285
      %v4395 = vpop.xlane.xlu0 %4394
      %4396 = vadd.xlane.f32.xlu0 %v4286
      %v4397 = vpop.xlane.xlu0 %4396
      %4398 = vadd.xlane.f32.xlu0 %v4287
      %v4399 = vpop.xlane.xlu0 %4398
      %4400 = vadd.xlane.f32.xlu0 %v4288
      %v4401 = vpop.xlane.xlu0 %4400
      %4402 = vadd.xlane.f32.xlu0 %v4289
      %v4403 = vpop.xlane.xlu0 %4402
      %4404 = vadd.xlane.f32.xlu0 %v4290
      %v4405 = vpop.xlane.xlu0 %4404
      %4406 = vadd.xlane.f32.xlu0 %v4291
      %v4407 = vpop.xlane.xlu0 %4406
      %4408 = vadd.xlane.f32.xlu0 %v4292
      %v4409 = vpop.xlane.xlu0 %4408
      %4410 = vadd.xlane.f32.xlu0 %v4293
      %v4411 = vpop.xlane.xlu0 %4410
      %4412 = vadd.xlane.f32.xlu0 %v4294
      %v4413 = vpop.xlane.xlu0 %4412
      %4414 = vadd.xlane.f32.xlu0 %v4295
      %v4415 = vpop.xlane.xlu0 %4414
      %4416 = vadd.xlane.f32.xlu0 %v4296
      %v4417 = vpop.xlane.xlu0 %4416
      %4418 = vadd.xlane.f32.xlu0 %v4297
      %v4419 = vpop.xlane.xlu0 %4418
      %4420 = vadd.xlane.f32.xlu0 %v4298
      %v4421 = vpop.xlane.xlu0 %4420
      %4422 = vadd.xlane.f32.xlu0 %v4299
      %v4423 = vpop.xlane.xlu0 %4422
      %4424 = vadd.xlane.f32.xlu0 %v4300
      %v4425 = vpop.xlane.xlu0 %4424
      %4426 = vadd.xlane.f32.xlu0 %v4301
      %v4427 = vpop.xlane.xlu0 %4426
      %4428 = vadd.xlane.f32.xlu0 %v4302
      %v4429 = vpop.xlane.xlu0 %4428
      %4430 = vadd.xlane.f32.xlu0 %v4303
      %v4431 = vpop.xlane.xlu0 %4430
      %4432 = vadd.xlane.f32.xlu0 %v4304
      %v4433 = vpop.xlane.xlu0 %4432
      %4434 = vadd.xlane.f32.xlu0 %v4305
      %v4435 = vpop.xlane.xlu0 %4434
      %4436 = vadd.xlane.f32.xlu0 %v4306
      %v4437 = vpop.xlane.xlu0 %4436
      %4438 = vadd.xlane.f32.xlu0 %v4307
      %v4439 = vpop.xlane.xlu0 %4438
      %4440 = vadd.xlane.f32.xlu0 %v4308
      %v4441 = vpop.xlane.xlu0 %4440
      %4442 = vadd.xlane.f32.xlu0 %v4309
      %v4443 = vpop.xlane.xlu0 %4442
      %4444 = vadd.xlane.f32.xlu0 %v4310
      %v4445 = vpop.xlane.xlu0 %4444
      %4446 = vadd.xlane.f32.xlu0 %v4311
      %v4447 = vpop.xlane.xlu0 %4446
      %4448 = vadd.xlane.f32.xlu0 %v4312
      %v4449 = vpop.xlane.xlu0 %4448
      %4450 = vadd.xlane.f32.xlu0 %v4313
      %v4451 = vpop.xlane.xlu0 %4450
      %4452 = vadd.xlane.f32.xlu0 %v4314
      %v4453 = vpop.xlane.xlu0 %4452
      %4454 = vadd.xlane.f32.xlu0 %v4315
      %v4455 = vpop.xlane.xlu0 %4454
      %4456 = vadd.xlane.f32.xlu0 %v4316
      %v4457 = vpop.xlane.xlu0 %4456
      %4458 = vadd.xlane.f32.xlu0 %v4317
      %v4459 = vpop.xlane.xlu0 %4458
      %4460 = vadd.xlane.f32.xlu0 %v4318
      %v4461 = vpop.xlane.xlu0 %4460
      %4462 = vadd.xlane.f32.xlu0 %v4319
      %v4463 = vpop.xlane.xlu0 %4462
      %4464 = vadd.xlane.f32.xlu0 %v4320
      %v4465 = vpop.xlane.xlu0 %4464
      %4466 = vadd.xlane.f32.xlu0 %v4321
      %v4467 = vpop.xlane.xlu0 %4466
      %4468 = vadd.xlane.f32.xlu0 %v4322
      %v4469 = vpop.xlane.xlu0 %4468
      %4470 = vadd.xlane.f32.xlu0 %v4323
      %v4471 = vpop.xlane.xlu0 %4470
      %4472 = vadd.xlane.f32.xlu0 %v4324
      %v4473 = vpop.xlane.xlu0 %4472
      %4474 = vadd.xlane.f32.xlu0 %v4325
      %v4475 = vpop.xlane.xlu0 %4474
      %4476 = vadd.xlane.f32.xlu0 %v4326
      %v4477 = vpop.xlane.xlu0 %4476
      %4478 = vadd.xlane.f32.xlu0 %v4327
      %v4479 = vpop.xlane.xlu0 %4478
      %4480 = vadd.xlane.f32.xlu0 %v4328
      %v4481 = vpop.xlane.xlu0 %4480
      %4482 = vadd.xlane.f32.xlu0 %v4329
      %v4483 = vpop.xlane.xlu0 %4482
      %4484 = vadd.xlane.f32.xlu0 %v4330
      %v4485 = vpop.xlane.xlu0 %4484
      %4486 = vadd.xlane.f32.xlu0 %v4331
      %v4487 = vpop.xlane.xlu0 %4486
      %4488 = vadd.xlane.f32.xlu0 %v4332
      %v4489 = vpop.xlane.xlu0 %4488
      %4490 = vadd.xlane.f32.xlu0 %v4333
      %v4491 = vpop.xlane.xlu0 %4490
      %4492 = vadd.xlane.f32.xlu0 %v4334
      %v4493 = vpop.xlane.xlu0 %4492
      %4494 = vadd.xlane.f32.xlu0 %v4335
      %v4495 = vpop.xlane.xlu0 %4494
      %4496 = vadd.xlane.f32.xlu0 %v4336
      %v4497 = vpop.xlane.xlu0 %4496
      %4498 = vadd.xlane.f32.xlu0 %v4337
      %v4499 = vpop.xlane.xlu0 %4498
      %4500 = vadd.xlane.f32.xlu0 %v4338
      %v4501 = vpop.xlane.xlu0 %4500
      %4502 = vadd.xlane.f32.xlu0 %v4339
      %v4503 = vpop.xlane.xlu0 %4502
      %4504 = vadd.xlane.f32.xlu0 %v4340
      %v4505 = vpop.xlane.xlu0 %4504
      %4506 = vadd.xlane.f32.xlu0 %v4341
      %v4507 = vpop.xlane.xlu0 %4506
      %4508 = vadd.xlane.f32.xlu0 %v4342
      %v4509 = vpop.xlane.xlu0 %4508
      %4510 = vadd.xlane.f32.xlu0 %v4343
      %v4511 = vpop.xlane.xlu0 %4510
      %4512 = vadd.xlane.f32.xlu0 %v4344
      %v4513 = vpop.xlane.xlu0 %4512
      %4514 = vadd.xlane.f32.xlu0 %v4345
      %v4515 = vpop.xlane.xlu0 %4514
      %4516 = vadd.xlane.f32.xlu0 %v4346
      %v4517 = vpop.xlane.xlu0 %4516
      %4518 = vadd.xlane.f32.xlu0 %v4347
      %v4519 = vpop.xlane.xlu0 %4518
      %4520 = vadd.xlane.f32.xlu0 %v4348
      %v4521 = vpop.xlane.xlu0 %4520
      %4522 = vadd.xlane.f32.xlu0 %v4349
      %v4523 = vpop.xlane.xlu0 %4522
      %4524 = vadd.xlane.f32.xlu0 %v4350
      %v4525 = vpop.xlane.xlu0 %4524
      %4526 = vadd.xlane.f32.xlu0 %v4351
      %v4527 = vpop.xlane.xlu0 %4526
      %4528 = vadd.xlane.f32.xlu0 %v4352
      %v4529 = vpop.xlane.xlu0 %4528
      %4530 = vadd.xlane.f32.xlu0 %v4353
      %v4531 = vpop.xlane.xlu0 %4530
      %4532 = vadd.xlane.f32.xlu0 %v4354
      %v4533 = vpop.xlane.xlu0 %4532
      %4534 = vadd.xlane.f32.xlu0 %v4355
      %v4535 = vpop.xlane.xlu0 %4534
      %4536 = vadd.xlane.f32.xlu0 %v4356
      %v4537 = vpop.xlane.xlu0 %4536
      %4538 = vadd.xlane.f32.xlu0 %v4357
      %v4539 = vpop.xlane.xlu0 %4538
      %4540 = vadd.xlane.f32.xlu0 %v4358
      %v4541 = vpop.xlane.xlu0 %4540
      %4542 = vadd.xlane.f32.xlu0 %v4359
      %v4543 = vpop.xlane.xlu0 %4542
      %4544 = vadd.xlane.f32.xlu0 %v4360
      %v4545 = vpop.xlane.xlu0 %4544
      %4546 = vadd.xlane.f32.xlu0 %v4361
      %v4547 = vpop.xlane.xlu0 %4546
      %4548 = vadd.xlane.f32.xlu0 %v4362
      %v4549 = vpop.xlane.xlu0 %4548
      %4550 = vadd.xlane.f32.xlu0 %v4363
      %v4551 = vpop.xlane.xlu0 %4550
      %4552 = vadd.xlane.f32.xlu0 %v4364
      %v4553 = vpop.xlane.xlu0 %4552
      %4554 = vadd.xlane.f32.xlu0 %v4365
      %v4555 = vpop.xlane.xlu0 %4554
      %4556 = vadd.xlane.f32.xlu0 %v4366
      %v4557 = vpop.xlane.xlu0 %4556
      %4558 = vadd.xlane.f32.xlu0 %v4367
      %v4559 = vpop.xlane.xlu0 %4558
      %4560 = vadd.xlane.f32.xlu0 %v4368
      %v4561 = vpop.xlane.xlu0 %4560
      %4562 = vadd.xlane.f32.xlu0 %v4369
      %v4563 = vpop.xlane.xlu0 %4562
      %4564 = vadd.xlane.f32.xlu0 %v4370
      %v4565 = vpop.xlane.xlu0 %4564
      %4566 = vadd.xlane.f32.xlu0 %v4371
      %v4567 = vpop.xlane.xlu0 %4566
      %4568 = vadd.xlane.f32.xlu0 %v4372
      %v4569 = vpop.xlane.xlu0 %4568
      %4570 = vadd.xlane.f32.xlu0 %v4373
      %v4571 = vpop.xlane.xlu0 %4570
      %4572 = vadd.xlane.f32.xlu0 %v4374
      %v4573 = vpop.xlane.xlu0 %4572
      %4574 = vadd.xlane.f32.xlu0 %v4375
      %v4575 = vpop.xlane.xlu0 %4574
      %v4576 = vmul.f32 %v4377, 0.1
      %v4577 = vmul.f32 %v4379, 0.1
      %v4578 = vmul.f32 %v4381, 0.1
      %v4579 = vmul.f32 %v4383, 0.1
      %v4580 = vmul.f32 %v4385, 0.1
      %v4581 = vmul.f32 %v4387, 0.1
      %v4582 = vmul.f32 %v4389, 0.1
      %v4583 = vmul.f32 %v4391, 0.1
      %v4584 = vmul.f32 %v4393, 0.1
      %v4585 = vmul.f32 %v4395, 0.1
      %v4586 = vmul.f32 %v4397, 0.1
      %v4587 = vmul.f32 %v4399, 0.1
      %v4588 = vmul.f32 %v4401, 0.1
      %v4589 = vmul.f32 %v4403, 0.1
      %v4590 = vmul.f32 %v4405, 0.1
      %v4591 = vmul.f32 %v4407, 0.1
      %v4592 = vmul.f32 %v4409, 0.1
      %v4593 = vmul.f32 %v4411, 0.1
      %v4594 = vmul.f32 %v4413, 0.1
      %v4595 = vmul.f32 %v4415, 0.1
      %v4596 = vmul.f32 %v4417, 0.1
      %v4597 = vmul.f32 %v4419, 0.1
      %v4598 = vmul.f32 %v4421, 0.1
      %v4599 = vmul.f32 %v4423, 0.1
      %v4600 = vmul.f32 %v4425, 0.1
      %v4601 = vmul.f32 %v4427, 0.1
      %v4602 = vmul.f32 %v4429, 0.1
      %v4603 = vmul.f32 %v4431, 0.1
      %v4604 = vmul.f32 %v4433, 0.1
      %v4605 = vmul.f32 %v4435, 0.1
      %v4606 = vmul.f32 %v4437, 0.1
      %v4607 = vmul.f32 %v4439, 0.1
      %v4608 = vmul.f32 %v4441, 0.1
      %v4609 = vmul.f32 %v4443, 0.1
      %v4610 = vmul.f32 %v4445, 0.1
      %v4611 = vmul.f32 %v4447, 0.1
      %v4612 = vmul.f32 %v4449, 0.1
      %v4613 = vmul.f32 %v4451, 0.1
      %v4614 = vmul.f32 %v4453, 0.1
      %v4615 = vmul.f32 %v4455, 0.1
      %v4616 = vmul.f32 %v4457, 0.1
      %v4617 = vmul.f32 %v4459, 0.1
      %v4618 = vmul.f32 %v4461, 0.1
      %v4619 = vmul.f32 %v4463, 0.1
      %v4620 = vmul.f32 %v4465, 0.1
      %v4621 = vmul.f32 %v4467, 0.1
      %v4622 = vmul.f32 %v4469, 0.1
      %v4623 = vmul.f32 %v4471, 0.1
      %v4624 = vmul.f32 %v4473, 0.1
      %v4625 = vmul.f32 %v4475, 0.1
      %v4626 = vmul.f32 %v4477, 0.1
      %v4627 = vmul.f32 %v4479, 0.1
      %v4628 = vmul.f32 %v4481, 0.1
      %v4629 = vmul.f32 %v4483, 0.1
      %v4630 = vmul.f32 %v4485, 0.1
      %v4631 = vmul.f32 %v4487, 0.1
      %v4632 = vmul.f32 %v4489, 0.1
      %v4633 = vmul.f32 %v4491, 0.1
      %v4634 = vmul.f32 %v4493, 0.1
      %v4635 = vmul.f32 %v4495, 0.1
      %v4636 = vmul.f32 %v4497, 0.1
      %v4637 = vmul.f32 %v4499, 0.1
      %v4638 = vmul.f32 %v4501, 0.1
      %v4639 = vmul.f32 %v4503, 0.1
      %v4640 = vmul.f32 %v4505, 0.1
      %v4641 = vmul.f32 %v4507, 0.1
      %v4642 = vmul.f32 %v4509, 0.1
      %v4643 = vmul.f32 %v4511, 0.1
      %v4644 = vmul.f32 %v4513, 0.1
      %v4645 = vmul.f32 %v4515, 0.1
      %v4646 = vmul.f32 %v4517, 0.1
      %v4647 = vmul.f32 %v4519, 0.1
      %v4648 = vmul.f32 %v4521, 0.1
      %v4649 = vmul.f32 %v4523, 0.1
      %v4650 = vmul.f32 %v4525, 0.1
      %v4651 = vmul.f32 %v4527, 0.1
      %v4652 = vmul.f32 %v4529, 0.1
      %v4653 = vmul.f32 %v4531, 0.1
      %v4654 = vmul.f32 %v4533, 0.1
      %v4655 = vmul.f32 %v4535, 0.1
      %v4656 = vmul.f32 %v4537, 0.1
      %v4657 = vmul.f32 %v4539, 0.1
      %v4658 = vmul.f32 %v4541, 0.1
      %v4659 = vmul.f32 %v4543, 0.1
      %v4660 = vmul.f32 %v4545, 0.1
      %v4661 = vmul.f32 %v4547, 0.1
      %v4662 = vmul.f32 %v4549, 0.1
      %v4663 = vmul.f32 %v4551, 0.1
      %v4664 = vmul.f32 %v4553, 0.1
      %v4665 = vmul.f32 %v4555, 0.1
      %v4666 = vmul.f32 %v4557, 0.1
      %v4667 = vmul.f32 %v4559, 0.1
      %v4668 = vmul.f32 %v4561, 0.1
      %v4669 = vmul.f32 %v4563, 0.1
      %v4670 = vmul.f32 %v4565, 0.1
      %v4671 = vmul.f32 %v4567, 0.1
      %v4672 = vmul.f32 %v4569, 0.1
      %v4673 = vmul.f32 %v4571, 0.1
      %v4674 = vmul.f32 %v4573, 0.1
      %v4675 = vmul.f32 %v4575, 0.1
      %v4676 = vsub.f32 %v3873, %v4576
      %v4677 = vsub.f32 %v3876, %v4577
      %v4678 = vsub.f32 %v3881, %v4578
      %v4679 = vsub.f32 %v3884, %v4579
      %v4680 = vsub.f32 %v3889, %v4580
      %v4681 = vsub.f32 %v3892, %v4581
      %v4682 = vsub.f32 %v3897, %v4582
      %v4683 = vsub.f32 %v3900, %v4583
      %v4684 = vsub.f32 %v3905, %v4584
      %v4685 = vsub.f32 %v3908, %v4585
      %v4686 = vsub.f32 %v3913, %v4586
      %v4687 = vsub.f32 %v3916, %v4587
      %v4688 = vsub.f32 %v3921, %v4588
      %v4689 = vsub.f32 %v3924, %v4589
      %v4690 = vsub.f32 %v3929, %v4590
      %v4691 = vsub.f32 %v3932, %v4591
      %v4692 = vsub.f32 %v3937, %v4592
      %v4693 = vsub.f32 %v3940, %v4593
      %v4694 = vsub.f32 %v3945, %v4594
      %v4695 = vsub.f32 %v3948, %v4595
      %v4696 = vsub.f32 %v3953, %v4596
      %v4697 = vsub.f32 %v3956, %v4597
      %v4698 = vsub.f32 %v3961, %v4598
      %v4699 = vsub.f32 %v3964, %v4599
      %v4700 = vsub.f32 %v3969, %v4600
      %v4701 = vsub.f32 %v3972, %v4601
      %v4702 = vsub.f32 %v3977, %v4602
      %v4703 = vsub.f32 %v3980, %v4603
      %v4704 = vsub.f32 %v3985, %v4604
      %v4705 = vsub.f32 %v3988, %v4605
      %v4706 = vsub.f32 %v3993, %v4606
      %v4707 = vsub.f32 %v3996, %v4607
      %v4708 = vsub.f32 %v4001, %v4608
      %v4709 = vsub.f32 %v4004, %v4609
      %v4710 = vsub.f32 %v4009, %v4610
      %v4711 = vsub.f32 %v4012, %v4611
      %v4712 = vsub.f32 %v4017, %v4612
      %v4713 = vsub.f32 %v4020, %v4613
      %v4714 = vsub.f32 %v4025, %v4614
      %v4715 = vsub.f32 %v4028, %v4615
      %v4716 = vsub.f32 %v4033, %v4616
      %v4717 = vsub.f32 %v4036, %v4617
      %v4718 = vsub.f32 %v4041, %v4618
      %v4719 = vsub.f32 %v4044, %v4619
      %v4720 = vsub.f32 %v4049, %v4620
      %v4721 = vsub.f32 %v4052, %v4621
      %v4722 = vsub.f32 %v4057, %v4622
      %v4723 = vsub.f32 %v4060, %v4623
      %v4724 = vsub.f32 %v4065, %v4624
      %v4725 = vsub.f32 %v4068, %v4625
      %v4726 = vsub.f32 %v4073, %v4626
      %v4727 = vsub.f32 %v4076, %v4627
      %v4728 = vsub.f32 %v4081, %v4628
      %v4729 = vsub.f32 %v4084, %v4629
      %v4730 = vsub.f32 %v4089, %v4630
      %v4731 = vsub.f32 %v4092, %v4631
      %v4732 = vsub.f32 %v4097, %v4632
      %v4733 = vsub.f32 %v4100, %v4633
      %v4734 = vsub.f32 %v4105, %v4634
      %v4735 = vsub.f32 %v4108, %v4635
      %v4736 = vsub.f32 %v4113, %v4636
      %v4737 = vsub.f32 %v4116, %v4637
      %v4738 = vsub.f32 %v4121, %v4638
      %v4739 = vsub.f32 %v4124, %v4639
      %v4740 = vsub.f32 %v4129, %v4640
      %v4741 = vsub.f32 %v4132, %v4641
      %v4742 = vsub.f32 %v4137, %v4642
      %v4743 = vsub.f32 %v4140, %v4643
      %v4744 = vsub.f32 %v4145, %v4644
      %v4745 = vsub.f32 %v4148, %v4645
      %v4746 = vsub.f32 %v4153, %v4646
      %v4747 = vsub.f32 %v4156, %v4647
      %v4748 = vsub.f32 %v4161, %v4648
      %v4749 = vsub.f32 %v4164, %v4649
      %v4750 = vsub.f32 %v4169, %v4650
      %v4751 = vsub.f32 %v4172, %v4651
      %v4752 = vsub.f32 %v4177, %v4652
      %v4753 = vsub.f32 %v4180, %v4653
      %v4754 = vsub.f32 %v4185, %v4654
      %v4755 = vsub.f32 %v4188, %v4655
      %v4756 = vsub.f32 %v4193, %v4656
      %v4757 = vsub.f32 %v4196, %v4657
      %v4758 = vsub.f32 %v4201, %v4658
      %v4759 = vsub.f32 %v4204, %v4659
      %v4760 = vsub.f32 %v4209, %v4660
      %v4761 = vsub.f32 %v4212, %v4661
      %v4762 = vsub.f32 %v4217, %v4662
      %v4763 = vsub.f32 %v4220, %v4663
      %v4764 = vsub.f32 %v4225, %v4664
      %v4765 = vsub.f32 %v4228, %v4665
      %v4766 = vsub.f32 %v4233, %v4666
      %v4767 = vsub.f32 %v4236, %v4667
      %v4768 = vsub.f32 %v4241, %v4668
      %v4769 = vsub.f32 %v4244, %v4669
      %v4770 = vsub.f32 %v4249, %v4670
      %v4771 = vsub.f32 %v4252, %v4671
      %v4772 = vsub.f32 %v4257, %v4672
      %v4773 = vsub.f32 %v4260, %v4673
      %v4774 = vsub.f32 %v4265, %v4674
      %v4775 = vsub.f32 %v4268, %v4675
      %v4776 = vsel %vm4275, %v4676, 0.0
      %v4777 = vsel %vm4275, %v4677, 0.0
      %v4778 = vsel %vm4275, %v4678, 0.0
      %v4779 = vsel %vm4275, %v4679, 0.0
      %v4780 = vsel %vm4275, %v4680, 0.0
      %v4781 = vsel %vm4275, %v4681, 0.0
      %v4782 = vsel %vm4275, %v4682, 0.0
      %v4783 = vsel %vm4275, %v4683, 0.0
      %v4784 = vsel %vm4275, %v4684, 0.0
      %v4785 = vsel %vm4275, %v4685, 0.0
      %v4786 = vsel %vm4275, %v4686, 0.0
      %v4787 = vsel %vm4275, %v4687, 0.0
      %v4788 = vsel %vm4275, %v4688, 0.0
      %v4789 = vsel %vm4275, %v4689, 0.0
      %v4790 = vsel %vm4275, %v4690, 0.0
      %v4791 = vsel %vm4275, %v4691, 0.0
      %v4792 = vsel %vm4275, %v4692, 0.0
      %v4793 = vsel %vm4275, %v4693, 0.0
      %v4794 = vsel %vm4275, %v4694, 0.0
      %v4795 = vsel %vm4275, %v4695, 0.0
      %v4796 = vsel %vm4275, %v4696, 0.0
      %v4797 = vsel %vm4275, %v4697, 0.0
      %v4798 = vsel %vm4275, %v4698, 0.0
      %v4799 = vsel %vm4275, %v4699, 0.0
      %v4800 = vsel %vm4275, %v4700, 0.0
      %v4801 = vsel %vm4275, %v4701, 0.0
      %v4802 = vsel %vm4275, %v4702, 0.0
      %v4803 = vsel %vm4275, %v4703, 0.0
      %v4804 = vsel %vm4275, %v4704, 0.0
      %v4805 = vsel %vm4275, %v4705, 0.0
      %v4806 = vsel %vm4275, %v4706, 0.0
      %v4807 = vsel %vm4275, %v4707, 0.0
      %v4808 = vsel %vm4275, %v4708, 0.0
      %v4809 = vsel %vm4275, %v4709, 0.0
      %v4810 = vsel %vm4275, %v4710, 0.0
      %v4811 = vsel %vm4275, %v4711, 0.0
      %v4812 = vsel %vm4275, %v4712, 0.0
      %v4813 = vsel %vm4275, %v4713, 0.0
      %v4814 = vsel %vm4275, %v4714, 0.0
      %v4815 = vsel %vm4275, %v4715, 0.0
      %v4816 = vsel %vm4275, %v4716, 0.0
      %v4817 = vsel %vm4275, %v4717, 0.0
      %v4818 = vsel %vm4275, %v4718, 0.0
      %v4819 = vsel %vm4275, %v4719, 0.0
      %v4820 = vsel %vm4275, %v4720, 0.0
      %v4821 = vsel %vm4275, %v4721, 0.0
      %v4822 = vsel %vm4275, %v4722, 0.0
      %v4823 = vsel %vm4275, %v4723, 0.0
      %v4824 = vsel %vm4275, %v4724, 0.0
      %v4825 = vsel %vm4275, %v4725, 0.0
      %v4826 = vsel %vm4275, %v4726, 0.0
      %v4827 = vsel %vm4275, %v4727, 0.0
      %v4828 = vsel %vm4275, %v4728, 0.0
      %v4829 = vsel %vm4275, %v4729, 0.0
      %v4830 = vsel %vm4275, %v4730, 0.0
      %v4831 = vsel %vm4275, %v4731, 0.0
      %v4832 = vsel %vm4275, %v4732, 0.0
      %v4833 = vsel %vm4275, %v4733, 0.0
      %v4834 = vsel %vm4275, %v4734, 0.0
      %v4835 = vsel %vm4275, %v4735, 0.0
      %v4836 = vsel %vm4275, %v4736, 0.0
      %v4837 = vsel %vm4275, %v4737, 0.0
      %v4838 = vsel %vm4275, %v4738, 0.0
      %v4839 = vsel %vm4275, %v4739, 0.0
      %v4840 = vsel %vm4275, %v4740, 0.0
      %v4841 = vsel %vm4275, %v4741, 0.0
      %v4842 = vsel %vm4275, %v4742, 0.0
      %v4843 = vsel %vm4275, %v4743, 0.0
      %v4844 = vsel %vm4275, %v4744, 0.0
      %v4845 = vsel %vm4275, %v4745, 0.0
      %v4846 = vsel %vm4275, %v4746, 0.0
      %v4847 = vsel %vm4275, %v4747, 0.0
      %v4848 = vsel %vm4275, %v4748, 0.0
      %v4849 = vsel %vm4275, %v4749, 0.0
      %v4850 = vsel %vm4275, %v4750, 0.0
      %v4851 = vsel %vm4275, %v4751, 0.0
      %v4852 = vsel %vm4275, %v4752, 0.0
      %v4853 = vsel %vm4275, %v4753, 0.0
      %v4854 = vsel %vm4275, %v4754, 0.0
      %v4855 = vsel %vm4275, %v4755, 0.0
      %v4856 = vsel %vm4275, %v4756, 0.0
      %v4857 = vsel %vm4275, %v4757, 0.0
      %v4858 = vsel %vm4275, %v4758, 0.0
      %v4859 = vsel %vm4275, %v4759, 0.0
      %v4860 = vsel %vm4275, %v4760, 0.0
      %v4861 = vsel %vm4275, %v4761, 0.0
      %v4862 = vsel %vm4275, %v4762, 0.0
      %v4863 = vsel %vm4275, %v4763, 0.0
      %v4864 = vsel %vm4275, %v4764, 0.0
      %v4865 = vsel %vm4275, %v4765, 0.0
      %v4866 = vsel %vm4275, %v4766, 0.0
      %v4867 = vsel %vm4275, %v4767, 0.0
      %v4868 = vsel %vm4275, %v4768, 0.0
      %v4869 = vsel %vm4275, %v4769, 0.0
      %v4870 = vsel %vm4275, %v4770, 0.0
      %v4871 = vsel %vm4275, %v4771, 0.0
      %v4872 = vsel %vm4275, %v4772, 0.0
      %v4873 = vsel %vm4275, %v4773, 0.0
      %v4874 = vsel %vm4275, %v4774, 0.0
      %v4875 = vsel %vm4275, %v4775, 0.0
      %v4876 = vmul.f32 %v4776, %v4776
      %v4877 = vmul.f32 %v4777, %v4777
      %v4878 = vmul.f32 %v4778, %v4778
      %v4879 = vmul.f32 %v4779, %v4779
      %v4880 = vmul.f32 %v4780, %v4780
      %v4881 = vmul.f32 %v4781, %v4781
      %v4882 = vmul.f32 %v4782, %v4782
      %v4883 = vmul.f32 %v4783, %v4783
      %v4884 = vmul.f32 %v4784, %v4784
      %v4885 = vmul.f32 %v4785, %v4785
      %v4886 = vmul.f32 %v4786, %v4786
      %v4887 = vmul.f32 %v4787, %v4787
      %v4888 = vmul.f32 %v4788, %v4788
      %v4889 = vmul.f32 %v4789, %v4789
      %v4890 = vmul.f32 %v4790, %v4790
      %v4891 = vmul.f32 %v4791, %v4791
      %v4892 = vmul.f32 %v4792, %v4792
      %v4893 = vmul.f32 %v4793, %v4793
      %v4894 = vmul.f32 %v4794, %v4794
      %v4895 = vmul.f32 %v4795, %v4795
      %v4896 = vmul.f32 %v4796, %v4796
      %v4897 = vmul.f32 %v4797, %v4797
      %v4898 = vmul.f32 %v4798, %v4798
      %v4899 = vmul.f32 %v4799, %v4799
      %v4900 = vmul.f32 %v4800, %v4800
      %v4901 = vmul.f32 %v4801, %v4801
      %v4902 = vmul.f32 %v4802, %v4802
      %v4903 = vmul.f32 %v4803, %v4803
      %v4904 = vmul.f32 %v4804, %v4804
      %v4905 = vmul.f32 %v4805, %v4805
      %v4906 = vmul.f32 %v4806, %v4806
      %v4907 = vmul.f32 %v4807, %v4807
      %v4908 = vmul.f32 %v4808, %v4808
      %v4909 = vmul.f32 %v4809, %v4809
      %v4910 = vmul.f32 %v4810, %v4810
      %v4911 = vmul.f32 %v4811, %v4811
      %v4912 = vmul.f32 %v4812, %v4812
      %v4913 = vmul.f32 %v4813, %v4813
      %v4914 = vmul.f32 %v4814, %v4814
      %v4915 = vmul.f32 %v4815, %v4815
      %v4916 = vmul.f32 %v4816, %v4816
      %v4917 = vmul.f32 %v4817, %v4817
      %v4918 = vmul.f32 %v4818, %v4818
      %v4919 = vmul.f32 %v4819, %v4819
      %v4920 = vmul.f32 %v4820, %v4820
      %v4921 = vmul.f32 %v4821, %v4821
      %v4922 = vmul.f32 %v4822, %v4822
      %v4923 = vmul.f32 %v4823, %v4823
      %v4924 = vmul.f32 %v4824, %v4824
      %v4925 = vmul.f32 %v4825, %v4825
      %v4926 = vmul.f32 %v4826, %v4826
      %v4927 = vmul.f32 %v4827, %v4827
      %v4928 = vmul.f32 %v4828, %v4828
      %v4929 = vmul.f32 %v4829, %v4829
      %v4930 = vmul.f32 %v4830, %v4830
      %v4931 = vmul.f32 %v4831, %v4831
      %v4932 = vmul.f32 %v4832, %v4832
      %v4933 = vmul.f32 %v4833, %v4833
      %v4934 = vmul.f32 %v4834, %v4834
      %v4935 = vmul.f32 %v4835, %v4835
      %v4936 = vmul.f32 %v4836, %v4836
      %v4937 = vmul.f32 %v4837, %v4837
      %v4938 = vmul.f32 %v4838, %v4838
      %v4939 = vmul.f32 %v4839, %v4839
      %v4940 = vmul.f32 %v4840, %v4840
      %v4941 = vmul.f32 %v4841, %v4841
      %v4942 = vmul.f32 %v4842, %v4842
      %v4943 = vmul.f32 %v4843, %v4843
      %v4944 = vmul.f32 %v4844, %v4844
      %v4945 = vmul.f32 %v4845, %v4845
      %v4946 = vmul.f32 %v4846, %v4846
      %v4947 = vmul.f32 %v4847, %v4847
      %v4948 = vmul.f32 %v4848, %v4848
      %v4949 = vmul.f32 %v4849, %v4849
      %v4950 = vmul.f32 %v4850, %v4850
      %v4951 = vmul.f32 %v4851, %v4851
      %v4952 = vmul.f32 %v4852, %v4852
      %v4953 = vmul.f32 %v4853, %v4853
      %v4954 = vmul.f32 %v4854, %v4854
      %v4955 = vmul.f32 %v4855, %v4855
      %v4956 = vmul.f32 %v4856, %v4856
      %v4957 = vmul.f32 %v4857, %v4857
      %v4958 = vmul.f32 %v4858, %v4858
      %v4959 = vmul.f32 %v4859, %v4859
      %v4960 = vmul.f32 %v4860, %v4860
      %v4961 = vmul.f32 %v4861, %v4861
      %v4962 = vmul.f32 %v4862, %v4862
      %v4963 = vmul.f32 %v4863, %v4863
      %v4964 = vmul.f32 %v4864, %v4864
      %v4965 = vmul.f32 %v4865, %v4865
      %v4966 = vmul.f32 %v4866, %v4866
      %v4967 = vmul.f32 %v4867, %v4867
      %v4968 = vmul.f32 %v4868, %v4868
      %v4969 = vmul.f32 %v4869, %v4869
      %v4970 = vmul.f32 %v4870, %v4870
      %v4971 = vmul.f32 %v4871, %v4871
      %v4972 = vmul.f32 %v4872, %v4872
      %v4973 = vmul.f32 %v4873, %v4873
      %v4974 = vmul.f32 %v4874, %v4874
      %v4975 = vmul.f32 %v4875, %v4875
      %4976 = vadd.xlane.f32.xlu0 %v4876
      %v4977 = vpop.xlane.xlu0 %4976
      %4978 = vadd.xlane.f32.xlu0 %v4877
      %v4979 = vpop.xlane.xlu0 %4978
      %4980 = vadd.xlane.f32.xlu0 %v4878
      %v4981 = vpop.xlane.xlu0 %4980
      %4982 = vadd.xlane.f32.xlu0 %v4879
      %v4983 = vpop.xlane.xlu0 %4982
      %4984 = vadd.xlane.f32.xlu0 %v4880
      %v4985 = vpop.xlane.xlu0 %4984
      %4986 = vadd.xlane.f32.xlu0 %v4881
      %v4987 = vpop.xlane.xlu0 %4986
      %4988 = vadd.xlane.f32.xlu0 %v4882
      %v4989 = vpop.xlane.xlu0 %4988
      %4990 = vadd.xlane.f32.xlu0 %v4883
      %v4991 = vpop.xlane.xlu0 %4990
      %4992 = vadd.xlane.f32.xlu0 %v4884
      %v4993 = vpop.xlane.xlu0 %4992
      %4994 = vadd.xlane.f32.xlu0 %v4885
      %v4995 = vpop.xlane.xlu0 %4994
      %4996 = vadd.xlane.f32.xlu0 %v4886
      %v4997 = vpop.xlane.xlu0 %4996
      %4998 = vadd.xlane.f32.xlu0 %v4887
      %v4999 = vpop.xlane.xlu0 %4998
      %5000 = vadd.xlane.f32.xlu0 %v4888
      %v5001 = vpop.xlane.xlu0 %5000
      %5002 = vadd.xlane.f32.xlu0 %v4889
      %v5003 = vpop.xlane.xlu0 %5002
      %5004 = vadd.xlane.f32.xlu0 %v4890
      %v5005 = vpop.xlane.xlu0 %5004
      %5006 = vadd.xlane.f32.xlu0 %v4891
      %v5007 = vpop.xlane.xlu0 %5006
      %5008 = vadd.xlane.f32.xlu0 %v4892
      %v5009 = vpop.xlane.xlu0 %5008
      %5010 = vadd.xlane.f32.xlu0 %v4893
      %v5011 = vpop.xlane.xlu0 %5010
      %5012 = vadd.xlane.f32.xlu0 %v4894
      %v5013 = vpop.xlane.xlu0 %5012
      %5014 = vadd.xlane.f32.xlu0 %v4895
      %v5015 = vpop.xlane.xlu0 %5014
      %5016 = vadd.xlane.f32.xlu0 %v4896
      %v5017 = vpop.xlane.xlu0 %5016
      %5018 = vadd.xlane.f32.xlu0 %v4897
      %v5019 = vpop.xlane.xlu0 %5018
      %5020 = vadd.xlane.f32.xlu0 %v4898
      %v5021 = vpop.xlane.xlu0 %5020
      %5022 = vadd.xlane.f32.xlu0 %v4899
      %v5023 = vpop.xlane.xlu0 %5022
      %5024 = vadd.xlane.f32.xlu0 %v4900
      %v5025 = vpop.xlane.xlu0 %5024
      %5026 = vadd.xlane.f32.xlu0 %v4901
      %v5027 = vpop.xlane.xlu0 %5026
      %5028 = vadd.xlane.f32.xlu0 %v4902
      %v5029 = vpop.xlane.xlu0 %5028
      %5030 = vadd.xlane.f32.xlu0 %v4903
      %v5031 = vpop.xlane.xlu0 %5030
      %5032 = vadd.xlane.f32.xlu0 %v4904
      %v5033 = vpop.xlane.xlu0 %5032
      %5034 = vadd.xlane.f32.xlu0 %v4905
      %v5035 = vpop.xlane.xlu0 %5034
      %5036 = vadd.xlane.f32.xlu0 %v4906
      %v5037 = vpop.xlane.xlu0 %5036
      %5038 = vadd.xlane.f32.xlu0 %v4907
      %v5039 = vpop.xlane.xlu0 %5038
      %5040 = vadd.xlane.f32.xlu0 %v4908
      %v5041 = vpop.xlane.xlu0 %5040
      %5042 = vadd.xlane.f32.xlu0 %v4909
      %v5043 = vpop.xlane.xlu0 %5042
      %5044 = vadd.xlane.f32.xlu0 %v4910
      %v5045 = vpop.xlane.xlu0 %5044
      %5046 = vadd.xlane.f32.xlu0 %v4911
      %v5047 = vpop.xlane.xlu0 %5046
      %5048 = vadd.xlane.f32.xlu0 %v4912
      %v5049 = vpop.xlane.xlu0 %5048
      %5050 = vadd.xlane.f32.xlu0 %v4913
      %v5051 = vpop.xlane.xlu0 %5050
      %5052 = vadd.xlane.f32.xlu0 %v4914
      %v5053 = vpop.xlane.xlu0 %5052
      %5054 = vadd.xlane.f32.xlu0 %v4915
      %v5055 = vpop.xlane.xlu0 %5054
      %5056 = vadd.xlane.f32.xlu0 %v4916
      %v5057 = vpop.xlane.xlu0 %5056
      %5058 = vadd.xlane.f32.xlu0 %v4917
      %v5059 = vpop.xlane.xlu0 %5058
      %5060 = vadd.xlane.f32.xlu0 %v4918
      %v5061 = vpop.xlane.xlu0 %5060
      %5062 = vadd.xlane.f32.xlu0 %v4919
      %v5063 = vpop.xlane.xlu0 %5062
      %5064 = vadd.xlane.f32.xlu0 %v4920
      %v5065 = vpop.xlane.xlu0 %5064
      %5066 = vadd.xlane.f32.xlu0 %v4921
      %v5067 = vpop.xlane.xlu0 %5066
      %5068 = vadd.xlane.f32.xlu0 %v4922
      %v5069 = vpop.xlane.xlu0 %5068
      %5070 = vadd.xlane.f32.xlu0 %v4923
      %v5071 = vpop.xlane.xlu0 %5070
      %5072 = vadd.xlane.f32.xlu0 %v4924
      %v5073 = vpop.xlane.xlu0 %5072
      %5074 = vadd.xlane.f32.xlu0 %v4925
      %v5075 = vpop.xlane.xlu0 %5074
      %5076 = vadd.xlane.f32.xlu0 %v4926
      %v5077 = vpop.xlane.xlu0 %5076
      %5078 = vadd.xlane.f32.xlu0 %v4927
      %v5079 = vpop.xlane.xlu0 %5078
      %5080 = vadd.xlane.f32.xlu0 %v4928
      %v5081 = vpop.xlane.xlu0 %5080
      %5082 = vadd.xlane.f32.xlu0 %v4929
      %v5083 = vpop.xlane.xlu0 %5082
      %5084 = vadd.xlane.f32.xlu0 %v4930
      %v5085 = vpop.xlane.xlu0 %5084
      %5086 = vadd.xlane.f32.xlu0 %v4931
      %v5087 = vpop.xlane.xlu0 %5086
      %5088 = vadd.xlane.f32.xlu0 %v4932
      %v5089 = vpop.xlane.xlu0 %5088
      %5090 = vadd.xlane.f32.xlu0 %v4933
      %v5091 = vpop.xlane.xlu0 %5090
      %5092 = vadd.xlane.f32.xlu0 %v4934
      %v5093 = vpop.xlane.xlu0 %5092
      %5094 = vadd.xlane.f32.xlu0 %v4935
      %v5095 = vpop.xlane.xlu0 %5094
      %5096 = vadd.xlane.f32.xlu0 %v4936
      %v5097 = vpop.xlane.xlu0 %5096
      %5098 = vadd.xlane.f32.xlu0 %v4937
      %v5099 = vpop.xlane.xlu0 %5098
      %5100 = vadd.xlane.f32.xlu0 %v4938
      %v5101 = vpop.xlane.xlu0 %5100
      %5102 = vadd.xlane.f32.xlu0 %v4939
      %v5103 = vpop.xlane.xlu0 %5102
      %5104 = vadd.xlane.f32.xlu0 %v4940
      %v5105 = vpop.xlane.xlu0 %5104
      %5106 = vadd.xlane.f32.xlu0 %v4941
      %v5107 = vpop.xlane.xlu0 %5106
      %5108 = vadd.xlane.f32.xlu0 %v4942
      %v5109 = vpop.xlane.xlu0 %5108
      %5110 = vadd.xlane.f32.xlu0 %v4943
      %v5111 = vpop.xlane.xlu0 %5110
      %5112 = vadd.xlane.f32.xlu0 %v4944
      %v5113 = vpop.xlane.xlu0 %5112
      %5114 = vadd.xlane.f32.xlu0 %v4945
      %v5115 = vpop.xlane.xlu0 %5114
      %5116 = vadd.xlane.f32.xlu0 %v4946
      %v5117 = vpop.xlane.xlu0 %5116
      %5118 = vadd.xlane.f32.xlu0 %v4947
      %v5119 = vpop.xlane.xlu0 %5118
      %5120 = vadd.xlane.f32.xlu0 %v4948
      %v5121 = vpop.xlane.xlu0 %5120
      %5122 = vadd.xlane.f32.xlu0 %v4949
      %v5123 = vpop.xlane.xlu0 %5122
      %5124 = vadd.xlane.f32.xlu0 %v4950
      %v5125 = vpop.xlane.xlu0 %5124
      %5126 = vadd.xlane.f32.xlu0 %v4951
      %v5127 = vpop.xlane.xlu0 %5126
      %5128 = vadd.xlane.f32.xlu0 %v4952
      %v5129 = vpop.xlane.xlu0 %5128
      %5130 = vadd.xlane.f32.xlu0 %v4953
      %v5131 = vpop.xlane.xlu0 %5130
      %5132 = vadd.xlane.f32.xlu0 %v4954
      %v5133 = vpop.xlane.xlu0 %5132
      %5134 = vadd.xlane.f32.xlu0 %v4955
      %v5135 = vpop.xlane.xlu0 %5134
      %5136 = vadd.xlane.f32.xlu0 %v4956
      %v5137 = vpop.xlane.xlu0 %5136
      %5138 = vadd.xlane.f32.xlu0 %v4957
      %v5139 = vpop.xlane.xlu0 %5138
      %5140 = vadd.xlane.f32.xlu0 %v4958
      %v5141 = vpop.xlane.xlu0 %5140
      %5142 = vadd.xlane.f32.xlu0 %v4959
      %v5143 = vpop.xlane.xlu0 %5142
      %5144 = vadd.xlane.f32.xlu0 %v4960
      %v5145 = vpop.xlane.xlu0 %5144
      %5146 = vadd.xlane.f32.xlu0 %v4961
      %v5147 = vpop.xlane.xlu0 %5146
      %5148 = vadd.xlane.f32.xlu0 %v4962
      %v5149 = vpop.xlane.xlu0 %5148
      %5150 = vadd.xlane.f32.xlu0 %v4963
      %v5151 = vpop.xlane.xlu0 %5150
      %5152 = vadd.xlane.f32.xlu0 %v4964
      %v5153 = vpop.xlane.xlu0 %5152
      %5154 = vadd.xlane.f32.xlu0 %v4965
      %v5155 = vpop.xlane.xlu0 %5154
      %5156 = vadd.xlane.f32.xlu0 %v4966
      %v5157 = vpop.xlane.xlu0 %5156
      %5158 = vadd.xlane.f32.xlu0 %v4967
      %v5159 = vpop.xlane.xlu0 %5158
      %5160 = vadd.xlane.f32.xlu0 %v4968
      %v5161 = vpop.xlane.xlu0 %5160
      %5162 = vadd.xlane.f32.xlu0 %v4969
      %v5163 = vpop.xlane.xlu0 %5162
      %5164 = vadd.xlane.f32.xlu0 %v4970
      %v5165 = vpop.xlane.xlu0 %5164
      %5166 = vadd.xlane.f32.xlu0 %v4971
      %v5167 = vpop.xlane.xlu0 %5166
      %5168 = vadd.xlane.f32.xlu0 %v4972
      %v5169 = vpop.xlane.xlu0 %5168
      %5170 = vadd.xlane.f32.xlu0 %v4973
      %v5171 = vpop.xlane.xlu0 %5170
      %5172 = vadd.xlane.f32.xlu0 %v4974
      %v5173 = vpop.xlane.xlu0 %5172
      %5174 = vadd.xlane.f32.xlu0 %v4975
      %v5175 = vpop.xlane.xlu0 %5174
      %v5176 = vmul.f32 %v4977, 0.1
      %v5177 = vmul.f32 %v4979, 0.1
      %v5178 = vmul.f32 %v4981, 0.1
      %v5179 = vmul.f32 %v4983, 0.1
      %v5180 = vmul.f32 %v4985, 0.1
      %v5181 = vmul.f32 %v4987, 0.1
      %v5182 = vmul.f32 %v4989, 0.1
      %v5183 = vmul.f32 %v4991, 0.1
      %v5184 = vmul.f32 %v4993, 0.1
      %v5185 = vmul.f32 %v4995, 0.1
      %v5186 = vmul.f32 %v4997, 0.1
      %v5187 = vmul.f32 %v4999, 0.1
      %v5188 = vmul.f32 %v5001, 0.1
      %v5189 = vmul.f32 %v5003, 0.1
      %v5190 = vmul.f32 %v5005, 0.1
      %v5191 = vmul.f32 %v5007, 0.1
      %v5192 = vmul.f32 %v5009, 0.1
      %v5193 = vmul.f32 %v5011, 0.1
      %v5194 = vmul.f32 %v5013, 0.1
      %v5195 = vmul.f32 %v5015, 0.1
      %v5196 = vmul.f32 %v5017, 0.1
      %v5197 = vmul.f32 %v5019, 0.1
      %v5198 = vmul.f32 %v5021, 0.1
      %v5199 = vmul.f32 %v5023, 0.1
      %v5200 = vmul.f32 %v5025, 0.1
      %v5201 = vmul.f32 %v5027, 0.1
      %v5202 = vmul.f32 %v5029, 0.1
      %v5203 = vmul.f32 %v5031, 0.1
      %v5204 = vmul.f32 %v5033, 0.1
      %v5205 = vmul.f32 %v5035, 0.1
      %v5206 = vmul.f32 %v5037, 0.1
      %v5207 = vmul.f32 %v5039, 0.1
      %v5208 = vmul.f32 %v5041, 0.1
      %v5209 = vmul.f32 %v5043, 0.1
      %v5210 = vmul.f32 %v5045, 0.1
      %v5211 = vmul.f32 %v5047, 0.1
      %v5212 = vmul.f32 %v5049, 0.1
      %v5213 = vmul.f32 %v5051, 0.1
      %v5214 = vmul.f32 %v5053, 0.1
      %v5215 = vmul.f32 %v5055, 0.1
      %v5216 = vmul.f32 %v5057, 0.1
      %v5217 = vmul.f32 %v5059, 0.1
      %v5218 = vmul.f32 %v5061, 0.1
      %v5219 = vmul.f32 %v5063, 0.1
      %v5220 = vmul.f32 %v5065, 0.1
      %v5221 = vmul.f32 %v5067, 0.1
      %v5222 = vmul.f32 %v5069, 0.1
      %v5223 = vmul.f32 %v5071, 0.1
      %v5224 = vmul.f32 %v5073, 0.1
      %v5225 = vmul.f32 %v5075, 0.1
      %v5226 = vmul.f32 %v5077, 0.1
      %v5227 = vmul.f32 %v5079, 0.1
      %v5228 = vmul.f32 %v5081, 0.1
      %v5229 = vmul.f32 %v5083, 0.1
      %v5230 = vmul.f32 %v5085, 0.1
      %v5231 = vmul.f32 %v5087, 0.1
      %v5232 = vmul.f32 %v5089, 0.1
      %v5233 = vmul.f32 %v5091, 0.1
      %v5234 = vmul.f32 %v5093, 0.1
      %v5235 = vmul.f32 %v5095, 0.1
      %v5236 = vmul.f32 %v5097, 0.1
      %v5237 = vmul.f32 %v5099, 0.1
      %v5238 = vmul.f32 %v5101, 0.1
      %v5239 = vmul.f32 %v5103, 0.1
      %v5240 = vmul.f32 %v5105, 0.1
      %v5241 = vmul.f32 %v5107, 0.1
      %v5242 = vmul.f32 %v5109, 0.1
      %v5243 = vmul.f32 %v5111, 0.1
      %v5244 = vmul.f32 %v5113, 0.1
      %v5245 = vmul.f32 %v5115, 0.1
      %v5246 = vmul.f32 %v5117, 0.1
      %v5247 = vmul.f32 %v5119, 0.1
      %v5248 = vmul.f32 %v5121, 0.1
      %v5249 = vmul.f32 %v5123, 0.1
      %v5250 = vmul.f32 %v5125, 0.1
      %v5251 = vmul.f32 %v5127, 0.1
      %v5252 = vmul.f32 %v5129, 0.1
      %v5253 = vmul.f32 %v5131, 0.1
      %v5254 = vmul.f32 %v5133, 0.1
      %v5255 = vmul.f32 %v5135, 0.1
      %v5256 = vmul.f32 %v5137, 0.1
      %v5257 = vmul.f32 %v5139, 0.1
      %v5258 = vmul.f32 %v5141, 0.1
      %v5259 = vmul.f32 %v5143, 0.1
      %v5260 = vmul.f32 %v5145, 0.1
      %v5261 = vmul.f32 %v5147, 0.1
      %v5262 = vmul.f32 %v5149, 0.1
      %v5263 = vmul.f32 %v5151, 0.1
      %v5264 = vmul.f32 %v5153, 0.1
      %v5265 = vmul.f32 %v5155, 0.1
      %v5266 = vmul.f32 %v5157, 0.1
      %v5267 = vmul.f32 %v5159, 0.1
      %v5268 = vmul.f32 %v5161, 0.1
      %v5269 = vmul.f32 %v5163, 0.1
      %v5270 = vmul.f32 %v5165, 0.1
      %v5271 = vmul.f32 %v5167, 0.1
      %v5272 = vmul.f32 %v5169, 0.1
      %v5273 = vmul.f32 %v5171, 0.1
      %v5274 = vmul.f32 %v5173, 0.1
      %v5275 = vmul.f32 %v5175, 0.1
      %v5276 = vadd.f32 %v5176, 1e-05
      %v5277 = vadd.f32 %v5177, 1e-05
      %v5278 = vadd.f32 %v5178, 1e-05
      %v5279 = vadd.f32 %v5179, 1e-05
      %v5280 = vadd.f32 %v5180, 1e-05
      %v5281 = vadd.f32 %v5181, 1e-05
      %v5282 = vadd.f32 %v5182, 1e-05
      %v5283 = vadd.f32 %v5183, 1e-05
      %v5284 = vadd.f32 %v5184, 1e-05
      %v5285 = vadd.f32 %v5185, 1e-05
      %v5286 = vadd.f32 %v5186, 1e-05
      %v5287 = vadd.f32 %v5187, 1e-05
      %v5288 = vadd.f32 %v5188, 1e-05
      %v5289 = vadd.f32 %v5189, 1e-05
      %v5290 = vadd.f32 %v5190, 1e-05
      %v5291 = vadd.f32 %v5191, 1e-05
      %v5292 = vadd.f32 %v5192, 1e-05
      %v5293 = vadd.f32 %v5193, 1e-05
      %v5294 = vadd.f32 %v5194, 1e-05
      %v5295 = vadd.f32 %v5195, 1e-05
      %v5296 = vadd.f32 %v5196, 1e-05
      %v5297 = vadd.f32 %v5197, 1e-05
      %v5298 = vadd.f32 %v5198, 1e-05
      %v5299 = vadd.f32 %v5199, 1e-05
      %v5300 = vadd.f32 %v5200, 1e-05
      %v5301 = vadd.f32 %v5201, 1e-05
      %v5302 = vadd.f32 %v5202, 1e-05
      %v5303 = vadd.f32 %v5203, 1e-05
      %v5304 = vadd.f32 %v5204, 1e-05
      %v5305 = vadd.f32 %v5205, 1e-05
      %v5306 = vadd.f32 %v5206, 1e-05
      %v5307 = vadd.f32 %v5207, 1e-05
      %v5308 = vadd.f32 %v5208, 1e-05
      %v5309 = vadd.f32 %v5209, 1e-05
      %v5310 = vadd.f32 %v5210, 1e-05
      %v5311 = vadd.f32 %v5211, 1e-05
      %v5312 = vadd.f32 %v5212, 1e-05
      %v5313 = vadd.f32 %v5213, 1e-05
      %v5314 = vadd.f32 %v5214, 1e-05
      %v5315 = vadd.f32 %v5215, 1e-05
      %v5316 = vadd.f32 %v5216, 1e-05
      %v5317 = vadd.f32 %v5217, 1e-05
      %v5318 = vadd.f32 %v5218, 1e-05
      %v5319 = vadd.f32 %v5219, 1e-05
      %v5320 = vadd.f32 %v5220, 1e-05
      %v5321 = vadd.f32 %v5221, 1e-05
      %v5322 = vadd.f32 %v5222, 1e-05
      %v5323 = vadd.f32 %v5223, 1e-05
      %v5324 = vadd.f32 %v5224, 1e-05
      %v5325 = vadd.f32 %v5225, 1e-05
      %v5326 = vadd.f32 %v5226, 1e-05
      %v5327 = vadd.f32 %v5227, 1e-05
      %v5328 = vadd.f32 %v5228, 1e-05
      %v5329 = vadd.f32 %v5229, 1e-05
      %v5330 = vadd.f32 %v5230, 1e-05
      %v5331 = vadd.f32 %v5231, 1e-05
      %v5332 = vadd.f32 %v5232, 1e-05
      %v5333 = vadd.f32 %v5233, 1e-05
      %v5334 = vadd.f32 %v5234, 1e-05
      %v5335 = vadd.f32 %v5235, 1e-05
      %v5336 = vadd.f32 %v5236, 1e-05
      %v5337 = vadd.f32 %v5237, 1e-05
      %v5338 = vadd.f32 %v5238, 1e-05
      %v5339 = vadd.f32 %v5239, 1e-05
      %v5340 = vadd.f32 %v5240, 1e-05
      %v5341 = vadd.f32 %v5241, 1e-05
      %v5342 = vadd.f32 %v5242, 1e-05
      %v5343 = vadd.f32 %v5243, 1e-05
      %v5344 = vadd.f32 %v5244, 1e-05
      %v5345 = vadd.f32 %v5245, 1e-05
      %v5346 = vadd.f32 %v5246, 1e-05
      %v5347 = vadd.f32 %v5247, 1e-05
      %v5348 = vadd.f32 %v5248, 1e-05
      %v5349 = vadd.f32 %v5249, 1e-05
      %v5350 = vadd.f32 %v5250, 1e-05
      %v5351 = vadd.f32 %v5251, 1e-05
      %v5352 = vadd.f32 %v5252, 1e-05
      %v5353 = vadd.f32 %v5253, 1e-05
      %v5354 = vadd.f32 %v5254, 1e-05
      %v5355 = vadd.f32 %v5255, 1e-05
      %v5356 = vadd.f32 %v5256, 1e-05
      %v5357 = vadd.f32 %v5257, 1e-05
      %v5358 = vadd.f32 %v5258, 1e-05
      %v5359 = vadd.f32 %v5259, 1e-05
      %v5360 = vadd.f32 %v5260, 1e-05
      %v5361 = vadd.f32 %v5261, 1e-05
      %v5362 = vadd.f32 %v5262, 1e-05
      %v5363 = vadd.f32 %v5263, 1e-05
      %v5364 = vadd.f32 %v5264, 1e-05
      %v5365 = vadd.f32 %v5265, 1e-05
      %v5366 = vadd.f32 %v5266, 1e-05
      %v5367 = vadd.f32 %v5267, 1e-05
      %v5368 = vadd.f32 %v5268, 1e-05
      %v5369 = vadd.f32 %v5269, 1e-05
      %v5370 = vadd.f32 %v5270, 1e-05
      %v5371 = vadd.f32 %v5271, 1e-05
      %v5372 = vadd.f32 %v5272, 1e-05
      %v5373 = vadd.f32 %v5273, 1e-05
      %v5374 = vadd.f32 %v5274, 1e-05
      %v5375 = vadd.f32 %v5275, 1e-05
      %v5376 = vrsqrt.pop %v5276
      %v5377 = vrsqrt.pop %v5277
      %v5378 = vrsqrt.pop %v5278
      %v5379 = vrsqrt.pop %v5279
      %v5380 = vrsqrt.pop %v5280
      %v5381 = vrsqrt.pop %v5281
      %v5382 = vrsqrt.pop %v5282
      %v5383 = vrsqrt.pop %v5283
      %v5384 = vrsqrt.pop %v5284
      %v5385 = vrsqrt.pop %v5285
      %v5386 = vrsqrt.pop %v5286
      %v5387 = vrsqrt.pop %v5287
      %v5388 = vrsqrt.pop %v5288
      %v5389 = vrsqrt.pop %v5289
      %v5390 = vrsqrt.pop %v5290
      %v5391 = vrsqrt.pop %v5291
      %v5392 = vrsqrt.pop %v5292
      %v5393 = vrsqrt.pop %v5293
      %v5394 = vrsqrt.pop %v5294
      %v5395 = vrsqrt.pop %v5295
      %v5396 = vrsqrt.pop %v5296
      %v5397 = vrsqrt.pop %v5297
      %v5398 = vrsqrt.pop %v5298
      %v5399 = vrsqrt.pop %v5299
      %v5400 = vrsqrt.pop %v5300
      %v5401 = vrsqrt.pop %v5301
      %v5402 = vrsqrt.pop %v5302
      %v5403 = vrsqrt.pop %v5303
      %v5404 = vrsqrt.pop %v5304
      %v5405 = vrsqrt.pop %v5305
      %v5406 = vrsqrt.pop %v5306
      %v5407 = vrsqrt.pop %v5307
      %v5408 = vrsqrt.pop %v5308
      %v5409 = vrsqrt.pop %v5309
      %v5410 = vrsqrt.pop %v5310
      %v5411 = vrsqrt.pop %v5311
      %v5412 = vrsqrt.pop %v5312
      %v5413 = vrsqrt.pop %v5313
      %v5414 = vrsqrt.pop %v5314
      %v5415 = vrsqrt.pop %v5315
      %v5416 = vrsqrt.pop %v5316
      %v5417 = vrsqrt.pop %v5317
      %v5418 = vrsqrt.pop %v5318
      %v5419 = vrsqrt.pop %v5319
      %v5420 = vrsqrt.pop %v5320
      %v5421 = vrsqrt.pop %v5321
      %v5422 = vrsqrt.pop %v5322
      %v5423 = vrsqrt.pop %v5323
      %v5424 = vrsqrt.pop %v5324
      %v5425 = vrsqrt.pop %v5325
      %v5426 = vrsqrt.pop %v5326
      %v5427 = vrsqrt.pop %v5327
      %v5428 = vrsqrt.pop %v5328
      %v5429 = vrsqrt.pop %v5329
      %v5430 = vrsqrt.pop %v5330
      %v5431 = vrsqrt.pop %v5331
      %v5432 = vrsqrt.pop %v5332
      %v5433 = vrsqrt.pop %v5333
      %v5434 = vrsqrt.pop %v5334
      %v5435 = vrsqrt.pop %v5335
      %v5436 = vrsqrt.pop %v5336
      %v5437 = vrsqrt.pop %v5337
      %v5438 = vrsqrt.pop %v5338
      %v5439 = vrsqrt.pop %v5339
      %v5440 = vrsqrt.pop %v5340
      %v5441 = vrsqrt.pop %v5341
      %v5442 = vrsqrt.pop %v5342
      %v5443 = vrsqrt.pop %v5343
      %v5444 = vrsqrt.pop %v5344
      %v5445 = vrsqrt.pop %v5345
      %v5446 = vrsqrt.pop %v5346
      %v5447 = vrsqrt.pop %v5347
      %v5448 = vrsqrt.pop %v5348
      %v5449 = vrsqrt.pop %v5349
      %v5450 = vrsqrt.pop %v5350
      %v5451 = vrsqrt.pop %v5351
      %v5452 = vrsqrt.pop %v5352
      %v5453 = vrsqrt.pop %v5353
      %v5454 = vrsqrt.pop %v5354
      %v5455 = vrsqrt.pop %v5355
      %v5456 = vrsqrt.pop %v5356
      %v5457 = vrsqrt.pop %v5357
      %v5458 = vrsqrt.pop %v5358
      %v5459 = vrsqrt.pop %v5359
      %v5460 = vrsqrt.pop %v5360
      %v5461 = vrsqrt.pop %v5361
      %v5462 = vrsqrt.pop %v5362
      %v5463 = vrsqrt.pop %v5363
      %v5464 = vrsqrt.pop %v5364
      %v5465 = vrsqrt.pop %v5365
      %v5466 = vrsqrt.pop %v5366
      %v5467 = vrsqrt.pop %v5367
      %v5468 = vrsqrt.pop %v5368
      %v5469 = vrsqrt.pop %v5369
      %v5470 = vrsqrt.pop %v5370
      %v5471 = vrsqrt.pop %v5371
      %v5472 = vrsqrt.pop %v5372
      %v5473 = vrsqrt.pop %v5373
      %v5474 = vrsqrt.pop %v5374
      %v5475 = vrsqrt.pop %v5375
      %v5476 = vmul.f32 %v4776, %v5376
      %v5477 = vmul.f32 %v4777, %v5377
      %v5478 = vmul.f32 %v4778, %v5378
      %v5479 = vmul.f32 %v4779, %v5379
      %v5480 = vmul.f32 %v4780, %v5380
      %v5481 = vmul.f32 %v4781, %v5381
      %v5482 = vmul.f32 %v4782, %v5382
      %v5483 = vmul.f32 %v4783, %v5383
      %v5484 = vmul.f32 %v4784, %v5384
      %v5485 = vmul.f32 %v4785, %v5385
      %v5486 = vmul.f32 %v4786, %v5386
      %v5487 = vmul.f32 %v4787, %v5387
      %v5488 = vmul.f32 %v4788, %v5388
      %v5489 = vmul.f32 %v4789, %v5389
      %v5490 = vmul.f32 %v4790, %v5390
      %v5491 = vmul.f32 %v4791, %v5391
      %v5492 = vmul.f32 %v4792, %v5392
      %v5493 = vmul.f32 %v4793, %v5393
      %v5494 = vmul.f32 %v4794, %v5394
      %v5495 = vmul.f32 %v4795, %v5395
      %v5496 = vmul.f32 %v4796, %v5396
      %v5497 = vmul.f32 %v4797, %v5397
      %v5498 = vmul.f32 %v4798, %v5398
      %v5499 = vmul.f32 %v4799, %v5399
      %v5500 = vmul.f32 %v4800, %v5400
      %v5501 = vmul.f32 %v4801, %v5401
      %v5502 = vmul.f32 %v4802, %v5402
      %v5503 = vmul.f32 %v4803, %v5403
      %v5504 = vmul.f32 %v4804, %v5404
      %v5505 = vmul.f32 %v4805, %v5405
      %v5506 = vmul.f32 %v4806, %v5406
      %v5507 = vmul.f32 %v4807, %v5407
      %v5508 = vmul.f32 %v4808, %v5408
      %v5509 = vmul.f32 %v4809, %v5409
      %v5510 = vmul.f32 %v4810, %v5410
      %v5511 = vmul.f32 %v4811, %v5411
      %v5512 = vmul.f32 %v4812, %v5412
      %v5513 = vmul.f32 %v4813, %v5413
      %v5514 = vmul.f32 %v4814, %v5414
      %v5515 = vmul.f32 %v4815, %v5415
      %v5516 = vmul.f32 %v4816, %v5416
      %v5517 = vmul.f32 %v4817, %v5417
      %v5518 = vmul.f32 %v4818, %v5418
      %v5519 = vmul.f32 %v4819, %v5419
      %v5520 = vmul.f32 %v4820, %v5420
      %v5521 = vmul.f32 %v4821, %v5421
      %v5522 = vmul.f32 %v4822, %v5422
      %v5523 = vmul.f32 %v4823, %v5423
      %v5524 = vmul.f32 %v4824, %v5424
      %v5525 = vmul.f32 %v4825, %v5425
      %v5526 = vmul.f32 %v4826, %v5426
      %v5527 = vmul.f32 %v4827, %v5427
      %v5528 = vmul.f32 %v4828, %v5428
      %v5529 = vmul.f32 %v4829, %v5429
      %v5530 = vmul.f32 %v4830, %v5430
      %v5531 = vmul.f32 %v4831, %v5431
      %v5532 = vmul.f32 %v4832, %v5432
      %v5533 = vmul.f32 %v4833, %v5433
      %v5534 = vmul.f32 %v4834, %v5434
      %v5535 = vmul.f32 %v4835, %v5435
      %v5536 = vmul.f32 %v4836, %v5436
      %v5537 = vmul.f32 %v4837, %v5437
      %v5538 = vmul.f32 %v4838, %v5438
      %v5539 = vmul.f32 %v4839, %v5439
      %v5540 = vmul.f32 %v4840, %v5440
      %v5541 = vmul.f32 %v4841, %v5441
      %v5542 = vmul.f32 %v4842, %v5442
      %v5543 = vmul.f32 %v4843, %v5443
      %v5544 = vmul.f32 %v4844, %v5444
      %v5545 = vmul.f32 %v4845, %v5445
      %v5546 = vmul.f32 %v4846, %v5446
      %v5547 = vmul.f32 %v4847, %v5447
      %v5548 = vmul.f32 %v4848, %v5448
      %v5549 = vmul.f32 %v4849, %v5449
      %v5550 = vmul.f32 %v4850, %v5450
      %v5551 = vmul.f32 %v4851, %v5451
      %v5552 = vmul.f32 %v4852, %v5452
      %v5553 = vmul.f32 %v4853, %v5453
      %v5554 = vmul.f32 %v4854, %v5454
      %v5555 = vmul.f32 %v4855, %v5455
      %v5556 = vmul.f32 %v4856, %v5456
      %v5557 = vmul.f32 %v4857, %v5457
      %v5558 = vmul.f32 %v4858, %v5458
      %v5559 = vmul.f32 %v4859, %v5459
      %v5560 = vmul.f32 %v4860, %v5460
      %v5561 = vmul.f32 %v4861, %v5461
      %v5562 = vmul.f32 %v4862, %v5462
      %v5563 = vmul.f32 %v4863, %v5463
      %v5564 = vmul.f32 %v4864, %v5464
      %v5565 = vmul.f32 %v4865, %v5465
      %v5566 = vmul.f32 %v4866, %v5466
      %v5567 = vmul.f32 %v4867, %v5467
      %v5568 = vmul.f32 %v4868, %v5468
      %v5569 = vmul.f32 %v4869, %v5469
      %v5570 = vmul.f32 %v4870, %v5470
      %v5571 = vmul.f32 %v4871, %v5471
      %v5572 = vmul.f32 %v4872, %v5472
      %v5573 = vmul.f32 %v4873, %v5473
      %v5574 = vmul.f32 %v4874, %v5474
      %v5575 = vmul.f32 %v4875, %v5475
      %v5576 = vld [vmem:[%s7] sm:$0x1]
      %v5578 = vlaneseq
      %v5579 = vshrl.u32 %v5578, 7
      %v5580 = vsub.s32 0, %v5579
      %v5581 = vrot.slane %v5576, %v5580
      %v5583 = vmul.f32 %v5476, %v5581
      %v5584 = vmul.f32 %v5477, %v5581
      %v5585 = vmul.f32 %v5478, %v5581
      %v5586 = vmul.f32 %v5479, %v5581
      %v5587 = vmul.f32 %v5480, %v5581
      %v5588 = vmul.f32 %v5481, %v5581
      %v5589 = vmul.f32 %v5482, %v5581
      %v5590 = vmul.f32 %v5483, %v5581
      %v5591 = vmul.f32 %v5484, %v5581
      %v5592 = vmul.f32 %v5485, %v5581
      %v5593 = vmul.f32 %v5486, %v5581
      %v5594 = vmul.f32 %v5487, %v5581
      %v5595 = vmul.f32 %v5488, %v5581
      %v5596 = vmul.f32 %v5489, %v5581
      %v5597 = vmul.f32 %v5490, %v5581
      %v5598 = vmul.f32 %v5491, %v5581
      %v5599 = vmul.f32 %v5492, %v5581
      %v5600 = vmul.f32 %v5493, %v5581
      %v5601 = vmul.f32 %v5494, %v5581
      %v5602 = vmul.f32 %v5495, %v5581
      %v5603 = vmul.f32 %v5496, %v5581
      %v5604 = vmul.f32 %v5497, %v5581
      %v5605 = vmul.f32 %v5498, %v5581
      %v5606 = vmul.f32 %v5499, %v5581
      %v5607 = vmul.f32 %v5500, %v5581
      %v5608 = vmul.f32 %v5501, %v5581
      %v5609 = vmul.f32 %v5502, %v5581
      %v5610 = vmul.f32 %v5503, %v5581
      %v5611 = vmul.f32 %v5504, %v5581
      %v5612 = vmul.f32 %v5505, %v5581
      %v5613 = vmul.f32 %v5506, %v5581
      %v5614 = vmul.f32 %v5507, %v5581
      %v5615 = vmul.f32 %v5508, %v5581
      %v5616 = vmul.f32 %v5509, %v5581
      %v5617 = vmul.f32 %v5510, %v5581
      %v5618 = vmul.f32 %v5511, %v5581
      %v5619 = vmul.f32 %v5512, %v5581
      %v5620 = vmul.f32 %v5513, %v5581
      %v5621 = vmul.f32 %v5514, %v5581
      %v5622 = vmul.f32 %v5515, %v5581
      %v5623 = vmul.f32 %v5516, %v5581
      %v5624 = vmul.f32 %v5517, %v5581
      %v5625 = vmul.f32 %v5518, %v5581
      %v5626 = vmul.f32 %v5519, %v5581
      %v5627 = vmul.f32 %v5520, %v5581
      %v5628 = vmul.f32 %v5521, %v5581
      %v5629 = vmul.f32 %v5522, %v5581
      %v5630 = vmul.f32 %v5523, %v5581
      %v5631 = vmul.f32 %v5524, %v5581
      %v5632 = vmul.f32 %v5525, %v5581
      %v5633 = vmul.f32 %v5526, %v5581
      %v5634 = vmul.f32 %v5527, %v5581
      %v5635 = vmul.f32 %v5528, %v5581
      %v5636 = vmul.f32 %v5529, %v5581
      %v5637 = vmul.f32 %v5530, %v5581
      %v5638 = vmul.f32 %v5531, %v5581
      %v5639 = vmul.f32 %v5532, %v5581
      %v5640 = vmul.f32 %v5533, %v5581
      %v5641 = vmul.f32 %v5534, %v5581
      %v5642 = vmul.f32 %v5535, %v5581
      %v5643 = vmul.f32 %v5536, %v5581
      %v5644 = vmul.f32 %v5537, %v5581
      %v5645 = vmul.f32 %v5538, %v5581
      %v5646 = vmul.f32 %v5539, %v5581
      %v5647 = vmul.f32 %v5540, %v5581
      %v5648 = vmul.f32 %v5541, %v5581
      %v5649 = vmul.f32 %v5542, %v5581
      %v5650 = vmul.f32 %v5543, %v5581
      %v5651 = vmul.f32 %v5544, %v5581
      %v5652 = vmul.f32 %v5545, %v5581
      %v5653 = vmul.f32 %v5546, %v5581
      %v5654 = vmul.f32 %v5547, %v5581
      %v5655 = vmul.f32 %v5548, %v5581
      %v5656 = vmul.f32 %v5549, %v5581
      %v5657 = vmul.f32 %v5550, %v5581
      %v5658 = vmul.f32 %v5551, %v5581
      %v5659 = vmul.f32 %v5552, %v5581
      %v5660 = vmul.f32 %v5553, %v5581
      %v5661 = vmul.f32 %v5554, %v5581
      %v5662 = vmul.f32 %v5555, %v5581
      %v5663 = vmul.f32 %v5556, %v5581
      %v5664 = vmul.f32 %v5557, %v5581
      %v5665 = vmul.f32 %v5558, %v5581
      %v5666 = vmul.f32 %v5559, %v5581
      %v5667 = vmul.f32 %v5560, %v5581
      %v5668 = vmul.f32 %v5561, %v5581
      %v5669 = vmul.f32 %v5562, %v5581
      %v5670 = vmul.f32 %v5563, %v5581
      %v5671 = vmul.f32 %v5564, %v5581
      %v5672 = vmul.f32 %v5565, %v5581
      %v5673 = vmul.f32 %v5566, %v5581
      %v5674 = vmul.f32 %v5567, %v5581
      %v5675 = vmul.f32 %v5568, %v5581
      %v5676 = vmul.f32 %v5569, %v5581
      %v5677 = vmul.f32 %v5570, %v5581
      %v5678 = vmul.f32 %v5571, %v5581
      %v5679 = vmul.f32 %v5572, %v5581
      %v5680 = vmul.f32 %v5573, %v5581
      %v5681 = vmul.f32 %v5574, %v5581
      %v5682 = vmul.f32 %v5575, %v5581
      %v5683 = vld [vmem:[%s8] sm:$0x1]
      %v5685 = vlaneseq
      %v5686 = vshrl.u32 %v5685, 7
      %v5687 = vsub.s32 0, %v5686
      %v5688 = vrot.slane %v5683, %v5687
      %v5690 = vadd.f32 %v5583, %v5688
      %v5691 = vadd.f32 %v5584, %v5688
      %v5692 = vadd.f32 %v5585, %v5688
      %v5693 = vadd.f32 %v5586, %v5688
      %v5694 = vadd.f32 %v5587, %v5688
      %v5695 = vadd.f32 %v5588, %v5688
      %v5696 = vadd.f32 %v5589, %v5688
      %v5697 = vadd.f32 %v5590, %v5688
      %v5698 = vadd.f32 %v5591, %v5688
      %v5699 = vadd.f32 %v5592, %v5688
      %v5700 = vadd.f32 %v5593, %v5688
      %v5701 = vadd.f32 %v5594, %v5688
      %v5702 = vadd.f32 %v5595, %v5688
      %v5703 = vadd.f32 %v5596, %v5688
      %v5704 = vadd.f32 %v5597, %v5688
      %v5705 = vadd.f32 %v5598, %v5688
      %v5706 = vadd.f32 %v5599, %v5688
      %v5707 = vadd.f32 %v5600, %v5688
      %v5708 = vadd.f32 %v5601, %v5688
      %v5709 = vadd.f32 %v5602, %v5688
      %v5710 = vadd.f32 %v5603, %v5688
      %v5711 = vadd.f32 %v5604, %v5688
      %v5712 = vadd.f32 %v5605, %v5688
      %v5713 = vadd.f32 %v5606, %v5688
      %v5714 = vadd.f32 %v5607, %v5688
      %v5715 = vadd.f32 %v5608, %v5688
      %v5716 = vadd.f32 %v5609, %v5688
      %v5717 = vadd.f32 %v5610, %v5688
      %v5718 = vadd.f32 %v5611, %v5688
      %v5719 = vadd.f32 %v5612, %v5688
      %v5720 = vadd.f32 %v5613, %v5688
      %v5721 = vadd.f32 %v5614, %v5688
      %v5722 = vadd.f32 %v5615, %v5688
      %v5723 = vadd.f32 %v5616, %v5688
      %v5724 = vadd.f32 %v5617, %v5688
      %v5725 = vadd.f32 %v5618, %v5688
      %v5726 = vadd.f32 %v5619, %v5688
      %v5727 = vadd.f32 %v5620, %v5688
      %v5728 = vadd.f32 %v5621, %v5688
      %v5729 = vadd.f32 %v5622, %v5688
      %v5730 = vadd.f32 %v5623, %v5688
      %v5731 = vadd.f32 %v5624, %v5688
      %v5732 = vadd.f32 %v5625, %v5688
      %v5733 = vadd.f32 %v5626, %v5688
      %v5734 = vadd.f32 %v5627, %v5688
      %v5735 = vadd.f32 %v5628, %v5688
      %v5736 = vadd.f32 %v5629, %v5688
      %v5737 = vadd.f32 %v5630, %v5688
      %v5738 = vadd.f32 %v5631, %v5688
      %v5739 = vadd.f32 %v5632, %v5688
      %v5740 = vadd.f32 %v5633, %v5688
      %v5741 = vadd.f32 %v5634, %v5688
      %v5742 = vadd.f32 %v5635, %v5688
      %v5743 = vadd.f32 %v5636, %v5688
      %v5744 = vadd.f32 %v5637, %v5688
      %v5745 = vadd.f32 %v5638, %v5688
      %v5746 = vadd.f32 %v5639, %v5688
      %v5747 = vadd.f32 %v5640, %v5688
      %v5748 = vadd.f32 %v5641, %v5688
      %v5749 = vadd.f32 %v5642, %v5688
      %v5750 = vadd.f32 %v5643, %v5688
      %v5751 = vadd.f32 %v5644, %v5688
      %v5752 = vadd.f32 %v5645, %v5688
      %v5753 = vadd.f32 %v5646, %v5688
      %v5754 = vadd.f32 %v5647, %v5688
      %v5755 = vadd.f32 %v5648, %v5688
      %v5756 = vadd.f32 %v5649, %v5688
      %v5757 = vadd.f32 %v5650, %v5688
      %v5758 = vadd.f32 %v5651, %v5688
      %v5759 = vadd.f32 %v5652, %v5688
      %v5760 = vadd.f32 %v5653, %v5688
      %v5761 = vadd.f32 %v5654, %v5688
      %v5762 = vadd.f32 %v5655, %v5688
      %v5763 = vadd.f32 %v5656, %v5688
      %v5764 = vadd.f32 %v5657, %v5688
      %v5765 = vadd.f32 %v5658, %v5688
      %v5766 = vadd.f32 %v5659, %v5688
      %v5767 = vadd.f32 %v5660, %v5688
      %v5768 = vadd.f32 %v5661, %v5688
      %v5769 = vadd.f32 %v5662, %v5688
      %v5770 = vadd.f32 %v5663, %v5688
      %v5771 = vadd.f32 %v5664, %v5688
      %v5772 = vadd.f32 %v5665, %v5688
      %v5773 = vadd.f32 %v5666, %v5688
      %v5774 = vadd.f32 %v5667, %v5688
      %v5775 = vadd.f32 %v5668, %v5688
      %v5776 = vadd.f32 %v5669, %v5688
      %v5777 = vadd.f32 %v5670, %v5688
      %v5778 = vadd.f32 %v5671, %v5688
      %v5779 = vadd.f32 %v5672, %v5688
      %v5780 = vadd.f32 %v5673, %v5688
      %v5781 = vadd.f32 %v5674, %v5688
      %v5782 = vadd.f32 %v5675, %v5688
      %v5783 = vadd.f32 %v5676, %v5688
      %v5784 = vadd.f32 %v5677, %v5688
      %v5785 = vadd.f32 %v5678, %v5688
      %v5786 = vadd.f32 %v5679, %v5688
      %v5787 = vadd.f32 %v5680, %v5688
      %v5788 = vadd.f32 %v5681, %v5688
      %v5789 = vadd.f32 %v5682, %v5688
      %5790 = vst [vmem:[%s334] sm:$0xff] %v5690
      %5791 = vst [vmem:[%s334 + $0x8] sm:$0xff] %v5691
      %5792 = vst [vmem:[%s334 + $0x10] sm:$0xff] %v5692
      %5793 = vst [vmem:[%s334 + $0x18] sm:$0xff] %v5693
      %5794 = vst [vmem:[%s334 + $0x20] sm:$0xff] %v5694
      %5795 = vst [vmem:[%s334 + $0x28] sm:$0xff] %v5695
      %5796 = vst [vmem:[%s334 + $0x30] sm:$0xff] %v5696
      %5797 = vst [vmem:[%s334 + $0x38] sm:$0xff] %v5697
      %5798 = vst [vmem:[%s334 + $0x40] sm:$0xff] %v5698
      %5799 = vst [vmem:[%s334 + $0x48] sm:$0xff] %v5699
      %5800 = vst [vmem:[%s334 + $0x50] sm:$0xff] %v5700
      %5801 = vst [vmem:[%s334 + $0x58] sm:$0xff] %v5701
      %5802 = vst [vmem:[%s334 + $0x60] sm:$0xff] %v5702
      %5803 = vst [vmem:[%s334 + $0x68] sm:$0xff] %v5703
      %5804 = vst [vmem:[%s334 + $0x70] sm:$0xff] %v5704
      %5805 = vst [vmem:[%s334 + $0x78] sm:$0xff] %v5705
      %5806 = vst [vmem:[%s334 + $0x80] sm:$0xff] %v5706
      %5807 = vst [vmem:[%s334 + $0x88] sm:$0xff] %v5707
      %5808 = vst [vmem:[%s334 + $0x90] sm:$0xff] %v5708
      %5809 = vst [vmem:[%s334 + $0x98] sm:$0xff] %v5709
      %5810 = vst [vmem:[%s334 + $0xa0] sm:$0xff] %v5710
      %5811 = vst [vmem:[%s334 + $0xa8] sm:$0xff] %v5711
      %5812 = vst [vmem:[%s334 + $0xb0] sm:$0xff] %v5712
      %5813 = vst [vmem:[%s334 + $0xb8] sm:$0xff] %v5713
      %5814 = vst [vmem:[%s334 + $0xc0] sm:$0xff] %v5714
      %5815 = vst [vmem:[%s334 + $0xc8] sm:$0xff] %v5715
      %5816 = vst [vmem:[%s334 + $0xd0] sm:$0xff] %v5716
      %5817 = vst [vmem:[%s334 + $0xd8] sm:$0xff] %v5717
      %5818 = vst [vmem:[%s334 + $0xe0] sm:$0xff] %v5718
      %5819 = vst [vmem:[%s334 + $0xe8] sm:$0xff] %v5719
      %5820 = vst [vmem:[%s334 + $0xf0] sm:$0xff] %v5720
      %5821 = vst [vmem:[%s334 + $0xf8] sm:$0xff] %v5721
      %5822 = vst [vmem:[%s334 + $0x100] sm:$0xff] %v5722
      %5823 = vst [vmem:[%s334 + $0x108] sm:$0xff] %v5723
      %5824 = vst [vmem:[%s334 + $0x110] sm:$0xff] %v5724
      %5825 = vst [vmem:[%s334 + $0x118] sm:$0xff] %v5725
      %5826 = vst [vmem:[%s334 + $0x120] sm:$0xff] %v5726
      %5827 = vst [vmem:[%s334 + $0x128] sm:$0xff] %v5727
      %5828 = vst [vmem:[%s334 + $0x130] sm:$0xff] %v5728
      %5829 = vst [vmem:[%s334 + $0x138] sm:$0xff] %v5729
      %5830 = vst [vmem:[%s334 + $0x140] sm:$0xff] %v5730
      %5831 = vst [vmem:[%s334 + $0x148] sm:$0xff] %v5731
      %5832 = vst [vmem:[%s334 + $0x150] sm:$0xff] %v5732
      %5833 = vst [vmem:[%s334 + $0x158] sm:$0xff] %v5733
      %5834 = vst [vmem:[%s334 + $0x160] sm:$0xff] %v5734
      %5835 = vst [vmem:[%s334 + $0x168] sm:$0xff] %v5735
      %5836 = vst [vmem:[%s334 + $0x170] sm:$0xff] %v5736
      %5837 = vst [vmem:[%s334 + $0x178] sm:$0xff] %v5737
      %5838 = vst [vmem:[%s334 + $0x180] sm:$0xff] %v5738
      %5839 = vst [vmem:[%s334 + $0x188] sm:$0xff] %v5739
      %5840 = vst [vmem:[%s334 + $0x190] sm:$0xff] %v5740
      %5841 = vst [vmem:[%s334 + $0x198] sm:$0xff] %v5741
      %5842 = vst [vmem:[%s334 + $0x1a0] sm:$0xff] %v5742
      %5843 = vst [vmem:[%s334 + $0x1a8] sm:$0xff] %v5743
      %5844 = vst [vmem:[%s334 + $0x1b0] sm:$0xff] %v5744
      %5845 = vst [vmem:[%s334 + $0x1b8] sm:$0xff] %v5745
      %5846 = vst [vmem:[%s334 + $0x1c0] sm:$0xff] %v5746
      %5847 = vst [vmem:[%s334 + $0x1c8] sm:$0xff] %v5747
      %5848 = vst [vmem:[%s334 + $0x1d0] sm:$0xff] %v5748
      %5849 = vst [vmem:[%s334 + $0x1d8] sm:$0xff] %v5749
      %5850 = vst [vmem:[%s334 + $0x1e0] sm:$0xff] %v5750
      %5851 = vst [vmem:[%s334 + $0x1e8] sm:$0xff] %v5751
      %5852 = vst [vmem:[%s334 + $0x1f0] sm:$0xff] %v5752
      %5853 = vst [vmem:[%s334 + $0x1f8] sm:$0xff] %v5753
      %5854 = vst [vmem:[%s334 + $0x200] sm:$0xff] %v5754
      %5855 = vst [vmem:[%s334 + $0x208] sm:$0xff] %v5755
      %5856 = vst [vmem:[%s334 + $0x210] sm:$0xff] %v5756
      %5857 = vst [vmem:[%s334 + $0x218] sm:$0xff] %v5757
      %5858 = vst [vmem:[%s334 + $0x220] sm:$0xff] %v5758
      %5859 = vst [vmem:[%s334 + $0x228] sm:$0xff] %v5759
      %5860 = vst [vmem:[%s334 + $0x230] sm:$0xff] %v5760
      %5861 = vst [vmem:[%s334 + $0x238] sm:$0xff] %v5761
      %5862 = vst [vmem:[%s334 + $0x240] sm:$0xff] %v5762
      %5863 = vst [vmem:[%s334 + $0x248] sm:$0xff] %v5763
      %5864 = vst [vmem:[%s334 + $0x250] sm:$0xff] %v5764
      %5865 = vst [vmem:[%s334 + $0x258] sm:$0xff] %v5765
      %5866 = vst [vmem:[%s334 + $0x260] sm:$0xff] %v5766
      %5867 = vst [vmem:[%s334 + $0x268] sm:$0xff] %v5767
      %5868 = vst [vmem:[%s334 + $0x270] sm:$0xff] %v5768
      %5869 = vst [vmem:[%s334 + $0x278] sm:$0xff] %v5769
      %5870 = vst [vmem:[%s334 + $0x280] sm:$0xff] %v5770
      %5871 = vst [vmem:[%s334 + $0x288] sm:$0xff] %v5771
      %5872 = vst [vmem:[%s334 + $0x290] sm:$0xff] %v5772
      %5873 = vst [vmem:[%s334 + $0x298] sm:$0xff] %v5773
      %5874 = vst [vmem:[%s334 + $0x2a0] sm:$0xff] %v5774
      %5875 = vst [vmem:[%s334 + $0x2a8] sm:$0xff] %v5775
      %5876 = vst [vmem:[%s334 + $0x2b0] sm:$0xff] %v5776
      %5877 = vst [vmem:[%s334 + $0x2b8] sm:$0xff] %v5777
      %5878 = vst [vmem:[%s334 + $0x2c0] sm:$0xff] %v5778
      %5879 = vst [vmem:[%s334 + $0x2c8] sm:$0xff] %v5779
      %5880 = vst [vmem:[%s334 + $0x2d0] sm:$0xff] %v5780
      %5881 = vst [vmem:[%s334 + $0x2d8] sm:$0xff] %v5781
      %5882 = vst [vmem:[%s334 + $0x2e0] sm:$0xff] %v5782
      %5883 = vst [vmem:[%s334 + $0x2e8] sm:$0xff] %v5783
      %5884 = vst [vmem:[%s334 + $0x2f0] sm:$0xff] %v5784
      %5885 = vst [vmem:[%s334 + $0x2f8] sm:$0xff] %v5785
      %5886 = vst [vmem:[%s334 + $0x300] sm:$0xff] %v5786
      %5887 = vst [vmem:[%s334 + $0x308] sm:$0xff] %v5787
      %5888 = vst [vmem:[%s334 + $0x310] sm:$0xff] %v5788
      %5889 = vst [vmem:[%s334 + $0x318] sm:$0xff] %v5789
      %s5890 = smul.u32 100, %s20
      %p5891 = scmp.lt.s32.totalorder %s5890, 199
      %s5892 = scalar_select %p5891, %s5890, 199
      %s5893 = smul.addr %s5892, 8
      %s5894 = scalar_lea.vmem %s9, %s5893
      // Predicated region
      $region57: #{pe_feedforward.1} parent=55 // pred_check
        %p5895 = pneg %p232
      $region58: #{pe_feedforward.1} parent=55 // pred_check_branch
        %5897 = sbr.rel (%p5895) target = $region60
      $region59: #{pe_feedforward.1} parent=55 // pred_region
        %s5898 = smul.u32 100, %s20
      $region60: #{pe_feedforward.1} parent=55 // pred_fallthru
        _
    $region56: #{pe_feedforward.1} parent=5 // pred_fallthru
      _
    %p5899 = scmp.le.s32.totalorder 2, %s15
    // Predicated region
    $region61: #{pe_feedforward.1} parent=5 // pred_check
      %p5900 = pneg %p5899
    $region62: #{pe_feedforward.1} parent=5 // pred_check_branch
      %5902 = sbr.rel (%p5900) target = $region64
    $region63: #{pe_feedforward.1} parent=5 // pred_region
      %s5903 = ssub.s32 %s15, 2
      // Predicated region
      $region65: #{pe_feedforward.1} parent=63 // pred_check
        %p5904 = pneg %p238
      $region66: #{pe_feedforward.1} parent=63 // pred_check_branch
        %5906 = sbr.rel (%p5904) target = $region68
      $region67: #{pe_feedforward.1} parent=63 // pred_region
        %s5907 = smul.u32 100, %s21
        %p5908 = scmp.lt.s32.totalorder %s5907, 199
        %s5909 = scalar_select %p5908, %s5907, 199
        %s5910 = smul.addr %s5909, 8
        %s5911 = scalar_lea.vmem %s9, %s5910
      $region68: #{pe_feedforward.1} parent=63 // pred_fallthru
        _
    $region64: #{pe_feedforward.1} parent=5 // pred_fallthru
      _
  $region6: #{pe_feedforward.1} parent=0 // loop_footer
    %s19 = sadd.s32 1, %s15
  $region7: #{pe_feedforward.1} parent=0 // loop_footer_branch
    %14 = sbr.rel target = $region3
  $region8: #{pe_feedforward.1} parent=0 // loop_exit
    _

</llo_original>
